<compile_context>
chip_gen: v6e
topology: v6e:2x2x1
jax: 0.10.0
libtpu: 0.0.40
codegen_flags: <defaults>
</compile_context>

<pallas_src>
import functools

import numpy as np
import jax
import jax.numpy as jnp
from jax.experimental import pallas as pl
from jax.experimental.pallas import tpu as pltpu


# ----------------------------------------------------------------------------
# Operator construction (plain numpy "glue")
# ----------------------------------------------------------------------------
def _avg_pool_matrix(in_size, out_size):
    """1-D adaptive average pool as a (out_size, in_size) matrix."""
    P = np.zeros((out_size, in_size), dtype=np.float64)
    for i in range(out_size):
        start = (i * in_size) // out_size
        end = ((i + 1) * in_size + out_size - 1) // out_size  # ceil
        P[i, start:end] = 1.0 / (end - start)
    return P


def _bilinear_upsample_matrix(in_size, out_size):
    """1-D bilinear interpolation (align_corners=False) as (out_size, in_size)."""
    U = np.zeros((out_size, in_size), dtype=np.float64)
    scale = in_size / out_size
    for o in range(out_size):
        src = (o + 0.5) * scale - 0.5
        src = max(src, 0.0)                        # PyTorch clamps negative src
        i0 = min(int(np.floor(src)), in_size - 1)
        i1 = min(i0 + 1, in_size - 1)
        w1 = src - i0
        U[o, i0] += 1.0 - w1
        U[o, i1] += w1
    return U


def build_spatial_operator(H, W, scales=(1, 2, 4, 8)):
    """K[(a*W+b),(h*W+w)] = sum_s Mr_s[a,h]*Mc_s[b,w]  (pool+upsample+sum)."""
    K = np.zeros((H * W, H * W), dtype=np.float64)
    for s in scales:
        Mr = _bilinear_upsample_matrix(s, H) @ _avg_pool_matrix(H, s)   # (H, H)
        Mc = _bilinear_upsample_matrix(s, W) @ _avg_pool_matrix(W, s)   # (W, W)
        K += np.kron(Mr, Mc)
    return K.astype(np.float32)


# ----------------------------------------------------------------------------
# Pallas kernel: bt batch elements per grid step, natural channels-last layout
# ----------------------------------------------------------------------------
def adapter_kernel(x_ref, k_ref, w1t_ref, w2t_ref, gamma_ref, beta_ref,
                   o_ref, pooled_scr, *, skip_connect):
    """x_ref : (bt, HW, C)   activations (f32 or bf16)
    k_ref    : (HW, HW)      fused pyramid operator, bf16
    w1t_ref  : (C, hidden)   channel-attention weights (pre-transposed)
    w2t_ref  : (hidden, C)
    gamma/beta: (1, C)       LayerNorm affine parameters
    pooled_scr: (bt, C) f32  VMEM scratch for the batched channel attention
    """
    bt, hw, _ = x_ref.shape
    inv_hw = 1.0 / hw

    # --- channel attention, batched across the bt batch elements -----------
    # Per-b HW-mean of the *unscaled* input, read straight from the ref (no
    # full-block f32 copy is kept live), assembled into a tiny scratch so the
    # two Linear layers run as single batched dots instead of 2*bt matvecs.
    for b in range(bt):
        pooled_scr[pl.ds(b, 1), :] = (
            jnp.sum(x_ref[b].astype(jnp.float32), axis=0, keepdims=True) * inv_hw)
    hid = jnp.maximum(
        jnp.dot(pooled_scr[...], w1t_ref[...],
                preferred_element_type=jnp.float32), 0.0)              # (bt, hidden)
    s = jax.nn.sigmoid(
        jnp.dot(hid, w2t_ref[...], preferred_element_type=jnp.float32))  # (bt, C)

    # LayerNorm affine params: load + broadcast once, not per unrolled b.
    gamma = gamma_ref[...]                                             # (1, C)
    beta = beta_ref[...]                                               # (1, C)

    for b in range(bt):                                                # static unroll
        # Pyramid operator first; linearity (K @ (x*s) == (K @ x) * s) keeps
        # the attention chain off the MXU critical path.  K is re-read from
        # VMEM each iteration to keep vreg live ranges local.
        raw = jnp.dot(k_ref[...], x_ref[b].astype(jnp.bfloat16),
                      preferred_element_type=jnp.float32)              # (HW, C) f32
        y = raw * s[b:b + 1, :]                                        # channel scale
        if skip_connect:
            y = y + x_ref[b].astype(jnp.float32)                       # skip from ref
        # LayerNorm over channels (= the minor/lane dim in this layout).
        mu = jnp.mean(y, axis=-1, keepdims=True)                       # (HW, 1)
        d = y - mu
        var = jnp.mean(d * d, axis=-1, keepdims=True)                  # biased var
        o_ref[b] = (d * jax.lax.rsqrt(var + 1e-5) * gamma + beta).astype(o_ref.dtype)


def _pick_bt(B, HW, C, itemsize=4, vmem_budget=8 << 20):
    """Largest per-step batch whose double-buffered in+out blocks fit in
    ~vmem_budget, preferring an even grid (both v7x TensorCores busy)."""
    lane_c = -(-C // 128) * 128                    # VMEM lane padding of the C dim
    per_b = HW * lane_c * max(int(itemsize), 4)    # one batch element, f32 worst case
    max_bt = max(1, vmem_budget // (4 * per_b))    # 2 bufs in + 2 bufs out
    divisors = [d for d in range(1, B + 1) if B % d == 0 and d <= max_bt]
    even_g = [d for d in divisors if (B // d) % 2 == 0]
    return max(even_g) if even_g else max(divisors)


def pooling_pyramid_adapter(x, K, w1, w2, gamma, beta, *,
                            bt=None, out_dtype=None, skip_connect=True):
    """x: (B, H, W, C) channels-last.  w1: (hidden, C), w2: (C, hidden)
    (PyTorch nn.Linear layout).  K: (H*W, H*W) fused pyramid operator."""
    B, H, W, C = x.shape
    HW = H * W
    hidden = w1.shape[0]
    if out_dtype is None:
        out_dtype = x.dtype
    if bt is None:
        bt = _pick_bt(B, HW, C, x.dtype.itemsize)
    assert B % bt == 0, "bt must divide B"
    G = B // bt
    # TODO(synk): for large odd/prime B whose only divisor under the VMEM
    # budget is 1, pad the batch to the next even multiple instead of
    # degrading to bt=1 micro-steps.

    # Free dim-merge only — no transposes on either side of the kernel.
    x3 = x.reshape(B, HW, C)
    k_b16 = jnp.asarray(K, jnp.float32).astype(jnp.bfloat16)           # (HW, HW)
    w1t = jnp.asarray(w1, jnp.float32).T                               # (C, hidden)
    w2t = jnp.asarray(w2, jnp.float32).T                               # (hidden, C)
    gamma2 = jnp.asarray(gamma, jnp.float32).reshape(1, C)
    beta2 = jnp.asarray(beta, jnp.float32).reshape(1, C)

    out3 = pl.pallas_call(
        functools.partial(adapter_kernel, skip_connect=skip_connect),
        out_shape=jax.ShapeDtypeStruct((B, HW, C), out_dtype),
        grid=(G,),
        in_specs=[
            pl.BlockSpec((bt, HW, C), lambda g: (g, 0, 0)),
            # Constant index_map: K stays resident across the grid.  For the
            # large-HW fallback (e.g. 64x64 -> 32 MiB bf16) switch to the
            # separable per-scale form and/or pipeline_mode=pl.Buffered(1)
            # with a raised vmem_limit_bytes; at 16x16 K is only 128 KiB.
            pl.BlockSpec((HW, HW), lambda g: (0, 0)),
            pl.BlockSpec((C, hidden), lambda g: (0, 0)),
            pl.BlockSpec((hidden, C), lambda g: (0, 0)),
            pl.BlockSpec((1, C), lambda g: (0, 0)),
            pl.BlockSpec((1, C), lambda g: (0, 0)),
        ],
        out_specs=pl.BlockSpec((bt, HW, C), lambda g: (g, 0, 0)),
        scratch_shapes=[pltpu.VMEM((bt, C), jnp.float32)],
        compiler_params=pltpu.CompilerParams(dimension_semantics=("parallel",)),
    )(x3, k_b16, w1t, w2t, gamma2, beta2)

    return out3.reshape(B, H, W, C)


# ----------------------------------------------------------------------------
# Pure numpy reference (applies each pyramid scale separably) for validation
# ----------------------------------------------------------------------------
def reference(x, w1, w2, gamma, beta, scales=(1, 2, 4, 8)):
    x = np.asarray(x, np.float64)
    B, H, W, C = x.shape
    pooled = x.mean(axis=(1, 2))                                       # (B, C)
    h = np.maximum(pooled @ np.asarray(w1, np.float64).T, 0.0)
    s = 1.0 / (1.0 + np.exp(-(h @ np.asarray(w2, np.float64).T)))      # (B, C)
    xc = x * s[:, None, None, :]
    multi = np.zeros_like(x)
    for sc in scales:
        Mr = _bilinear_upsample_matrix(sc, H) @ _avg_pool_matrix(H, sc)
        Mc = _bilinear_upsample_matrix(sc, W) @ _avg_pool_matrix(W, sc)
        multi += np.einsum('ah,bw,nhwc->nabc', Mr, Mc, xc)
    y = x + multi
    mu = y.mean(axis=-1, keepdims=True)
    var = ((y - mu) ** 2).mean(axis=-1, keepdims=True)
    return (y - mu) / np.sqrt(var + 1e-5) * np.asarray(gamma, np.float64) \
        + np.asarray(beta, np.float64)


# ----------------------------------------------------------------------------
if __name__ == "__main__":
    # Small shapes consistent with the module: embed_dim -> C, mlp_ratio=0.25
    B, H, W, C = 8, 16, 16, 32
    hidden = int(C * 0.25)             # 8
    scales = (1, 2, 4, 8)

    key = jax.random.PRNGKey(0)
    kx, k1, k2, kg, kb = jax.random.split(key, 5)
    x = jax.random.normal(kx, (B, H, W, C), dtype=jnp.float32)

    # Deterministic synthetic parameters (shapes match nn.Linear / nn.LayerNorm)
    w1 = jax.random.normal(k1, (hidden, C), dtype=jnp.float32) / np.sqrt(C)
    w2 = jax.random.normal(k2, (C, hidden), dtype=jnp.float32) / np.sqrt(hidden)
    gamma = 1.0 + 0.05 * jax.random.normal(kg, (C,), dtype=jnp.float32)
    beta = 0.05 * jax.random.normal(kb, (C,), dtype=jnp.float32)
    # TODO(synk): self.upsample (ConvTranspose2d) is declared in __init__ but
    # never used in forward(), so it is intentionally not implemented.

    K = jnp.asarray(build_spatial_operator(H, W, scales))

    out = pooling_pyramid_adapter(x, K, w1, w2, gamma, beta)
    out = jax.block_until_ready(out)

    ref = reference(np.asarray(x), np.asarray(w1), np.asarray(w2),
                    np.asarray(gamma), np.asarray(beta), scales)
    # bf16 MXU operands for the pyramid matmul (f32 accumulation) => keep the
    # tolerance at 1e-2; do not tighten.
    np.testing.assert_allclose(np.asarray(out), ref, rtol=1e-2, atol=1e-2)

    print("KERNEL_OK")
</pallas_src>

<mosaic_0001>
module attributes {stable_mosaic.version = 11 : i64} {
  func.func @adapter_kernel(%arg0: i32, %arg1: memref<4x256x32xf32, #tpu.memory_space<vmem>>, %arg2: memref<256x256xbf16, #tpu.memory_space<vmem>>, %arg3: memref<32x8xf32, #tpu.memory_space<vmem>>, %arg4: memref<8x32xf32, #tpu.memory_space<vmem>>, %arg5: memref<1x32xf32, #tpu.memory_space<vmem>>, %arg6: memref<1x32xf32, #tpu.memory_space<vmem>>, %arg7: memref<4x256x32xf32, #tpu.memory_space<vmem>>, %arg8: memref<4x32xf32, #tpu.memory_space<vmem>>) attributes {dimension_semantics = [#tpu.dimension_semantics<parallel>], iteration_bounds = array<i64: 2>, scalar_prefetch = 0 : i64, scratch_operands = 1 : i64, tpu.core_type = #tpu.core_type<tc>, window_params = [{transform_indices = @transform_0, window_bounds = array<i64: 4, 256, 32>}, {pipeline_mode = #tpu.pipeline_mode<synchronous>, transform_indices = @transform_1, window_bounds = array<i64: 256, 256>}, {pipeline_mode = #tpu.pipeline_mode<synchronous>, transform_indices = @transform_2, window_bounds = array<i64: 32, 8>}, {pipeline_mode = #tpu.pipeline_mode<synchronous>, transform_indices = @transform_3, window_bounds = array<i64: 8, 32>}, {pipeline_mode = #tpu.pipeline_mode<synchronous>, transform_indices = @transform_4, window_bounds = array<i64: 1, 32>}, {pipeline_mode = #tpu.pipeline_mode<synchronous>, transform_indices = @transform_5, window_bounds = array<i64: 1, 32>}, {transform_indices = @transform_6, window_bounds = array<i64: 4, 256, 32>}]} {
    %c0 = arith.constant 0 : index
    %c0_0 = arith.constant 0 : index
    %c0_1 = arith.constant 0 : index
    %0 = vector.load %arg1[%c0, %c0_0, %c0_1] : memref<4x256x32xf32, #tpu.memory_space<vmem>>, vector<1x256x32xf32>
    %1 = vector.shape_cast %0 : vector<1x256x32xf32> to vector<256x32xf32>
    %cst = arith.constant dense<0.000000e+00> : vector<32xf32>
    %2 = vector.multi_reduction <add>, %1, %cst [0] : vector<256x32xf32> to vector<32xf32>
    %3 = vector.shape_cast %2 : vector<32xf32> to vector<1x32xf32>
    %cst_2 = arith.constant 3.906250e-03 : f32
    %4 = vector.broadcast %cst_2 : f32 to vector<1x32xf32>
    %5 = arith.mulf %3, %4 : vector<1x32xf32>
    %c0_3 = arith.constant 0 : index
    %c0_4 = arith.constant 0 : index
    %6 = vector.load %arg8[%c0_3, %c0_4] : memref<4x32xf32, #tpu.memory_space<vmem>>, vector<1x32xf32>
    tpu.vector_store %arg8[%c0_3, %c0_4], %5 {strides = array<i32>} : memref<4x32xf32, #tpu.memory_space<vmem>>, vector<1x32xf32>,
    %c1 = arith.constant 1 : index
    %c0_5 = arith.constant 0 : index
    %c0_6 = arith.constant 0 : index
    %7 = vector.load %arg1[%c1, %c0_5, %c0_6] : memref<4x256x32xf32, #tpu.memory_space<vmem>>, vector<1x256x32xf32>
    %8 = vector.shape_cast %7 : vector<1x256x32xf32> to vector<256x32xf32>
    %cst_7 = arith.constant dense<0.000000e+00> : vector<32xf32>
    %9 = vector.multi_reduction <add>, %8, %cst_7 [0] : vector<256x32xf32> to vector<32xf32>
    %10 = vector.shape_cast %9 : vector<32xf32> to vector<1x32xf32>
    %cst_8 = arith.constant 3.906250e-03 : f32
    %11 = vector.broadcast %cst_8 : f32 to vector<1x32xf32>
    %12 = arith.mulf %10, %11 : vector<1x32xf32>
    %c1_9 = arith.constant 1 : index
    %c0_10 = arith.constant 0 : index
    %13 = vector.load %arg8[%c1_9, %c0_10] : memref<4x32xf32, #tpu.memory_space<vmem>>, vector<1x32xf32>
    tpu.vector_store %arg8[%c1_9, %c0_10], %12 {strides = array<i32>} : memref<4x32xf32, #tpu.memory_space<vmem>>, vector<1x32xf32>,
    %c2 = arith.constant 2 : index
    %c0_11 = arith.constant 0 : index
    %c0_12 = arith.constant 0 : index
    %14 = vector.load %arg1[%c2, %c0_11, %c0_12] : memref<4x256x32xf32, #tpu.memory_space<vmem>>, vector<1x256x32xf32>
    %15 = vector.shape_cast %14 : vector<1x256x32xf32> to vector<256x32xf32>
    %cst_13 = arith.constant dense<0.000000e+00> : vector<32xf32>
    %16 = vector.multi_reduction <add>, %15, %cst_13 [0] : vector<256x32xf32> to vector<32xf32>
    %17 = vector.shape_cast %16 : vector<32xf32> to vector<1x32xf32>
    %cst_14 = arith.constant 3.906250e-03 : f32
    %18 = vector.broadcast %cst_14 : f32 to vector<1x32xf32>
    %19 = arith.mulf %17, %18 : vector<1x32xf32>
    %c2_15 = arith.constant 2 : index
    %c0_16 = arith.constant 0 : index
    %20 = vector.load %arg8[%c2_15, %c0_16] : memref<4x32xf32, #tpu.memory_space<vmem>>, vector<1x32xf32>
    tpu.vector_store %arg8[%c2_15, %c0_16], %19 {strides = array<i32>} : memref<4x32xf32, #tpu.memory_space<vmem>>, vector<1x32xf32>,
    %c3 = arith.constant 3 : index
    %c0_17 = arith.constant 0 : index
    %c0_18 = arith.constant 0 : index
    %21 = vector.load %arg1[%c3, %c0_17, %c0_18] : memref<4x256x32xf32, #tpu.memory_space<vmem>>, vector<1x256x32xf32>
    %22 = vector.shape_cast %21 : vector<1x256x32xf32> to vector<256x32xf32>
    %cst_19 = arith.constant dense<0.000000e+00> : vector<32xf32>
    %23 = vector.multi_reduction <add>, %22, %cst_19 [0] : vector<256x32xf32> to vector<32xf32>
    %24 = vector.shape_cast %23 : vector<32xf32> to vector<1x32xf32>
    %cst_20 = arith.constant 3.906250e-03 : f32
    %25 = vector.broadcast %cst_20 : f32 to vector<1x32xf32>
    %26 = arith.mulf %24, %25 : vector<1x32xf32>
    %c3_21 = arith.constant 3 : index
    %c0_22 = arith.constant 0 : index
    %27 = vector.load %arg8[%c3_21, %c0_22] : memref<4x32xf32, #tpu.memory_space<vmem>>, vector<1x32xf32>
    tpu.vector_store %arg8[%c3_21, %c0_22], %26 {strides = array<i32>} : memref<4x32xf32, #tpu.memory_space<vmem>>, vector<1x32xf32>,
    %c0_23 = arith.constant 0 : index
    %c0_24 = arith.constant 0 : index
    %28 = vector.load %arg8[%c0_23, %c0_24] : memref<4x32xf32, #tpu.memory_space<vmem>>, vector<4x32xf32>
    %c0_25 = arith.constant 0 : index
    %c0_26 = arith.constant 0 : index
    %29 = vector.load %arg3[%c0_25, %c0_26] : memref<32x8xf32, #tpu.memory_space<vmem>>, vector<32x8xf32>
    %cst_27 = arith.constant dense<0.000000e+00> : vector<4x8xf32>
    %30 = tpu.matmul %28, %29, %cst_27 {dimension_numbers = #tpu.dot_dimension_numbers<[1], [0], [0], [1], [0, 0, 1, 1], [], []>} : vector<4x32xf32>, vector<32x8xf32>, vector<4x8xf32> -> vector<4x8xf32>
    %cst_28 = arith.constant 0.000000e+00 : f32
    %31 = vector.broadcast %cst_28 : f32 to vector<4x8xf32>
    %32 = arith.maximumf %30, %31 : vector<4x8xf32>
    %c0_29 = arith.constant 0 : index
    %c0_30 = arith.constant 0 : index
    %33 = vector.load %arg4[%c0_29, %c0_30] : memref<8x32xf32, #tpu.memory_space<vmem>>, vector<8x32xf32>
    %cst_31 = arith.constant dense<0.000000e+00> : vector<4x32xf32>
    %34 = tpu.matmul %32, %33, %cst_31 {dimension_numbers = #tpu.dot_dimension_numbers<[1], [0], [0], [1], [0, 0, 1, 1], [], []>} : vector<4x8xf32>, vector<8x32xf32>, vector<4x32xf32> -> vector<4x32xf32>
    %35 = arith.negf %34 : vector<4x32xf32>
    %36 = math.exp %35 : vector<4x32xf32>
    %cst_32 = arith.constant 1.000000e+00 : f32
    %37 = vector.broadcast %cst_32 : f32 to vector<4x32xf32>
    %38 = arith.addf %37, %36 : vector<4x32xf32>
    %39 = arith.divf %37, %38 : vector<4x32xf32>
    %c0_33 = arith.constant 0 : index
    %c0_34 = arith.constant 0 : index
    %40 = vector.load %arg5[%c0_33, %c0_34] : memref<1x32xf32, #tpu.memory_space<vmem>>, vector<1x32xf32>
    %c0_35 = arith.constant 0 : index
    %c0_36 = arith.constant 0 : index
    %41 = vector.load %arg6[%c0_35, %c0_36] : memref<1x32xf32, #tpu.memory_space<vmem>>, vector<1x32xf32>
    %c0_37 = arith.constant 0 : index
    %c0_38 = arith.constant 0 : index
    %42 = vector.load %arg2[%c0_37, %c0_38] : memref<256x256xbf16, #tpu.memory_space<vmem>>, vector<256x256xbf16>
    %c0_39 = arith.constant 0 : index
    %c0_40 = arith.constant 0 : index
    %c0_41 = arith.constant 0 : index
    %43 = vector.load %arg1[%c0_39, %c0_40, %c0_41] : memref<4x256x32xf32, #tpu.memory_space<vmem>>, vector<1x256x32xf32>
    %44 = vector.shape_cast %43 : vector<1x256x32xf32> to vector<256x32xf32>
    %45 = arith.truncf %44 : vector<256x32xf32> to vector<256x32xbf16>
    %cst_42 = arith.constant dense<0.000000e+00> : vector<256x32xf32>
    %46 = tpu.matmul %42, %45, %cst_42 {dimension_numbers = #tpu.dot_dimension_numbers<[1], [0], [0], [1], [0, 0, 1, 1], [], []>} : vector<256x256xbf16>, vector<256x32xbf16>, vector<256x32xf32> -> vector<256x32xf32>
    %47 = vector.extract_strided_slice %39 {offsets = [0, 0], sizes = [1, 32], strides = [1, 1]} : vector<4x32xf32> to vector<1x32xf32>
    %48 = vector.broadcast %47 : vector<1x32xf32> to vector<256x32xf32>
    %49 = arith.mulf %46, %48 : vector<256x32xf32>
    %c0_43 = arith.constant 0 : index
    %c0_44 = arith.constant 0 : index
    %c0_45 = arith.constant 0 : index
    %50 = vector.load %arg1[%c0_43, %c0_44, %c0_45] : memref<4x256x32xf32, #tpu.memory_space<vmem>>, vector<1x256x32xf32>
    %51 = vector.shape_cast %50 : vector<1x256x32xf32> to vector<256x32xf32>
    %52 = arith.addf %49, %51 : vector<256x32xf32>
    %cst_46 = arith.constant dense<0.000000e+00> : vector<256xf32>
    %53 = vector.multi_reduction <add>, %52, %cst_46 [1] : vector<256x32xf32> to vector<256xf32>
    %54 = vector.shape_cast %53 : vector<256xf32> to vector<256x1xf32>
    %cst_47 = arith.constant 3.200000e+01 : f32
    %55 = vector.broadcast %cst_47 : f32 to vector<256x1xf32>
    %56 = arith.divf %54, %55 : vector<256x1xf32>
    %57 = vector.broadcast %56 : vector<256x1xf32> to vector<256x32xf32>
    %58 = arith.subf %52, %57 : vector<256x32xf32>
    %59 = arith.mulf %58, %58 : vector<256x32xf32>
    %cst_48 = arith.constant dense<0.000000e+00> : vector<256xf32>
    %60 = vector.multi_reduction <add>, %59, %cst_48 [1] : vector<256x32xf32> to vector<256xf32>
    %61 = vector.shape_cast %60 : vector<256xf32> to vector<256x1xf32>
    %cst_49 = arith.constant 3.200000e+01 : f32
    %62 = vector.broadcast %cst_49 : f32 to vector<256x1xf32>
    %63 = arith.divf %61, %62 : vector<256x1xf32>
    %cst_50 = arith.constant 9.99999974E-6 : f32
    %64 = vector.broadcast %cst_50 : f32 to vector<256x1xf32>
    %65 = arith.addf %63, %64 : vector<256x1xf32>
    %66 = math.rsqrt %65 : vector<256x1xf32>
    %67 = vector.broadcast %66 : vector<256x1xf32> to vector<256x32xf32>
    %68 = arith.mulf %58, %67 : vector<256x32xf32>
    %69 = vector.broadcast %40 : vector<1x32xf32> to vector<256x32xf32>
    %70 = arith.mulf %68, %69 : vector<256x32xf32>
    %71 = vector.broadcast %41 : vector<1x32xf32> to vector<256x32xf32>
    %72 = arith.addf %70, %71 : vector<256x32xf32>
    %c0_51 = arith.constant 0 : index
    %c0_52 = arith.constant 0 : index
    %c0_53 = arith.constant 0 : index
    %73 = vector.load %arg7[%c0_51, %c0_52, %c0_53] : memref<4x256x32xf32, #tpu.memory_space<vmem>>, vector<1x256x32xf32>
    %74 = vector.shape_cast %73 : vector<1x256x32xf32> to vector<256x32xf32>
    %75 = vector.shape_cast %72 : vector<256x32xf32> to vector<1x256x32xf32>
    tpu.vector_store %arg7[%c0_51, %c0_52, %c0_53], %75 {strides = array<i32>} : memref<4x256x32xf32, #tpu.memory_space<vmem>>, vector<1x256x32xf32>,
    %c0_54 = arith.constant 0 : index
    %c0_55 = arith.constant 0 : index
    %76 = vector.load %arg2[%c0_54, %c0_55] : memref<256x256xbf16, #tpu.memory_space<vmem>>, vector<256x256xbf16>
    %c1_56 = arith.constant 1 : index
    %c0_57 = arith.constant 0 : index
    %c0_58 = arith.constant 0 : index
    %77 = vector.load %arg1[%c1_56, %c0_57, %c0_58] : memref<4x256x32xf32, #tpu.memory_space<vmem>>, vector<1x256x32xf32>
    %78 = vector.shape_cast %77 : vector<1x256x32xf32> to vector<256x32xf32>
    %79 = arith.truncf %78 : vector<256x32xf32> to vector<256x32xbf16>
    %cst_59 = arith.constant dense<0.000000e+00> : vector<256x32xf32>
    %80 = tpu.matmul %76, %79, %cst_59 {dimension_numbers = #tpu.dot_dimension_numbers<[1], [0], [0], [1], [0, 0, 1, 1], [], []>} : vector<256x256xbf16>, vector<256x32xbf16>, vector<256x32xf32> -> vector<256x32xf32>
    %81 = vector.extract_strided_slice %39 {offsets = [1, 0], sizes = [1, 32], strides = [1, 1]} : vector<4x32xf32> to vector<1x32xf32>
    %82 = vector.broadcast %81 : vector<1x32xf32> to vector<256x32xf32>
    %83 = arith.mulf %80, %82 : vector<256x32xf32>
    %c1_60 = arith.constant 1 : index
    %c0_61 = arith.constant 0 : index
    %c0_62 = arith.constant 0 : index
    %84 = vector.load %arg1[%c1_60, %c0_61, %c0_62] : memref<4x256x32xf32, #tpu.memory_space<vmem>>, vector<1x256x32xf32>
    %85 = vector.shape_cast %84 : vector<1x256x32xf32> to vector<256x32xf32>
    %86 = arith.addf %83, %85 : vector<256x32xf32>
    %cst_63 = arith.constant dense<0.000000e+00> : vector<256xf32>
    %87 = vector.multi_reduction <add>, %86, %cst_63 [1] : vector<256x32xf32> to vector<256xf32>
    %88 = vector.shape_cast %87 : vector<256xf32> to vector<256x1xf32>
    %cst_64 = arith.constant 3.200000e+01 : f32
    %89 = vector.broadcast %cst_64 : f32 to vector<256x1xf32>
    %90 = arith.divf %88, %89 : vector<256x1xf32>
    %91 = vector.broadcast %90 : vector<256x1xf32> to vector<256x32xf32>
    %92 = arith.subf %86, %91 : vector<256x32xf32>
    %93 = arith.mulf %92, %92 : vector<256x32xf32>
    %cst_65 = arith.constant dense<0.000000e+00> : vector<256xf32>
    %94 = vector.multi_reduction <add>, %93, %cst_65 [1] : vector<256x32xf32> to vector<256xf32>
    %95 = vector.shape_cast %94 : vector<256xf32> to vector<256x1xf32>
    %cst_66 = arith.constant 3.200000e+01 : f32
    %96 = vector.broadcast %cst_66 : f32 to vector<256x1xf32>
    %97 = arith.divf %95, %96 : vector<256x1xf32>
    %cst_67 = arith.constant 9.99999974E-6 : f32
    %98 = vector.broadcast %cst_67 : f32 to vector<256x1xf32>
    %99 = arith.addf %97, %98 : vector<256x1xf32>
    %100 = math.rsqrt %99 : vector<256x1xf32>
    %101 = vector.broadcast %100 : vector<256x1xf32> to vector<256x32xf32>
    %102 = arith.mulf %92, %101 : vector<256x32xf32>
    %103 = vector.broadcast %40 : vector<1x32xf32> to vector<256x32xf32>
    %104 = arith.mulf %102, %103 : vector<256x32xf32>
    %105 = vector.broadcast %41 : vector<1x32xf32> to vector<256x32xf32>
    %106 = arith.addf %104, %105 : vector<256x32xf32>
    %c1_68 = arith.constant 1 : index
    %c0_69 = arith.constant 0 : index
    %c0_70 = arith.constant 0 : index
    %107 = vector.load %arg7[%c1_68, %c0_69, %c0_70] : memref<4x256x32xf32, #tpu.memory_space<vmem>>, vector<1x256x32xf32>
    %108 = vector.shape_cast %107 : vector<1x256x32xf32> to vector<256x32xf32>
    %109 = vector.shape_cast %106 : vector<256x32xf32> to vector<1x256x32xf32>
    tpu.vector_store %arg7[%c1_68, %c0_69, %c0_70], %109 {strides = array<i32>} : memref<4x256x32xf32, #tpu.memory_space<vmem>>, vector<1x256x32xf32>,
    %c0_71 = arith.constant 0 : index
    %c0_72 = arith.constant 0 : index
    %110 = vector.load %arg2[%c0_71, %c0_72] : memref<256x256xbf16, #tpu.memory_space<vmem>>, vector<256x256xbf16>
    %c2_73 = arith.constant 2 : index
    %c0_74 = arith.constant 0 : index
    %c0_75 = arith.constant 0 : index
    %111 = vector.load %arg1[%c2_73, %c0_74, %c0_75] : memref<4x256x32xf32, #tpu.memory_space<vmem>>, vector<1x256x32xf32>
    %112 = vector.shape_cast %111 : vector<1x256x32xf32> to vector<256x32xf32>
    %113 = arith.truncf %112 : vector<256x32xf32> to vector<256x32xbf16>
    %cst_76 = arith.constant dense<0.000000e+00> : vector<256x32xf32>
    %114 = tpu.matmul %110, %113, %cst_76 {dimension_numbers = #tpu.dot_dimension_numbers<[1], [0], [0], [1], [0, 0, 1, 1], [], []>} : vector<256x256xbf16>, vector<256x32xbf16>, vector<256x32xf32> -> vector<256x32xf32>
    %115 = vector.extract_strided_slice %39 {offsets = [2, 0], sizes = [1, 32], strides = [1, 1]} : vector<4x32xf32> to vector<1x32xf32>
    %116 = vector.broadcast %115 : vector<1x32xf32> to vector<256x32xf32>
    %117 = arith.mulf %114, %116 : vector<256x32xf32>
    %c2_77 = arith.constant 2 : index
    %c0_78 = arith.constant 0 : index
    %c0_79 = arith.constant 0 : index
    %118 = vector.load %arg1[%c2_77, %c0_78, %c0_79] : memref<4x256x32xf32, #tpu.memory_space<vmem>>, vector<1x256x32xf32>
    %119 = vector.shape_cast %118 : vector<1x256x32xf32> to vector<256x32xf32>
    %120 = arith.addf %117, %119 : vector<256x32xf32>
    %cst_80 = arith.constant dense<0.000000e+00> : vector<256xf32>
    %121 = vector.multi_reduction <add>, %120, %cst_80 [1] : vector<256x32xf32> to vector<256xf32>
    %122 = vector.shape_cast %121 : vector<256xf32> to vector<256x1xf32>
    %cst_81 = arith.constant 3.200000e+01 : f32
    %123 = vector.broadcast %cst_81 : f32 to vector<256x1xf32>
    %124 = arith.divf %122, %123 : vector<256x1xf32>
    %125 = vector.broadcast %124 : vector<256x1xf32> to vector<256x32xf32>
    %126 = arith.subf %120, %125 : vector<256x32xf32>
    %127 = arith.mulf %126, %126 : vector<256x32xf32>
    %cst_82 = arith.constant dense<0.000000e+00> : vector<256xf32>
    %128 = vector.multi_reduction <add>, %127, %cst_82 [1] : vector<256x32xf32> to vector<256xf32>
    %129 = vector.shape_cast %128 : vector<256xf32> to vector<256x1xf32>
    %cst_83 = arith.constant 3.200000e+01 : f32
    %130 = vector.broadcast %cst_83 : f32 to vector<256x1xf32>
    %131 = arith.divf %129, %130 : vector<256x1xf32>
    %cst_84 = arith.constant 9.99999974E-6 : f32
    %132 = vector.broadcast %cst_84 : f32 to vector<256x1xf32>
    %133 = arith.addf %131, %132 : vector<256x1xf32>
    %134 = math.rsqrt %133 : vector<256x1xf32>
    %135 = vector.broadcast %134 : vector<256x1xf32> to vector<256x32xf32>
    %136 = arith.mulf %126, %135 : vector<256x32xf32>
    %137 = vector.broadcast %40 : vector<1x32xf32> to vector<256x32xf32>
    %138 = arith.mulf %136, %137 : vector<256x32xf32>
    %139 = vector.broadcast %41 : vector<1x32xf32> to vector<256x32xf32>
    %140 = arith.addf %138, %139 : vector<256x32xf32>
    %c2_85 = arith.constant 2 : index
    %c0_86 = arith.constant 0 : index
    %c0_87 = arith.constant 0 : index
    %141 = vector.load %arg7[%c2_85, %c0_86, %c0_87] : memref<4x256x32xf32, #tpu.memory_space<vmem>>, vector<1x256x32xf32>
    %142 = vector.shape_cast %141 : vector<1x256x32xf32> to vector<256x32xf32>
    %143 = vector.shape_cast %140 : vector<256x32xf32> to vector<1x256x32xf32>
    tpu.vector_store %arg7[%c2_85, %c0_86, %c0_87], %143 {strides = array<i32>} : memref<4x256x32xf32, #tpu.memory_space<vmem>>, vector<1x256x32xf32>,
    %c0_88 = arith.constant 0 : index
    %c0_89 = arith.constant 0 : index
    %144 = vector.load %arg2[%c0_88, %c0_89] : memref<256x256xbf16, #tpu.memory_space<vmem>>, vector<256x256xbf16>
    %c3_90 = arith.constant 3 : index
    %c0_91 = arith.constant 0 : index
    %c0_92 = arith.constant 0 : index
    %145 = vector.load %arg1[%c3_90, %c0_91, %c0_92] : memref<4x256x32xf32, #tpu.memory_space<vmem>>, vector<1x256x32xf32>
    %146 = vector.shape_cast %145 : vector<1x256x32xf32> to vector<256x32xf32>
    %147 = arith.truncf %146 : vector<256x32xf32> to vector<256x32xbf16>
    %cst_93 = arith.constant dense<0.000000e+00> : vector<256x32xf32>
    %148 = tpu.matmul %144, %147, %cst_93 {dimension_numbers = #tpu.dot_dimension_numbers<[1], [0], [0], [1], [0, 0, 1, 1], [], []>} : vector<256x256xbf16>, vector<256x32xbf16>, vector<256x32xf32> -> vector<256x32xf32>
    %149 = vector.extract_strided_slice %39 {offsets = [3, 0], sizes = [1, 32], strides = [1, 1]} : vector<4x32xf32> to vector<1x32xf32>
    %150 = vector.broadcast %149 : vector<1x32xf32> to vector<256x32xf32>
    %151 = arith.mulf %148, %150 : vector<256x32xf32>
    %c3_94 = arith.constant 3 : index
    %c0_95 = arith.constant 0 : index
    %c0_96 = arith.constant 0 : index
    %152 = vector.load %arg1[%c3_94, %c0_95, %c0_96] : memref<4x256x32xf32, #tpu.memory_space<vmem>>, vector<1x256x32xf32>
    %153 = vector.shape_cast %152 : vector<1x256x32xf32> to vector<256x32xf32>
    %154 = arith.addf %151, %153 : vector<256x32xf32>
    %cst_97 = arith.constant dense<0.000000e+00> : vector<256xf32>
    %155 = vector.multi_reduction <add>, %154, %cst_97 [1] : vector<256x32xf32> to vector<256xf32>
    %156 = vector.shape_cast %155 : vector<256xf32> to vector<256x1xf32>
    %cst_98 = arith.constant 3.200000e+01 : f32
    %157 = vector.broadcast %cst_98 : f32 to vector<256x1xf32>
    %158 = arith.divf %156, %157 : vector<256x1xf32>
    %159 = vector.broadcast %158 : vector<256x1xf32> to vector<256x32xf32>
    %160 = arith.subf %154, %159 : vector<256x32xf32>
    %161 = arith.mulf %160, %160 : vector<256x32xf32>
    %cst_99 = arith.constant dense<0.000000e+00> : vector<256xf32>
    %162 = vector.multi_reduction <add>, %161, %cst_99 [1] : vector<256x32xf32> to vector<256xf32>
    %163 = vector.shape_cast %162 : vector<256xf32> to vector<256x1xf32>
    %cst_100 = arith.constant 3.200000e+01 : f32
    %164 = vector.broadcast %cst_100 : f32 to vector<256x1xf32>
    %165 = arith.divf %163, %164 : vector<256x1xf32>
    %cst_101 = arith.constant 9.99999974E-6 : f32
    %166 = vector.broadcast %cst_101 : f32 to vector<256x1xf32>
    %167 = arith.addf %165, %166 : vector<256x1xf32>
    %168 = math.rsqrt %167 : vector<256x1xf32>
    %169 = vector.broadcast %168 : vector<256x1xf32> to vector<256x32xf32>
    %170 = arith.mulf %160, %169 : vector<256x32xf32>
    %171 = vector.broadcast %40 : vector<1x32xf32> to vector<256x32xf32>
    %172 = arith.mulf %170, %171 : vector<256x32xf32>
    %173 = vector.broadcast %41 : vector<1x32xf32> to vector<256x32xf32>
    %174 = arith.addf %172, %173 : vector<256x32xf32>
    %c3_102 = arith.constant 3 : index
    %c0_103 = arith.constant 0 : index
    %c0_104 = arith.constant 0 : index
    %175 = vector.load %arg7[%c3_102, %c0_103, %c0_104] : memref<4x256x32xf32, #tpu.memory_space<vmem>>, vector<1x256x32xf32>
    %176 = vector.shape_cast %175 : vector<1x256x32xf32> to vector<256x32xf32>
    %177 = vector.shape_cast %174 : vector<256x32xf32> to vector<1x256x32xf32>
    tpu.vector_store %arg7[%c3_102, %c0_103, %c0_104], %177 {strides = array<i32>} : memref<4x256x32xf32, #tpu.memory_space<vmem>>, vector<1x256x32xf32>,
    return
  }
  func.func @transform_0(%arg0: i32) -> (i32, i32, i32) {
    %c0_i32 = arith.constant 0 : i32
    %c0_i32_0 = arith.constant 0 : i32
    %c0_i32_1 = arith.constant 0 : i32
    return %arg0, %c0_i32, %c0_i32_0 : i32, i32, i32
  }
  func.func @transform_1(%arg0: i32) -> (i32, i32) {
    %c0_i32 = arith.constant 0 : i32
    %c0_i32_0 = arith.constant 0 : i32
    %c0_i32_1 = arith.constant 0 : i32
    return %c0_i32, %c0_i32_0 : i32, i32
  }
  func.func @transform_2(%arg0: i32) -> (i32, i32) {
    %c0_i32 = arith.constant 0 : i32
    %c0_i32_0 = arith.constant 0 : i32
    %c0_i32_1 = arith.constant 0 : i32
    return %c0_i32, %c0_i32_0 : i32, i32
  }
  func.func @transform_3(%arg0: i32) -> (i32, i32) {
    %c0_i32 = arith.constant 0 : i32
    %c0_i32_0 = arith.constant 0 : i32
    %c0_i32_1 = arith.constant 0 : i32
    return %c0_i32, %c0_i32_0 : i32, i32
  }
  func.func @transform_4(%arg0: i32) -> (i32, i32) {
    %c0_i32 = arith.constant 0 : i32
    %c0_i32_0 = arith.constant 0 : i32
    %c0_i32_1 = arith.constant 0 : i32
    return %c0_i32, %c0_i32_0 : i32, i32
  }
  func.func @transform_5(%arg0: i32) -> (i32, i32) {
    %c0_i32 = arith.constant 0 : i32
    %c0_i32_0 = arith.constant 0 : i32
    %c0_i32_1 = arith.constant 0 : i32
    return %c0_i32, %c0_i32_0 : i32, i32
  }
  func.func @transform_6(%arg0: i32) -> (i32, i32, i32) {
    %c0_i32 = arith.constant 0 : i32
    %c0_i32_0 = arith.constant 0 : i32
    %c0_i32_1 = arith.constant 0 : i32
    return %arg0, %c0_i32, %c0_i32_0 : i32, i32, i32
  }
}

</mosaic_0001>

<llo_original>
// kernel: tpu_custom_call.1
$region0: #{tpu_custom_call.1}
  #allocation0 [shape = 'u32[]', space=smem, size = 0x4, offset = 0x4, fixed_abs, tag = 'smem constant byte address 0x4 - core index']
  #allocation1 [shape = 'u32[144,128]{1,0:T(1,128)}', space=vmem, size = 0x12000, scoped, tag = 'internal scratch']
  #allocation2 [shape = 'f32[4,32]{1,0:T(4,128)}', space=vmem, size = 0x800, scoped, tag = 'scratch operand']
  %s0 = inlined_call_operand.vmem [shape: f32[8,256,32], index: 0, kind: input, shape index: {}]
  %s1 = inlined_call_operand.vmem [shape: bf16[256,256], index: 1, kind: input, shape index: {}]
  %s2 = inlined_call_operand.vmem [shape: f32[32,8], index: 2, kind: input, shape index: {}]
  %s3 = inlined_call_operand.vmem [shape: f32[8,32], index: 3, kind: input, shape index: {}]
  %s4 = inlined_call_operand.vmem [shape: f32[1,32], index: 4, kind: input, shape index: {}]
  %s5 = inlined_call_operand.vmem [shape: f32[1,32], index: 5, kind: input, shape index: {}]
  %s6 = inlined_call_operand.vmem [shape: f32[8,256,32], index: 6, kind: output, shape index: {}]
  %s7 = sld [smem:[#allocation0]]
  $region57: #{tpu_custom_call.1} parent=0
    _
  %s9 = ssub.s32 1, %s7
  %s10 = scalar_select 0, %s9, %s7
  loop: start=0, step=1, limit=4
  $region2: #{tpu_custom_call.1} parent=0 // loop_pre_header
    _
  $region3: #{tpu_custom_call.1} parent=0 // loop_header
    %s12 = sphi 0, %s16
    %p13 = scmp.ge.s32.totalorder %s12, 4
    %s22 = sphi 0, %s24
    %s25 = sphi 0, %s22
    %s26 = sphi 0, %s25
    %s42 = sphi 0, %s26
    %s46 = sphi 0, %s46
    %s48 = sphi 0, %s46
    %s49 = sphi 0, %s48
    %s63 = sphi 0, %s49
    %s67 = sphi 0, %s67
    %s69 = sphi 0, %s67
    %s70 = sphi 0, %s69
    %s84 = sphi 0, %s70
    %s88 = sphi 0, %s88
    %s90 = sphi 0, %s88
    %s91 = sphi 0, %s90
    %s105 = sphi 0, %s91
    %s109 = sphi 0, %s109
    %s111 = sphi 0, %s109
    %s112 = sphi 0, %s111
    %s126 = sphi 0, %s112
    %s130 = sphi 0, %s130
    %s132 = sphi 0, %s130
    %s133 = sphi 0, %s132
    %s147 = sphi 0, %s133
    %s153 = sphi 0, %s155
    %s156 = sphi 0, %s153
    %s157 = sphi 0, %s156
    %s173 = sphi 0, %s157
  $region4: #{tpu_custom_call.1} parent=0 // loop_header_branch
    %15 = sbr.rel (%p13) target = $region8
  $region5: #{tpu_custom_call.1} parent=0 // loop_body
    %s17 = ssub.s32 %s12, 1
    %s18 = ssub.s32 %s12, 2
    %s19 = sadd.s32 %s12, 1
    %s20 = ssub.s32 %s12, %s19
    %p21 = scmp.eq.s32.totalorder %s20, 0
    %s23 = sadd.s32 %s22, 1
    %s24 = scalar_select %p21, %s22, %s23
    %p27 = pneg %p21
    %p28 = scmp.eq.s32.totalorder %s12, 1
    %p29 = por %p27, %p28
    %p30 = scmp.ne.s32.totalorder %s22, %s25
    %p31 = scmp.eq.s32.totalorder %s12, 0
    %p32 = por %p30, %p31
    %p33 = scmp.ne.s32.totalorder %s22, %s25
    %p34 = scmp.eq.s32.totalorder %s17, 1
    %p35 = por %p33, %p34
    %p36 = scmp.ne.s32.totalorder %s25, %s26
    %p37 = scmp.eq.s32.totalorder %s17, 0
    %p38 = por %p36, %p37
    %p39 = scmp.ne.s32.totalorder %s25, %s26
    %p40 = scmp.eq.s32.totalorder %s18, 1
    %p41 = por %p39, %p40
    %p43 = scmp.ne.s32.totalorder %s26, %s42
    %p44 = scmp.eq.s32.totalorder %s18, 0
    %p45 = por %p43, %p44
    %s47 = sadd.s32 %s46, 1
    %p50 = scmp.eq.s32.totalorder %s12, 1
    %p51 = scmp.ne.s32.totalorder %s46, %s48
    %p52 = scmp.eq.s32.totalorder %s12, 0
    %p53 = por %p51, %p52
    %p54 = scmp.ne.s32.totalorder %s46, %s48
    %p55 = scmp.eq.s32.totalorder %s17, 1
    %p56 = por %p54, %p55
    %p57 = scmp.ne.s32.totalorder %s48, %s49
    %p58 = scmp.eq.s32.totalorder %s17, 0
    %p59 = por %p57, %p58
    %p60 = scmp.ne.s32.totalorder %s48, %s49
    %p61 = scmp.eq.s32.totalorder %s18, 1
    %p62 = por %p60, %p61
    %p64 = scmp.ne.s32.totalorder %s49, %s63
    %p65 = scmp.eq.s32.totalorder %s18, 0
    %p66 = por %p64, %p65
    %s68 = sadd.s32 %s67, 1
    %p71 = scmp.eq.s32.totalorder %s12, 1
    %p72 = scmp.ne.s32.totalorder %s67, %s69
    %p73 = scmp.eq.s32.totalorder %s12, 0
    %p74 = por %p72, %p73
    %p75 = scmp.ne.s32.totalorder %s67, %s69
    %p76 = scmp.eq.s32.totalorder %s17, 1
    %p77 = por %p75, %p76
    %p78 = scmp.ne.s32.totalorder %s69, %s70
    %p79 = scmp.eq.s32.totalorder %s17, 0
    %p80 = por %p78, %p79
    %p81 = scmp.ne.s32.totalorder %s69, %s70
    %p82 = scmp.eq.s32.totalorder %s18, 1
    %p83 = por %p81, %p82
    %p85 = scmp.ne.s32.totalorder %s70, %s84
    %p86 = scmp.eq.s32.totalorder %s18, 0
    %p87 = por %p85, %p86
    %s89 = sadd.s32 %s88, 1
    %p92 = scmp.eq.s32.totalorder %s12, 1
    %p93 = scmp.ne.s32.totalorder %s88, %s90
    %p94 = scmp.eq.s32.totalorder %s12, 0
    %p95 = por %p93, %p94
    %p96 = scmp.ne.s32.totalorder %s88, %s90
    %p97 = scmp.eq.s32.totalorder %s17, 1
    %p98 = por %p96, %p97
    %p99 = scmp.ne.s32.totalorder %s90, %s91
    %p100 = scmp.eq.s32.totalorder %s17, 0
    %p101 = por %p99, %p100
    %p102 = scmp.ne.s32.totalorder %s90, %s91
    %p103 = scmp.eq.s32.totalorder %s18, 1
    %p104 = por %p102, %p103
    %p106 = scmp.ne.s32.totalorder %s91, %s105
    %p107 = scmp.eq.s32.totalorder %s18, 0
    %p108 = por %p106, %p107
    %s110 = sadd.s32 %s109, 1
    %p113 = scmp.eq.s32.totalorder %s12, 1
    %p114 = scmp.ne.s32.totalorder %s109, %s111
    %p115 = scmp.eq.s32.totalorder %s12, 0
    %p116 = por %p114, %p115
    %p117 = scmp.ne.s32.totalorder %s109, %s111
    %p118 = scmp.eq.s32.totalorder %s17, 1
    %p119 = por %p117, %p118
    %p120 = scmp.ne.s32.totalorder %s111, %s112
    %p121 = scmp.eq.s32.totalorder %s17, 0
    %p122 = por %p120, %p121
    %p123 = scmp.ne.s32.totalorder %s111, %s112
    %p124 = scmp.eq.s32.totalorder %s18, 1
    %p125 = por %p123, %p124
    %p127 = scmp.ne.s32.totalorder %s112, %s126
    %p128 = scmp.eq.s32.totalorder %s18, 0
    %p129 = por %p127, %p128
    %s131 = sadd.s32 %s130, 1
    %p134 = scmp.eq.s32.totalorder %s12, 1
    %p135 = scmp.ne.s32.totalorder %s130, %s132
    %p136 = scmp.eq.s32.totalorder %s12, 0
    %p137 = por %p135, %p136
    %p138 = scmp.ne.s32.totalorder %s130, %s132
    %p139 = scmp.eq.s32.totalorder %s17, 1
    %p140 = por %p138, %p139
    %p141 = scmp.ne.s32.totalorder %s132, %s133
    %p142 = scmp.eq.s32.totalorder %s17, 0
    %p143 = por %p141, %p142
    %p144 = scmp.ne.s32.totalorder %s132, %s133
    %p145 = scmp.eq.s32.totalorder %s18, 1
    %p146 = por %p144, %p145
    %p148 = scmp.ne.s32.totalorder %s133, %s147
    %p149 = scmp.eq.s32.totalorder %s18, 0
    %p150 = por %p148, %p149
    %s151 = ssub.s32 %s12, %s19
    %p152 = scmp.eq.s32.totalorder %s151, 0
    %s154 = sadd.s32 %s153, 1
    %s155 = scalar_select %p152, %s153, %s154
    %p158 = pneg %p152
    %p159 = scmp.eq.s32.totalorder %s12, 1
    %p160 = por %p158, %p159
    %p161 = scmp.ne.s32.totalorder %s153, %s156
    %p162 = scmp.eq.s32.totalorder %s12, 0
    %p163 = por %p161, %p162
    %p164 = scmp.ne.s32.totalorder %s153, %s156
    %p165 = scmp.eq.s32.totalorder %s17, 1
    %p166 = por %p164, %p165
    %p167 = scmp.ne.s32.totalorder %s156, %s157
    %p168 = scmp.eq.s32.totalorder %s17, 0
    %p169 = por %p167, %p168
    %p170 = scmp.ne.s32.totalorder %s156, %s157
    %p171 = scmp.eq.s32.totalorder %s18, 1
    %p172 = por %p170, %p171
    %p174 = scmp.ne.s32.totalorder %s157, %s173
    %p175 = scmp.eq.s32.totalorder %s18, 0
    %p176 = por %p174, %p175
    %p177 = scmp.le.s32.totalorder 1, %s12
    %p178 = scmp.lt.s32.totalorder %s12, 3
    %p179 = pnand %p177, %p178
    %p180 = pneg %p179
    // Predicated region
    $region9: #{tpu_custom_call.1} parent=5 // pred_check
      _
    $region10: #{tpu_custom_call.1} parent=5 // pred_check_branch
      %182 = sbr.rel (%p179) target = $region12
    $region11: #{tpu_custom_call.1} parent=5 // pred_region
      %s183 = ssub.s32 %s12, 1
      // Predicated region
      $region13: #{tpu_custom_call.1} parent=11 // pred_check
        %p184 = pneg %p59
      $region14: #{tpu_custom_call.1} parent=11 // pred_check_branch
        %186 = sbr.rel (%p184) target = $region16
      $region15: #{tpu_custom_call.1} parent=11 // pred_region
        _
      $region16: #{tpu_custom_call.1} parent=11 // pred_fallthru
        _
      // Predicated region
      $region17: #{tpu_custom_call.1} parent=11 // pred_check
        %p187 = pneg %p80
      $region18: #{tpu_custom_call.1} parent=11 // pred_check_branch
        %189 = sbr.rel (%p187) target = $region20
      $region19: #{tpu_custom_call.1} parent=11 // pred_region
        _
      $region20: #{tpu_custom_call.1} parent=11 // pred_fallthru
        _
      // Predicated region
      $region21: #{tpu_custom_call.1} parent=11 // pred_check
        %p190 = pneg %p101
      $region22: #{tpu_custom_call.1} parent=11 // pred_check_branch
        %192 = sbr.rel (%p190) target = $region24
      $region23: #{tpu_custom_call.1} parent=11 // pred_region
        _
      $region24: #{tpu_custom_call.1} parent=11 // pred_fallthru
        _
      // Predicated region
      $region25: #{tpu_custom_call.1} parent=11 // pred_check
        %p193 = pneg %p122
      $region26: #{tpu_custom_call.1} parent=11 // pred_check_branch
        %195 = sbr.rel (%p193) target = $region28
      $region27: #{tpu_custom_call.1} parent=11 // pred_region
        _
      $region28: #{tpu_custom_call.1} parent=11 // pred_fallthru
        _
      // Predicated region
      $region29: #{tpu_custom_call.1} parent=11 // pred_check
        %p196 = pneg %p143
      $region30: #{tpu_custom_call.1} parent=11 // pred_check_branch
        %198 = sbr.rel (%p196) target = $region32
      $region31: #{tpu_custom_call.1} parent=11 // pred_region
        _
      $region32: #{tpu_custom_call.1} parent=11 // pred_fallthru
        _
    $region12: #{tpu_custom_call.1} parent=5 // pred_fallthru
      _
    %p199 = scmp.lt.s32.totalorder %s12, 2
    // Predicated region
    $region33: #{tpu_custom_call.1} parent=5 // pred_check
      %p200 = pneg %p199
    $region34: #{tpu_custom_call.1} parent=5 // pred_check_branch
      %202 = sbr.rel (%p200) target = $region36
    $region35: #{tpu_custom_call.1} parent=5 // pred_region
      // Predicated region
      $region37: #{tpu_custom_call.1} parent=35 // pred_check
        %p203 = pneg %p32
      $region38: #{tpu_custom_call.1} parent=35 // pred_check_branch
        %205 = sbr.rel (%p203) target = $region40
      $region39: #{tpu_custom_call.1} parent=35 // pred_region
        %s206 = smul.u32 4, %s12
        %p207 = scmp.lt.s32.totalorder %s206, 7
        %s208 = scalar_select %p207, %s206, 7
        %s209 = smul.addr %s208, 32
        %s210 = smul.addr %s209, 8
        %s211 = scalar_lea.vmem %s0, %s210
        %s212 = smul.u32 4, %s12
      $region40: #{tpu_custom_call.1} parent=35 // pred_fallthru
        _
    $region36: #{tpu_custom_call.1} parent=5 // pred_fallthru
      _
    %p213 = scmp.le.s32.totalorder 1, %s12
    %p214 = scmp.lt.s32.totalorder %s12, 3
    %p215 = pnand %p213, %p214
    %p216 = pneg %p215
    // Predicated region
    $region41: #{tpu_custom_call.1} parent=5 // pred_check
      _
    $region42: #{tpu_custom_call.1} parent=5 // pred_check_branch
      %218 = sbr.rel (%p215) target = $region44
    $region43: #{tpu_custom_call.1} parent=5 // pred_region
      %s219 = ssub.s32 %s12, 1
      %s220 = smul.u32 4, %s17
      %p221 = scmp.lt.s32.totalorder %s220, 7
      %s222 = scalar_select %p221, %s220, 7
      %s223 = smul.addr %s222, 32
      %s224 = smul.addr %s223, 8
      %s225 = scalar_lea.vmem %s0, %s224
      %p226 = pneg %p38
      %p227 = pneg %p35
      %p228 = pneg %p59
      %p229 = pneg %p56
      %p230 = pneg %p80
      %p231 = pneg %p77
      %p232 = pneg %p101
      %p233 = pneg %p98
      %p234 = pneg %p122
      %p235 = pneg %p119
      %p236 = pneg %p143
      %p237 = pneg %p140
      %p238 = pneg %p169
      %p239 = pneg %p166
      %s240 = smul.u32 4, %s17
      %p241 = scmp.lt.s32.totalorder %s240, 7
      %s242 = scalar_select %p241, %s240, 7
      %s243 = smul.addr %s242, 32
      %s244 = smul.addr %s243, 8
      %s245 = scalar_lea.vmem %s6, %s244
      %s246 = smul.u32 4, %s17
      %p247 = scmp.lt.s32.totalorder %s246, 7
      %s248 = scalar_select %p247, %s246, 7
      %s249 = smul.addr %s248, 32
      %s250 = smul.addr %s249, 8
      %s251 = scalar_lea.vmem %s0, %s250
      %s252 = smul.u32 4, %s17
      %s253 = smul.u32 4, %s17
      %p254 = scmp.lt.s32.totalorder %s253, 7
      %s255 = scalar_select %p254, %s253, 7
      %s256 = smul.addr %s255, 32
      %s257 = smul.addr %s256, 8
      %s258 = scalar_lea.vmem %s6, %s257
      %s259 = smul.u32 4, %s17
      %v261 = vld [vmem:[%s251] sm:$0xff]
      %v262 = vld [vmem:[%s251 + $0x8] sm:$0xff]
      %v263 = vld [vmem:[%s251 + $0x10] sm:$0xff]
      %v264 = vld [vmem:[%s251 + $0x18] sm:$0xff]
      %v265 = vld [vmem:[%s251 + $0x20] sm:$0xff]
      %v266 = vld [vmem:[%s251 + $0x28] sm:$0xff]
      %v267 = vld [vmem:[%s251 + $0x30] sm:$0xff]
      %v268 = vld [vmem:[%s251 + $0x38] sm:$0xff]
      %v269 = vld [vmem:[%s251 + $0x40] sm:$0xff]
      %v270 = vld [vmem:[%s251 + $0x48] sm:$0xff]
      %v271 = vld [vmem:[%s251 + $0x50] sm:$0xff]
      %v272 = vld [vmem:[%s251 + $0x58] sm:$0xff]
      %v273 = vld [vmem:[%s251 + $0x60] sm:$0xff]
      %v274 = vld [vmem:[%s251 + $0x68] sm:$0xff]
      %v275 = vld [vmem:[%s251 + $0x70] sm:$0xff]
      %v276 = vld [vmem:[%s251 + $0x78] sm:$0xff]
      %v277 = vld [vmem:[%s251 + $0x80] sm:$0xff]
      %v278 = vld [vmem:[%s251 + $0x88] sm:$0xff]
      %v279 = vld [vmem:[%s251 + $0x90] sm:$0xff]
      %v280 = vld [vmem:[%s251 + $0x98] sm:$0xff]
      %v281 = vld [vmem:[%s251 + $0xa0] sm:$0xff]
      %v282 = vld [vmem:[%s251 + $0xa8] sm:$0xff]
      %v283 = vld [vmem:[%s251 + $0xb0] sm:$0xff]
      %v284 = vld [vmem:[%s251 + $0xb8] sm:$0xff]
      %v285 = vld [vmem:[%s251 + $0xc0] sm:$0xff]
      %v286 = vld [vmem:[%s251 + $0xc8] sm:$0xff]
      %v287 = vld [vmem:[%s251 + $0xd0] sm:$0xff]
      %v288 = vld [vmem:[%s251 + $0xd8] sm:$0xff]
      %v289 = vld [vmem:[%s251 + $0xe0] sm:$0xff]
      %v290 = vld [vmem:[%s251 + $0xe8] sm:$0xff]
      %v291 = vld [vmem:[%s251 + $0xf0] sm:$0xff]
      %v292 = vld [vmem:[%s251 + $0xf8] sm:$0xff]
      %vm293 = vcmask 261120
      %v294 = vsel %vm293, %v261, 0.0
      %v295 = vsel %vm293, %v262, 0.0
      %v296 = vadd.f32 %v294, %v295
      %v297 = vsel %vm293, %v263, 0.0
      %v298 = vadd.f32 %v296, %v297
      %v299 = vsel %vm293, %v264, 0.0
      %v300 = vadd.f32 %v298, %v299
      %v301 = vsel %vm293, %v265, 0.0
      %v302 = vadd.f32 %v300, %v301
      %v303 = vsel %vm293, %v266, 0.0
      %v304 = vadd.f32 %v302, %v303
      %v305 = vsel %vm293, %v267, 0.0
      %v306 = vadd.f32 %v304, %v305
      %v307 = vsel %vm293, %v268, 0.0
      %v308 = vadd.f32 %v306, %v307
      %v309 = vsel %vm293, %v269, 0.0
      %v310 = vadd.f32 %v308, %v309
      %v311 = vsel %vm293, %v270, 0.0
      %v312 = vadd.f32 %v310, %v311
      %v313 = vsel %vm293, %v271, 0.0
      %v314 = vadd.f32 %v312, %v313
      %v315 = vsel %vm293, %v272, 0.0
      %v316 = vadd.f32 %v314, %v315
      %v317 = vsel %vm293, %v273, 0.0
      %v318 = vadd.f32 %v316, %v317
      %v319 = vsel %vm293, %v274, 0.0
      %v320 = vadd.f32 %v318, %v319
      %v321 = vsel %vm293, %v275, 0.0
      %v322 = vadd.f32 %v320, %v321
      %v323 = vsel %vm293, %v276, 0.0
      %v324 = vadd.f32 %v322, %v323
      %v325 = vsel %vm293, %v277, 0.0
      %v326 = vadd.f32 %v324, %v325
      %v327 = vsel %vm293, %v278, 0.0
      %v328 = vadd.f32 %v326, %v327
      %v329 = vsel %vm293, %v279, 0.0
      %v330 = vadd.f32 %v328, %v329
      %v331 = vsel %vm293, %v280, 0.0
      %v332 = vadd.f32 %v330, %v331
      %v333 = vsel %vm293, %v281, 0.0
      %v334 = vadd.f32 %v332, %v333
      %v335 = vsel %vm293, %v282, 0.0
      %v336 = vadd.f32 %v334, %v335
      %v337 = vsel %vm293, %v283, 0.0
      %v338 = vadd.f32 %v336, %v337
      %v339 = vsel %vm293, %v284, 0.0
      %v340 = vadd.f32 %v338, %v339
      %v341 = vsel %vm293, %v285, 0.0
      %v342 = vadd.f32 %v340, %v341
      %v343 = vsel %vm293, %v286, 0.0
      %v344 = vadd.f32 %v342, %v343
      %v345 = vsel %vm293, %v287, 0.0
      %v346 = vadd.f32 %v344, %v345
      %v347 = vsel %vm293, %v288, 0.0
      %v348 = vadd.f32 %v346, %v347
      %v349 = vsel %vm293, %v289, 0.0
      %v350 = vadd.f32 %v348, %v349
      %v351 = vsel %vm293, %v290, 0.0
      %v352 = vadd.f32 %v350, %v351
      %v353 = vsel %vm293, %v291, 0.0
      %v354 = vadd.f32 %v352, %v353
      %v355 = vsel %vm293, %v292, 0.0
      %v356 = vadd.f32 %v354, %v355
      %v357 = vrot.slane %v356, 4
      %v358 = vadd.f32 %v356, %v357
      %v359 = vrot.slane %v358, 2
      %v360 = vadd.f32 %v358, %v359
      %v361 = vrot.slane %v360, 1
      %v362 = vadd.f32 %v360, %v361
      %v363 = vmul.f32 %v362, 0.00390625
      %vm364 = vcmask 253952
      %365 = vst.msk [vmem:[#allocation2] sm:$0x1] %vm364, %v363
      %s366 = scalar_lea.vmem %s251, 256
      %v367 = vld [vmem:[%s366] sm:$0xff]
      %v368 = vld [vmem:[%s366 + $0x8] sm:$0xff]
      %v369 = vld [vmem:[%s366 + $0x10] sm:$0xff]
      %v370 = vld [vmem:[%s366 + $0x18] sm:$0xff]
      %v371 = vld [vmem:[%s366 + $0x20] sm:$0xff]
      %v372 = vld [vmem:[%s366 + $0x28] sm:$0xff]
      %v373 = vld [vmem:[%s366 + $0x30] sm:$0xff]
      %v374 = vld [vmem:[%s366 + $0x38] sm:$0xff]
      %v375 = vld [vmem:[%s366 + $0x40] sm:$0xff]
      %v376 = vld [vmem:[%s366 + $0x48] sm:$0xff]
      %v377 = vld [vmem:[%s366 + $0x50] sm:$0xff]
      %v378 = vld [vmem:[%s366 + $0x58] sm:$0xff]
      %v379 = vld [vmem:[%s366 + $0x60] sm:$0xff]
      %v380 = vld [vmem:[%s366 + $0x68] sm:$0xff]
      %v381 = vld [vmem:[%s366 + $0x70] sm:$0xff]
      %v382 = vld [vmem:[%s366 + $0x78] sm:$0xff]
      %v383 = vld [vmem:[%s366 + $0x80] sm:$0xff]
      %v384 = vld [vmem:[%s366 + $0x88] sm:$0xff]
      %v385 = vld [vmem:[%s366 + $0x90] sm:$0xff]
      %v386 = vld [vmem:[%s366 + $0x98] sm:$0xff]
      %v387 = vld [vmem:[%s366 + $0xa0] sm:$0xff]
      %v388 = vld [vmem:[%s366 + $0xa8] sm:$0xff]
      %v389 = vld [vmem:[%s366 + $0xb0] sm:$0xff]
      %v390 = vld [vmem:[%s366 + $0xb8] sm:$0xff]
      %v391 = vld [vmem:[%s366 + $0xc0] sm:$0xff]
      %v392 = vld [vmem:[%s366 + $0xc8] sm:$0xff]
      %v393 = vld [vmem:[%s366 + $0xd0] sm:$0xff]
      %v394 = vld [vmem:[%s366 + $0xd8] sm:$0xff]
      %v395 = vld [vmem:[%s366 + $0xe0] sm:$0xff]
      %v396 = vld [vmem:[%s366 + $0xe8] sm:$0xff]
      %v397 = vld [vmem:[%s366 + $0xf0] sm:$0xff]
      %v398 = vld [vmem:[%s366 + $0xf8] sm:$0xff]
      %v399 = vsel %vm293, %v367, 0.0
      %v400 = vsel %vm293, %v368, 0.0
      %v401 = vadd.f32 %v399, %v400
      %v402 = vsel %vm293, %v369, 0.0
      %v403 = vadd.f32 %v401, %v402
      %v404 = vsel %vm293, %v370, 0.0
      %v405 = vadd.f32 %v403, %v404
      %v406 = vsel %vm293, %v371, 0.0
      %v407 = vadd.f32 %v405, %v406
      %v408 = vsel %vm293, %v372, 0.0
      %v409 = vadd.f32 %v407, %v408
      %v410 = vsel %vm293, %v373, 0.0
      %v411 = vadd.f32 %v409, %v410
      %v412 = vsel %vm293, %v374, 0.0
      %v413 = vadd.f32 %v411, %v412
      %v414 = vsel %vm293, %v375, 0.0
      %v415 = vadd.f32 %v413, %v414
      %v416 = vsel %vm293, %v376, 0.0
      %v417 = vadd.f32 %v415, %v416
      %v418 = vsel %vm293, %v377, 0.0
      %v419 = vadd.f32 %v417, %v418
      %v420 = vsel %vm293, %v378, 0.0
      %v421 = vadd.f32 %v419, %v420
      %v422 = vsel %vm293, %v379, 0.0
      %v423 = vadd.f32 %v421, %v422
      %v424 = vsel %vm293, %v380, 0.0
      %v425 = vadd.f32 %v423, %v424
      %v426 = vsel %vm293, %v381, 0.0
      %v427 = vadd.f32 %v425, %v426
      %v428 = vsel %vm293, %v382, 0.0
      %v429 = vadd.f32 %v427, %v428
      %v430 = vsel %vm293, %v383, 0.0
      %v431 = vadd.f32 %v429, %v430
      %v432 = vsel %vm293, %v384, 0.0
      %v433 = vadd.f32 %v431, %v432
      %v434 = vsel %vm293, %v385, 0.0
      %v435 = vadd.f32 %v433, %v434
      %v436 = vsel %vm293, %v386, 0.0
      %v437 = vadd.f32 %v435, %v436
      %v438 = vsel %vm293, %v387, 0.0
      %v439 = vadd.f32 %v437, %v438
      %v440 = vsel %vm293, %v388, 0.0
      %v441 = vadd.f32 %v439, %v440
      %v442 = vsel %vm293, %v389, 0.0
      %v443 = vadd.f32 %v441, %v442
      %v444 = vsel %vm293, %v390, 0.0
      %v445 = vadd.f32 %v443, %v444
      %v446 = vsel %vm293, %v391, 0.0
      %v447 = vadd.f32 %v445, %v446
      %v448 = vsel %vm293, %v392, 0.0
      %v449 = vadd.f32 %v447, %v448
      %v450 = vsel %vm293, %v393, 0.0
      %v451 = vadd.f32 %v449, %v450
      %v452 = vsel %vm293, %v394, 0.0
      %v453 = vadd.f32 %v451, %v452
      %v454 = vsel %vm293, %v395, 0.0
      %v455 = vadd.f32 %v453, %v454
      %v456 = vsel %vm293, %v396, 0.0
      %v457 = vadd.f32 %v455, %v456
      %v458 = vsel %vm293, %v397, 0.0
      %v459 = vadd.f32 %v457, %v458
      %v460 = vsel %vm293, %v398, 0.0
      %v461 = vadd.f32 %v459, %v460
      %v462 = vrot.slane %v461, 4
      %v463 = vadd.f32 %v461, %v462
      %v464 = vrot.slane %v463, 2
      %v465 = vadd.f32 %v463, %v464
      %v466 = vrot.slane %v465, 1
      %v467 = vadd.f32 %v465, %v466
      %v468 = vmul.f32 %v467, 0.00390625
      %469 = vst.msk [vmem:[#allocation2 + $0x1] sm:$0x1] %vm364, %v468
      %s470 = scalar_lea.vmem %s251, 512
      %v471 = vld [vmem:[%s470] sm:$0xff]
      %v472 = vld [vmem:[%s470 + $0x8] sm:$0xff]
      %v473 = vld [vmem:[%s470 + $0x10] sm:$0xff]
      %v474 = vld [vmem:[%s470 + $0x18] sm:$0xff]
      %v475 = vld [vmem:[%s470 + $0x20] sm:$0xff]
      %v476 = vld [vmem:[%s470 + $0x28] sm:$0xff]
      %v477 = vld [vmem:[%s470 + $0x30] sm:$0xff]
      %v478 = vld [vmem:[%s470 + $0x38] sm:$0xff]
      %v479 = vld [vmem:[%s470 + $0x40] sm:$0xff]
      %v480 = vld [vmem:[%s470 + $0x48] sm:$0xff]
      %v481 = vld [vmem:[%s470 + $0x50] sm:$0xff]
      %v482 = vld [vmem:[%s470 + $0x58] sm:$0xff]
      %v483 = vld [vmem:[%s470 + $0x60] sm:$0xff]
      %v484 = vld [vmem:[%s470 + $0x68] sm:$0xff]
      %v485 = vld [vmem:[%s470 + $0x70] sm:$0xff]
      %v486 = vld [vmem:[%s470 + $0x78] sm:$0xff]
      %v487 = vld [vmem:[%s470 + $0x80] sm:$0xff]
      %v488 = vld [vmem:[%s470 + $0x88] sm:$0xff]
      %v489 = vld [vmem:[%s470 + $0x90] sm:$0xff]
      %v490 = vld [vmem:[%s470 + $0x98] sm:$0xff]
      %v491 = vld [vmem:[%s470 + $0xa0] sm:$0xff]
      %v492 = vld [vmem:[%s470 + $0xa8] sm:$0xff]
      %v493 = vld [vmem:[%s470 + $0xb0] sm:$0xff]
      %v494 = vld [vmem:[%s470 + $0xb8] sm:$0xff]
      %v495 = vld [vmem:[%s470 + $0xc0] sm:$0xff]
      %v496 = vld [vmem:[%s470 + $0xc8] sm:$0xff]
      %v497 = vld [vmem:[%s470 + $0xd0] sm:$0xff]
      %v498 = vld [vmem:[%s470 + $0xd8] sm:$0xff]
      %v499 = vld [vmem:[%s470 + $0xe0] sm:$0xff]
      %v500 = vld [vmem:[%s470 + $0xe8] sm:$0xff]
      %v501 = vld [vmem:[%s470 + $0xf0] sm:$0xff]
      %v502 = vld [vmem:[%s470 + $0xf8] sm:$0xff]
      %v503 = vsel %vm293, %v471, 0.0
      %v504 = vsel %vm293, %v472, 0.0
      %v505 = vadd.f32 %v503, %v504
      %v506 = vsel %vm293, %v473, 0.0
      %v507 = vadd.f32 %v505, %v506
      %v508 = vsel %vm293, %v474, 0.0
      %v509 = vadd.f32 %v507, %v508
      %v510 = vsel %vm293, %v475, 0.0
      %v511 = vadd.f32 %v509, %v510
      %v512 = vsel %vm293, %v476, 0.0
      %v513 = vadd.f32 %v511, %v512
      %v514 = vsel %vm293, %v477, 0.0
      %v515 = vadd.f32 %v513, %v514
      %v516 = vsel %vm293, %v478, 0.0
      %v517 = vadd.f32 %v515, %v516
      %v518 = vsel %vm293, %v479, 0.0
      %v519 = vadd.f32 %v517, %v518
      %v520 = vsel %vm293, %v480, 0.0
      %v521 = vadd.f32 %v519, %v520
      %v522 = vsel %vm293, %v481, 0.0
      %v523 = vadd.f32 %v521, %v522
      %v524 = vsel %vm293, %v482, 0.0
      %v525 = vadd.f32 %v523, %v524
      %v526 = vsel %vm293, %v483, 0.0
      %v527 = vadd.f32 %v525, %v526
      %v528 = vsel %vm293, %v484, 0.0
      %v529 = vadd.f32 %v527, %v528
      %v530 = vsel %vm293, %v485, 0.0
      %v531 = vadd.f32 %v529, %v530
      %v532 = vsel %vm293, %v486, 0.0
      %v533 = vadd.f32 %v531, %v532
      %v534 = vsel %vm293, %v487, 0.0
      %v535 = vadd.f32 %v533, %v534
      %v536 = vsel %vm293, %v488, 0.0
      %v537 = vadd.f32 %v535, %v536
      %v538 = vsel %vm293, %v489, 0.0
      %v539 = vadd.f32 %v537, %v538
      %v540 = vsel %vm293, %v490, 0.0
      %v541 = vadd.f32 %v539, %v540
      %v542 = vsel %vm293, %v491, 0.0
      %v543 = vadd.f32 %v541, %v542
      %v544 = vsel %vm293, %v492, 0.0
      %v545 = vadd.f32 %v543, %v544
      %v546 = vsel %vm293, %v493, 0.0
      %v547 = vadd.f32 %v545, %v546
      %v548 = vsel %vm293, %v494, 0.0
      %v549 = vadd.f32 %v547, %v548
      %v550 = vsel %vm293, %v495, 0.0
      %v551 = vadd.f32 %v549, %v550
      %v552 = vsel %vm293, %v496, 0.0
      %v553 = vadd.f32 %v551, %v552
      %v554 = vsel %vm293, %v497, 0.0
      %v555 = vadd.f32 %v553, %v554
      %v556 = vsel %vm293, %v498, 0.0
      %v557 = vadd.f32 %v555, %v556
      %v558 = vsel %vm293, %v499, 0.0
      %v559 = vadd.f32 %v557, %v558
      %v560 = vsel %vm293, %v500, 0.0
      %v561 = vadd.f32 %v559, %v560
      %v562 = vsel %vm293, %v501, 0.0
      %v563 = vadd.f32 %v561, %v562
      %v564 = vsel %vm293, %v502, 0.0
      %v565 = vadd.f32 %v563, %v564
      %v566 = vrot.slane %v565, 4
      %v567 = vadd.f32 %v565, %v566
      %v568 = vrot.slane %v567, 2
      %v569 = vadd.f32 %v567, %v568
      %v570 = vrot.slane %v569, 1
      %v571 = vadd.f32 %v569, %v570
      %v572 = vmul.f32 %v571, 0.00390625
      %573 = vst.msk [vmem:[#allocation2 + $0x2] sm:$0x1] %vm364, %v572
      %s574 = scalar_lea.vmem %s251, 768
      %v575 = vld [vmem:[%s574] sm:$0xff]
      %v576 = vld [vmem:[%s574 + $0x8] sm:$0xff]
      %v577 = vld [vmem:[%s574 + $0x10] sm:$0xff]
      %v578 = vld [vmem:[%s574 + $0x18] sm:$0xff]
      %v579 = vld [vmem:[%s574 + $0x20] sm:$0xff]
      %v580 = vld [vmem:[%s574 + $0x28] sm:$0xff]
      %v581 = vld [vmem:[%s574 + $0x30] sm:$0xff]
      %v582 = vld [vmem:[%s574 + $0x38] sm:$0xff]
      %v583 = vld [vmem:[%s574 + $0x40] sm:$0xff]
      %v584 = vld [vmem:[%s574 + $0x48] sm:$0xff]
      %v585 = vld [vmem:[%s574 + $0x50] sm:$0xff]
      %v586 = vld [vmem:[%s574 + $0x58] sm:$0xff]
      %v587 = vld [vmem:[%s574 + $0x60] sm:$0xff]
      %v588 = vld [vmem:[%s574 + $0x68] sm:$0xff]
      %v589 = vld [vmem:[%s574 + $0x70] sm:$0xff]
      %v590 = vld [vmem:[%s574 + $0x78] sm:$0xff]
      %v591 = vld [vmem:[%s574 + $0x80] sm:$0xff]
      %v592 = vld [vmem:[%s574 + $0x88] sm:$0xff]
      %v593 = vld [vmem:[%s574 + $0x90] sm:$0xff]
      %v594 = vld [vmem:[%s574 + $0x98] sm:$0xff]
      %v595 = vld [vmem:[%s574 + $0xa0] sm:$0xff]
      %v596 = vld [vmem:[%s574 + $0xa8] sm:$0xff]
      %v597 = vld [vmem:[%s574 + $0xb0] sm:$0xff]
      %v598 = vld [vmem:[%s574 + $0xb8] sm:$0xff]
      %v599 = vld [vmem:[%s574 + $0xc0] sm:$0xff]
      %v600 = vld [vmem:[%s574 + $0xc8] sm:$0xff]
      %v601 = vld [vmem:[%s574 + $0xd0] sm:$0xff]
      %v602 = vld [vmem:[%s574 + $0xd8] sm:$0xff]
      %v603 = vld [vmem:[%s574 + $0xe0] sm:$0xff]
      %v604 = vld [vmem:[%s574 + $0xe8] sm:$0xff]
      %v605 = vld [vmem:[%s574 + $0xf0] sm:$0xff]
      %v606 = vld [vmem:[%s574 + $0xf8] sm:$0xff]
      %v607 = vsel %vm293, %v575, 0.0
      %v608 = vsel %vm293, %v576, 0.0
      %v609 = vadd.f32 %v607, %v608
      %v610 = vsel %vm293, %v577, 0.0
      %v611 = vadd.f32 %v609, %v610
      %v612 = vsel %vm293, %v578, 0.0
      %v613 = vadd.f32 %v611, %v612
      %v614 = vsel %vm293, %v579, 0.0
      %v615 = vadd.f32 %v613, %v614
      %v616 = vsel %vm293, %v580, 0.0
      %v617 = vadd.f32 %v615, %v616
      %v618 = vsel %vm293, %v581, 0.0
      %v619 = vadd.f32 %v617, %v618
      %v620 = vsel %vm293, %v582, 0.0
      %v621 = vadd.f32 %v619, %v620
      %v622 = vsel %vm293, %v583, 0.0
      %v623 = vadd.f32 %v621, %v622
      %v624 = vsel %vm293, %v584, 0.0
      %v625 = vadd.f32 %v623, %v624
      %v626 = vsel %vm293, %v585, 0.0
      %v627 = vadd.f32 %v625, %v626
      %v628 = vsel %vm293, %v586, 0.0
      %v629 = vadd.f32 %v627, %v628
      %v630 = vsel %vm293, %v587, 0.0
      %v631 = vadd.f32 %v629, %v630
      %v632 = vsel %vm293, %v588, 0.0
      %v633 = vadd.f32 %v631, %v632
      %v634 = vsel %vm293, %v589, 0.0
      %v635 = vadd.f32 %v633, %v634
      %v636 = vsel %vm293, %v590, 0.0
      %v637 = vadd.f32 %v635, %v636
      %v638 = vsel %vm293, %v591, 0.0
      %v639 = vadd.f32 %v637, %v638
      %v640 = vsel %vm293, %v592, 0.0
      %v641 = vadd.f32 %v639, %v640
      %v642 = vsel %vm293, %v593, 0.0
      %v643 = vadd.f32 %v641, %v642
      %v644 = vsel %vm293, %v594, 0.0
      %v645 = vadd.f32 %v643, %v644
      %v646 = vsel %vm293, %v595, 0.0
      %v647 = vadd.f32 %v645, %v646
      %v648 = vsel %vm293, %v596, 0.0
      %v649 = vadd.f32 %v647, %v648
      %v650 = vsel %vm293, %v597, 0.0
      %v651 = vadd.f32 %v649, %v650
      %v652 = vsel %vm293, %v598, 0.0
      %v653 = vadd.f32 %v651, %v652
      %v654 = vsel %vm293, %v599, 0.0
      %v655 = vadd.f32 %v653, %v654
      %v656 = vsel %vm293, %v600, 0.0
      %v657 = vadd.f32 %v655, %v656
      %v658 = vsel %vm293, %v601, 0.0
      %v659 = vadd.f32 %v657, %v658
      %v660 = vsel %vm293, %v602, 0.0
      %v661 = vadd.f32 %v659, %v660
      %v662 = vsel %vm293, %v603, 0.0
      %v663 = vadd.f32 %v661, %v662
      %v664 = vsel %vm293, %v604, 0.0
      %v665 = vadd.f32 %v663, %v664
      %v666 = vsel %vm293, %v605, 0.0
      %v667 = vadd.f32 %v665, %v666
      %v668 = vsel %vm293, %v606, 0.0
      %v669 = vadd.f32 %v667, %v668
      %v670 = vrot.slane %v669, 4
      %v671 = vadd.f32 %v669, %v670
      %v672 = vrot.slane %v671, 2
      %v673 = vadd.f32 %v671, %v672
      %v674 = vrot.slane %v673, 1
      %v675 = vadd.f32 %v673, %v674
      %v676 = vmul.f32 %v675, 0.00390625
      %677 = vst.msk [vmem:[#allocation2 + $0x3] sm:$0x1] %vm364, %v676
      %v678 = vld [vmem:[#allocation2] sm:$0xf]
      %v679 = vld [vmem:[%s2] sm:$0xff]
      %v680 = vld [vmem:[%s2 + $0x8] sm:$0xff]
      %v681 = vld [vmem:[%s2 + $0x10] sm:$0xff]
      %v682 = vld [vmem:[%s2 + $0x18] sm:$0xff]
      %v684 = vsel %vm293, %v678, 0
      %686 = vmatprep.subr.mxu0 0.0
      %687 = vmatpush1.msra.mxu0 0.0
      %688 = vmatprep.subr.mxu0 0.0
      %689 = vmatpush1.msra.mxu0 0.0
      %690 = vmatprep.subr.mxu0 0.0
      %691 = vmatpush1.msra.mxu0 0.0
      %692 = vmatprep.subr.mxu0 0.0
      %693 = vmatpush1.msra.mxu0 0.0
      %694 = vmatprep.subr.mxu0 0.0
      %695 = vmatpush1.msra.mxu0 0.0
      %696 = vmatprep.subr.mxu0 0.0
      %697 = vmatpush1.msra.mxu0 0.0
      %698 = vmatprep.subr.mxu0 0.0
      %699 = vmatpush1.msra.mxu0 0.0
      %700 = vmatprep.subr.mxu0 0.0
      %701 = vmatpush1.msra.mxu0 0.0
      %702 = vmatprep.subr.mxu0 0.0
      %703 = vmatpush1.msra.mxu0 0.0
      %704 = vmatprep.subr.mxu0 0.0
      %705 = vmatpush1.msra.mxu0 0.0
      %706 = vmatprep.subr.mxu0 0.0
      %707 = vmatpush1.msra.mxu0 0.0
      %708 = vmatprep.subr.mxu0 0.0
      %709 = vmatpush1.msra.mxu0 0.0
      %710 = vmatprep.subr.mxu0 0.0
      %711 = vmatpush1.msra.mxu0 %v682
      %712 = vmatprep.subr.mxu0 0.0
      %713 = vmatpush1.msra.mxu0 %v681
      %714 = vmatprep.subr.mxu0 0.0
      %715 = vmatpush1.msra.mxu0 %v680
      %716 = vmatprep.subr.mxu0 0.0
      %717 = vmatpush1.msra.mxu0 %v679
      %718 = vmatprep.subr.mxu0 0.0
      %719 = vmatpush2.msra.mxu0 0.0
      %720 = vmatprep.subr.mxu0 0.0
      %721 = vmatpush2.msra.mxu0 0.0
      %722 = vmatprep.subr.mxu0 0.0
      %723 = vmatpush2.msra.mxu0 0.0
      %724 = vmatprep.subr.mxu0 0.0
      %725 = vmatpush2.msra.mxu0 0.0
      %726 = vmatprep.subr.mxu0 0.0
      %727 = vmatpush2.msra.mxu0 0.0
      %728 = vmatprep.subr.mxu0 0.0
      %729 = vmatpush2.msra.mxu0 0.0
      %730 = vmatprep.subr.mxu0 0.0
      %731 = vmatpush2.msra.mxu0 0.0
      %732 = vmatprep.subr.mxu0 0.0
      %733 = vmatpush2.msra.mxu0 0.0
      %734 = vmatprep.subr.mxu0 0.0
      %735 = vmatpush2.msra.mxu0 0.0
      %736 = vmatprep.subr.mxu0 0.0
      %737 = vmatpush2.msra.mxu0 0.0
      %738 = vmatprep.subr.mxu0 0.0
      %739 = vmatpush2.msra.mxu0 0.0
      %740 = vmatprep.subr.mxu0 0.0
      %741 = vmatpush2.msra.mxu0 0.0
      %742 = vmatprep.subr.mxu0 0.0
      %743 = vmatpush2.msra.mxu0 0.0
      %744 = vmatprep.subr.mxu0 0.0
      %745 = vmatpush2.msra.mxu0 0.0
      %746 = vmatprep.subr.mxu0 0.0
      %747 = vmatpush2.msra.mxu0 0.0
      %748 = vmatprep.subr.mxu0 0.0
      %749 = vmatpush2.msra.mxu0 0.0
      %750 = vmatprep.mubr.f32.mxu0 0.0
      %751 = vmatmul.mubr.f32.gmra.mxu0 %v684
      %v752 = vpop.f32.mrf.mxu0
      %v753 = vadd.f32 0.0, %v752
      %v754 = vpop.f32.mrf.mxu0
      %755 = vdwg.mxu0
      %v756 = vmax.f32 %v753, 0.0
      %v757 = vld [vmem:[%s3] sm:$0xff]
      %vm758 = vcmask 64512
      %v760 = vsel %vm758, %v756, 0
      %762 = vmatprep.subr.mxu0 0.0
      %763 = vmatpush1.msra.mxu0 0.0
      %764 = vmatprep.subr.mxu0 0.0
      %765 = vmatpush1.msra.mxu0 0.0
      %766 = vmatprep.subr.mxu0 0.0
      %767 = vmatpush1.msra.mxu0 0.0
      %768 = vmatprep.subr.mxu0 0.0
      %769 = vmatpush1.msra.mxu0 0.0
      %770 = vmatprep.subr.mxu0 0.0
      %771 = vmatpush1.msra.mxu0 0.0
      %772 = vmatprep.subr.mxu0 0.0
      %773 = vmatpush1.msra.mxu0 0.0
      %774 = vmatprep.subr.mxu0 0.0
      %775 = vmatpush1.msra.mxu0 0.0
      %776 = vmatprep.subr.mxu0 0.0
      %777 = vmatpush1.msra.mxu0 0.0
      %778 = vmatprep.subr.mxu0 0.0
      %779 = vmatpush1.msra.mxu0 0.0
      %780 = vmatprep.subr.mxu0 0.0
      %781 = vmatpush1.msra.mxu0 0.0
      %782 = vmatprep.subr.mxu0 0.0
      %783 = vmatpush1.msra.mxu0 0.0
      %784 = vmatprep.subr.mxu0 0.0
      %785 = vmatpush1.msra.mxu0 0.0
      %786 = vmatprep.subr.mxu0 0.0
      %787 = vmatpush1.msra.mxu0 0.0
      %788 = vmatprep.subr.mxu0 0.0
      %789 = vmatpush1.msra.mxu0 0.0
      %790 = vmatprep.subr.mxu0 0.0
      %791 = vmatpush1.msra.mxu0 0.0
      %792 = vmatprep.subr.mxu0 0.0
      %793 = vmatpush1.msra.mxu0 %v757
      %794 = vmatprep.subr.mxu0 0.0
      %795 = vmatpush2.msra.mxu0 0.0
      %796 = vmatprep.subr.mxu0 0.0
      %797 = vmatpush2.msra.mxu0 0.0
      %798 = vmatprep.subr.mxu0 0.0
      %799 = vmatpush2.msra.mxu0 0.0
      %800 = vmatprep.subr.mxu0 0.0
      %801 = vmatpush2.msra.mxu0 0.0
      %802 = vmatprep.subr.mxu0 0.0
      %803 = vmatpush2.msra.mxu0 0.0
      %804 = vmatprep.subr.mxu0 0.0
      %805 = vmatpush2.msra.mxu0 0.0
      %806 = vmatprep.subr.mxu0 0.0
      %807 = vmatpush2.msra.mxu0 0.0
      %808 = vmatprep.subr.mxu0 0.0
      %809 = vmatpush2.msra.mxu0 0.0
      %810 = vmatprep.subr.mxu0 0.0
      %811 = vmatpush2.msra.mxu0 0.0
      %812 = vmatprep.subr.mxu0 0.0
      %813 = vmatpush2.msra.mxu0 0.0
      %814 = vmatprep.subr.mxu0 0.0
      %815 = vmatpush2.msra.mxu0 0.0
      %816 = vmatprep.subr.mxu0 0.0
      %817 = vmatpush2.msra.mxu0 0.0
      %818 = vmatprep.subr.mxu0 0.0
      %819 = vmatpush2.msra.mxu0 0.0
      %820 = vmatprep.subr.mxu0 0.0
      %821 = vmatpush2.msra.mxu0 0.0
      %822 = vmatprep.subr.mxu0 0.0
      %823 = vmatpush2.msra.mxu0 0.0
      %824 = vmatprep.subr.mxu0 0.0
      %825 = vmatpush2.msra.mxu0 0.0
      %826 = vmatprep.mubr.f32.mxu0 0.0
      %827 = vmatmul.mubr.f32.gmra.mxu0 %v760
      %v828 = vpop.f32.mrf.mxu0
      %v829 = vadd.f32 0.0, %v828
      %v830 = vpop.f32.mrf.mxu0
      %831 = vdwg.mxu0
      %v832 = vxor.u32 %v829, 2147483648
      %v833 = vmul.f32 %v832, 1.442695
      %v834 = vpow.pop %v833
      %v835 = vadd.f32 %v834, 1.0
      %v836 = vrcp.pop %v835
      %v837 = vmul.f32 1.0, %v836
      %v838 = vld [vmem:[%s4] sm:$0x1]
      %v839 = vld [vmem:[%s5] sm:$0x1]
      %v840 = vld [vmem:[%s1] sm:$0xff]
      %v841 = vld [vmem:[%s1 + $0x8] sm:$0xff]
      %v842 = vld [vmem:[%s1 + $0x10] sm:$0xff]
      %v843 = vld [vmem:[%s1 + $0x18] sm:$0xff]
      %v844 = vld [vmem:[%s1 + $0x20] sm:$0xff]
      %v845 = vld [vmem:[%s1 + $0x28] sm:$0xff]
      %v846 = vld [vmem:[%s1 + $0x30] sm:$0xff]
      %v847 = vld [vmem:[%s1 + $0x38] sm:$0xff]
      %v848 = vld [vmem:[%s1 + $0x40] sm:$0xff]
      %v849 = vld [vmem:[%s1 + $0x48] sm:$0xff]
      %v850 = vld [vmem:[%s1 + $0x50] sm:$0xff]
      %v851 = vld [vmem:[%s1 + $0x58] sm:$0xff]
      %v852 = vld [vmem:[%s1 + $0x60] sm:$0xff]
      %v853 = vld [vmem:[%s1 + $0x68] sm:$0xff]
      %v854 = vld [vmem:[%s1 + $0x70] sm:$0xff]
      %v855 = vld [vmem:[%s1 + $0x78] sm:$0xff]
      %v856 = vld [vmem:[%s1 + $0x80] sm:$0xff]
      %v857 = vld [vmem:[%s1 + $0x88] sm:$0xff]
      %v858 = vld [vmem:[%s1 + $0x90] sm:$0xff]
      %v859 = vld [vmem:[%s1 + $0x98] sm:$0xff]
      %v860 = vld [vmem:[%s1 + $0xa0] sm:$0xff]
      %v861 = vld [vmem:[%s1 + $0xa8] sm:$0xff]
      %v862 = vld [vmem:[%s1 + $0xb0] sm:$0xff]
      %v863 = vld [vmem:[%s1 + $0xb8] sm:$0xff]
      %v864 = vld [vmem:[%s1 + $0xc0] sm:$0xff]
      %v865 = vld [vmem:[%s1 + $0xc8] sm:$0xff]
      %v866 = vld [vmem:[%s1 + $0xd0] sm:$0xff]
      %v867 = vld [vmem:[%s1 + $0xd8] sm:$0xff]
      %v868 = vld [vmem:[%s1 + $0xe0] sm:$0xff]
      %v869 = vld [vmem:[%s1 + $0xe8] sm:$0xff]
      %v870 = vld [vmem:[%s1 + $0xf0] sm:$0xff]
      %v871 = vld [vmem:[%s1 + $0xf8] sm:$0xff]
      %v872 = vld [vmem:[%s251] sm:$0xff]
      %v873 = vld [vmem:[%s251 + $0x8] sm:$0xff]
      %v874 = vld [vmem:[%s251 + $0x10] sm:$0xff]
      %v875 = vld [vmem:[%s251 + $0x18] sm:$0xff]
      %v876 = vld [vmem:[%s251 + $0x20] sm:$0xff]
      %v877 = vld [vmem:[%s251 + $0x28] sm:$0xff]
      %v878 = vld [vmem:[%s251 + $0x30] sm:$0xff]
      %v879 = vld [vmem:[%s251 + $0x38] sm:$0xff]
      %v880 = vld [vmem:[%s251 + $0x40] sm:$0xff]
      %v881 = vld [vmem:[%s251 + $0x48] sm:$0xff]
      %v882 = vld [vmem:[%s251 + $0x50] sm:$0xff]
      %v883 = vld [vmem:[%s251 + $0x58] sm:$0xff]
      %v884 = vld [vmem:[%s251 + $0x60] sm:$0xff]
      %v885 = vld [vmem:[%s251 + $0x68] sm:$0xff]
      %v886 = vld [vmem:[%s251 + $0x70] sm:$0xff]
      %v887 = vld [vmem:[%s251 + $0x78] sm:$0xff]
      %v888 = vld [vmem:[%s251 + $0x80] sm:$0xff]
      %v889 = vld [vmem:[%s251 + $0x88] sm:$0xff]
      %v890 = vld [vmem:[%s251 + $0x90] sm:$0xff]
      %v891 = vld [vmem:[%s251 + $0x98] sm:$0xff]
      %v892 = vld [vmem:[%s251 + $0xa0] sm:$0xff]
      %v893 = vld [vmem:[%s251 + $0xa8] sm:$0xff]
      %v894 = vld [vmem:[%s251 + $0xb0] sm:$0xff]
      %v895 = vld [vmem:[%s251 + $0xb8] sm:$0xff]
      %v896 = vld [vmem:[%s251 + $0xc0] sm:$0xff]
      %v897 = vld [vmem:[%s251 + $0xc8] sm:$0xff]
      %v898 = vld [vmem:[%s251 + $0xd0] sm:$0xff]
      %v899 = vld [vmem:[%s251 + $0xd8] sm:$0xff]
      %v900 = vld [vmem:[%s251 + $0xe0] sm:$0xff]
      %v901 = vld [vmem:[%s251 + $0xe8] sm:$0xff]
      %v902 = vld [vmem:[%s251 + $0xf0] sm:$0xff]
      %v903 = vld [vmem:[%s251 + $0xf8] sm:$0xff]
      %v904 = vpack.c.bf16 %v873, %v872
      %v905 = vpack.c.bf16 %v875, %v874
      %v906 = vpack.c.bf16 %v877, %v876
      %v907 = vpack.c.bf16 %v879, %v878
      %v908 = vpack.c.bf16 %v881, %v880
      %v909 = vpack.c.bf16 %v883, %v882
      %v910 = vpack.c.bf16 %v885, %v884
      %v911 = vpack.c.bf16 %v887, %v886
      %v912 = vpack.c.bf16 %v889, %v888
      %v913 = vpack.c.bf16 %v891, %v890
      %v914 = vpack.c.bf16 %v893, %v892
      %v915 = vpack.c.bf16 %v895, %v894
      %v916 = vpack.c.bf16 %v897, %v896
      %v917 = vpack.c.bf16 %v899, %v898
      %v918 = vpack.c.bf16 %v901, %v900
      %v919 = vpack.c.bf16 %v903, %v902
      %v952 = vunpack.c.l.b16 %v840
      %v953 = vunpack.c.h.b16 %v840
      %v954 = vunpack.c.l.b16 %v841
      %v955 = vunpack.c.h.b16 %v841
      %v956 = vunpack.c.l.b16 %v842
      %v957 = vunpack.c.h.b16 %v842
      %v958 = vunpack.c.l.b16 %v843
      %v959 = vunpack.c.h.b16 %v843
      %v960 = vunpack.c.l.b16 %v844
      %v961 = vunpack.c.h.b16 %v844
      %v962 = vunpack.c.l.b16 %v845
      %v963 = vunpack.c.h.b16 %v845
      %v964 = vunpack.c.l.b16 %v846
      %v965 = vunpack.c.h.b16 %v846
      %v966 = vunpack.c.l.b16 %v847
      %v967 = vunpack.c.h.b16 %v847
      %v968 = vunpack.c.l.b16 %v848
      %v969 = vunpack.c.h.b16 %v848
      %v970 = vunpack.c.l.b16 %v849
      %v971 = vunpack.c.h.b16 %v849
      %v972 = vunpack.c.l.b16 %v850
      %v973 = vunpack.c.h.b16 %v850
      %v974 = vunpack.c.l.b16 %v851
      %v975 = vunpack.c.h.b16 %v851
      %v976 = vunpack.c.l.b16 %v852
      %v977 = vunpack.c.h.b16 %v852
      %v978 = vunpack.c.l.b16 %v853
      %v979 = vunpack.c.h.b16 %v853
      %v980 = vunpack.c.l.b16 %v854
      %v981 = vunpack.c.h.b16 %v854
      %v982 = vunpack.c.l.b16 %v855
      %v983 = vunpack.c.h.b16 %v855
      %v984 = vunpack.c.l.b16 %v856
      %v985 = vunpack.c.h.b16 %v856
      %v986 = vunpack.c.l.b16 %v857
      %v987 = vunpack.c.h.b16 %v857
      %v988 = vunpack.c.l.b16 %v858
      %v989 = vunpack.c.h.b16 %v858
      %v990 = vunpack.c.l.b16 %v859
      %v991 = vunpack.c.h.b16 %v859
      %v992 = vunpack.c.l.b16 %v860
      %v993 = vunpack.c.h.b16 %v860
      %v994 = vunpack.c.l.b16 %v861
      %v995 = vunpack.c.h.b16 %v861
      %v996 = vunpack.c.l.b16 %v862
      %v997 = vunpack.c.h.b16 %v862
      %v998 = vunpack.c.l.b16 %v863
      %v999 = vunpack.c.h.b16 %v863
      %v1000 = vunpack.c.l.b16 %v864
      %v1001 = vunpack.c.h.b16 %v864
      %v1002 = vunpack.c.l.b16 %v865
      %v1003 = vunpack.c.h.b16 %v865
      %v1004 = vunpack.c.l.b16 %v866
      %v1005 = vunpack.c.h.b16 %v866
      %v1006 = vunpack.c.l.b16 %v867
      %v1007 = vunpack.c.h.b16 %v867
      %v1008 = vunpack.c.l.b16 %v868
      %v1009 = vunpack.c.h.b16 %v868
      %v1010 = vunpack.c.l.b16 %v869
      %v1011 = vunpack.c.h.b16 %v869
      %v1012 = vunpack.c.l.b16 %v870
      %v1013 = vunpack.c.h.b16 %v870
      %v1014 = vunpack.c.l.b16 %v871
      %v1015 = vunpack.c.h.b16 %v871
      %v1016 = vpack.c.b16 %v954, %v952
      %v1017 = vpack.c.b16 %v955, %v953
      %v1018 = vpack.c.b16 %v958, %v956
      %v1019 = vpack.c.b16 %v959, %v957
      %v1020 = vpack.c.b16 %v962, %v960
      %v1021 = vpack.c.b16 %v963, %v961
      %v1022 = vpack.c.b16 %v966, %v964
      %v1023 = vpack.c.b16 %v967, %v965
      %v1024 = vpack.c.b16 %v970, %v968
      %v1025 = vpack.c.b16 %v971, %v969
      %v1026 = vpack.c.b16 %v974, %v972
      %v1027 = vpack.c.b16 %v975, %v973
      %v1028 = vpack.c.b16 %v978, %v976
      %v1029 = vpack.c.b16 %v979, %v977
      %v1030 = vpack.c.b16 %v982, %v980
      %v1031 = vpack.c.b16 %v983, %v981
      %v1032 = vpack.c.b16 %v986, %v984
      %v1033 = vpack.c.b16 %v987, %v985
      %v1034 = vpack.c.b16 %v990, %v988
      %v1035 = vpack.c.b16 %v991, %v989
      %v1036 = vpack.c.b16 %v994, %v992
      %v1037 = vpack.c.b16 %v995, %v993
      %v1038 = vpack.c.b16 %v998, %v996
      %v1039 = vpack.c.b16 %v999, %v997
      %v1040 = vpack.c.b16 %v1002, %v1000
      %v1041 = vpack.c.b16 %v1003, %v1001
      %v1042 = vpack.c.b16 %v1006, %v1004
      %v1043 = vpack.c.b16 %v1007, %v1005
      %v1044 = vpack.c.b16 %v1010, %v1008
      %v1045 = vpack.c.b16 %v1011, %v1009
      %v1046 = vpack.c.b16 %v1014, %v1012
      %v1047 = vpack.c.b16 %v1015, %v1013
      %1080 = vmatprep.subr.bf16.mxu0 0
      %1081 = vmatpush1.bf16.msra.mxu0 %v911
      %1082 = vmatprep.subr.bf16.mxu0 0
      %1083 = vmatpush1.bf16.msra.mxu0 %v910
      %1084 = vmatprep.subr.bf16.mxu0 0
      %1085 = vmatpush1.bf16.msra.mxu0 %v909
      %1086 = vmatprep.subr.bf16.mxu0 0
      %1087 = vmatpush1.bf16.msra.mxu0 %v908
      %1088 = vmatprep.subr.bf16.mxu0 0
      %1089 = vmatpush1.bf16.msra.mxu0 %v907
      %1090 = vmatprep.subr.bf16.mxu0 0
      %1091 = vmatpush1.bf16.msra.mxu0 %v906
      %1092 = vmatprep.subr.bf16.mxu0 0
      %1093 = vmatpush1.bf16.msra.mxu0 %v905
      %1094 = vmatprep.subr.bf16.mxu0 0
      %1095 = vmatpush1.bf16.msra.mxu0 %v904
      %1096 = vmatprep.subr.bf16.mxu0 0
      %1097 = vmatpush2.bf16.msra.mxu0 %v919
      %1098 = vmatprep.subr.bf16.mxu0 0
      %1099 = vmatpush2.bf16.msra.mxu0 %v918
      %1100 = vmatprep.subr.bf16.mxu0 0
      %1101 = vmatpush2.bf16.msra.mxu0 %v917
      %1102 = vmatprep.subr.bf16.mxu0 0
      %1103 = vmatpush2.bf16.msra.mxu0 %v916
      %1104 = vmatprep.subr.bf16.mxu0 0
      %1105 = vmatpush2.bf16.msra.mxu0 %v915
      %1106 = vmatprep.subr.bf16.mxu0 0
      %1107 = vmatpush2.bf16.msra.mxu0 %v914
      %1108 = vmatprep.subr.bf16.mxu0 0
      %1109 = vmatpush2.bf16.msra.mxu0 %v913
      %1110 = vmatprep.subr.bf16.mxu0 0
      %1111 = vmatpush2.bf16.msra.mxu0 %v912
      %1112 = vmatprep.mubr.bf16.mxu0 %v1017
      %1113 = vmatmul.mubr.bf16.gmra.mxu0 %v1016
      %v1114 = vpop.f32.mrf.mxu0
      %v1115 = vadd.f32 0.0, %v1114
      %v1116 = vpop.f32.mrf.mxu0
      %v1117 = vpop.f32.mrf.mxu0
      %v1118 = vadd.f32 0.0, %v1117
      %v1119 = vpop.f32.mrf.mxu0
      %1120 = vmatprep.mubr.bf16.mxu0 %v1019
      %1121 = vmatmul.mubr.bf16.gmra.mxu0 %v1018
      %v1122 = vpop.f32.mrf.mxu0
      %v1123 = vadd.f32 0.0, %v1122
      %v1124 = vpop.f32.mrf.mxu0
      %v1125 = vpop.f32.mrf.mxu0
      %v1126 = vadd.f32 0.0, %v1125
      %v1127 = vpop.f32.mrf.mxu0
      %1128 = vmatprep.mubr.bf16.mxu0 %v1021
      %1129 = vmatmul.mubr.bf16.gmra.mxu0 %v1020
      %v1130 = vpop.f32.mrf.mxu0
      %v1131 = vadd.f32 0.0, %v1130
      %v1132 = vpop.f32.mrf.mxu0
      %v1133 = vpop.f32.mrf.mxu0
      %v1134 = vadd.f32 0.0, %v1133
      %v1135 = vpop.f32.mrf.mxu0
      %1136 = vmatprep.mubr.bf16.mxu0 %v1023
      %1137 = vmatmul.mubr.bf16.gmra.mxu0 %v1022
      %v1138 = vpop.f32.mrf.mxu0
      %v1139 = vadd.f32 0.0, %v1138
      %v1140 = vpop.f32.mrf.mxu0
      %v1141 = vpop.f32.mrf.mxu0
      %v1142 = vadd.f32 0.0, %v1141
      %v1143 = vpop.f32.mrf.mxu0
      %1144 = vmatprep.mubr.bf16.mxu0 %v1025
      %1145 = vmatmul.mubr.bf16.gmra.mxu0 %v1024
      %v1146 = vpop.f32.mrf.mxu0
      %v1147 = vadd.f32 0.0, %v1146
      %v1148 = vpop.f32.mrf.mxu0
      %v1149 = vpop.f32.mrf.mxu0
      %v1150 = vadd.f32 0.0, %v1149
      %v1151 = vpop.f32.mrf.mxu0
      %1152 = vmatprep.mubr.bf16.mxu0 %v1027
      %1153 = vmatmul.mubr.bf16.gmra.mxu0 %v1026
      %v1154 = vpop.f32.mrf.mxu0
      %v1155 = vadd.f32 0.0, %v1154
      %v1156 = vpop.f32.mrf.mxu0
      %v1157 = vpop.f32.mrf.mxu0
      %v1158 = vadd.f32 0.0, %v1157
      %v1159 = vpop.f32.mrf.mxu0
      %1160 = vmatprep.mubr.bf16.mxu0 %v1029
      %1161 = vmatmul.mubr.bf16.gmra.mxu0 %v1028
      %v1162 = vpop.f32.mrf.mxu0
      %v1163 = vadd.f32 0.0, %v1162
      %v1164 = vpop.f32.mrf.mxu0
      %v1165 = vpop.f32.mrf.mxu0
      %v1166 = vadd.f32 0.0, %v1165
      %v1167 = vpop.f32.mrf.mxu0
      %1168 = vmatprep.mubr.bf16.mxu0 %v1031
      %1169 = vmatmul.mubr.bf16.gmra.mxu0 %v1030
      %v1170 = vpop.f32.mrf.mxu0
      %v1171 = vadd.f32 0.0, %v1170
      %v1172 = vpop.f32.mrf.mxu0
      %v1173 = vpop.f32.mrf.mxu0
      %v1174 = vadd.f32 0.0, %v1173
      %v1175 = vpop.f32.mrf.mxu0
      %1176 = vmatprep.mubr.bf16.mxu0 %v1033
      %1177 = vmatmul.mubr.bf16.gmra.mxu0 %v1032
      %v1178 = vpop.f32.mrf.mxu0
      %v1179 = vadd.f32 0.0, %v1178
      %v1180 = vpop.f32.mrf.mxu0
      %v1181 = vpop.f32.mrf.mxu0
      %v1182 = vadd.f32 0.0, %v1181
      %v1183 = vpop.f32.mrf.mxu0
      %1184 = vmatprep.mubr.bf16.mxu0 %v1035
      %1185 = vmatmul.mubr.bf16.gmra.mxu0 %v1034
      %v1186 = vpop.f32.mrf.mxu0
      %v1187 = vadd.f32 0.0, %v1186
      %v1188 = vpop.f32.mrf.mxu0
      %v1189 = vpop.f32.mrf.mxu0
      %v1190 = vadd.f32 0.0, %v1189
      %v1191 = vpop.f32.mrf.mxu0
      %1192 = vmatprep.mubr.bf16.mxu0 %v1037
      %1193 = vmatmul.mubr.bf16.gmra.mxu0 %v1036
      %v1194 = vpop.f32.mrf.mxu0
      %v1195 = vadd.f32 0.0, %v1194
      %v1196 = vpop.f32.mrf.mxu0
      %v1197 = vpop.f32.mrf.mxu0
      %v1198 = vadd.f32 0.0, %v1197
      %v1199 = vpop.f32.mrf.mxu0
      %1200 = vmatprep.mubr.bf16.mxu0 %v1039
      %1201 = vmatmul.mubr.bf16.gmra.mxu0 %v1038
      %v1202 = vpop.f32.mrf.mxu0
      %v1203 = vadd.f32 0.0, %v1202
      %v1204 = vpop.f32.mrf.mxu0
      %v1205 = vpop.f32.mrf.mxu0
      %v1206 = vadd.f32 0.0, %v1205
      %v1207 = vpop.f32.mrf.mxu0
      %1208 = vmatprep.mubr.bf16.mxu0 %v1041
      %1209 = vmatmul.mubr.bf16.gmra.mxu0 %v1040
      %v1210 = vpop.f32.mrf.mxu0
      %v1211 = vadd.f32 0.0, %v1210
      %v1212 = vpop.f32.mrf.mxu0
      %v1213 = vpop.f32.mrf.mxu0
      %v1214 = vadd.f32 0.0, %v1213
      %v1215 = vpop.f32.mrf.mxu0
      %1216 = vmatprep.mubr.bf16.mxu0 %v1043
      %1217 = vmatmul.mubr.bf16.gmra.mxu0 %v1042
      %v1218 = vpop.f32.mrf.mxu0
      %v1219 = vadd.f32 0.0, %v1218
      %v1220 = vpop.f32.mrf.mxu0
      %v1221 = vpop.f32.mrf.mxu0
      %v1222 = vadd.f32 0.0, %v1221
      %v1223 = vpop.f32.mrf.mxu0
      %1224 = vmatprep.mubr.bf16.mxu0 %v1045
      %1225 = vmatmul.mubr.bf16.gmra.mxu0 %v1044
      %v1226 = vpop.f32.mrf.mxu0
      %v1227 = vadd.f32 0.0, %v1226
      %v1228 = vpop.f32.mrf.mxu0
      %v1229 = vpop.f32.mrf.mxu0
      %v1230 = vadd.f32 0.0, %v1229
      %v1231 = vpop.f32.mrf.mxu0
      %1232 = vmatprep.mubr.bf16.mxu0 %v1047
      %1233 = vmatmul.mubr.bf16.gmra.mxu0 %v1046
      %v1234 = vpop.f32.mrf.mxu0
      %v1235 = vadd.f32 0.0, %v1234
      %v1236 = vpop.f32.mrf.mxu0
      %v1237 = vpop.f32.mrf.mxu0
      %v1238 = vadd.f32 0.0, %v1237
      %v1239 = vpop.f32.mrf.mxu0
      %1240 = vdwg.mxu0
      %v1241 = vlaneseq
      %v1242 = vshrl.u32 %v1241, 7
      %v1243 = vsub.s32 0, %v1242
      %v1244 = vrot.slane %v837, %v1243
      %v1245 = vmul.f32 %v1115, %v1244
      %v1246 = vmul.f32 %v1118, %v1244
      %v1247 = vmul.f32 %v1123, %v1244
      %v1248 = vmul.f32 %v1126, %v1244
      %v1249 = vmul.f32 %v1131, %v1244
      %v1250 = vmul.f32 %v1134, %v1244
      %v1251 = vmul.f32 %v1139, %v1244
      %v1252 = vmul.f32 %v1142, %v1244
      %v1253 = vmul.f32 %v1147, %v1244
      %v1254 = vmul.f32 %v1150, %v1244
      %v1255 = vmul.f32 %v1155, %v1244
      %v1256 = vmul.f32 %v1158, %v1244
      %v1257 = vmul.f32 %v1163, %v1244
      %v1258 = vmul.f32 %v1166, %v1244
      %v1259 = vmul.f32 %v1171, %v1244
      %v1260 = vmul.f32 %v1174, %v1244
      %v1261 = vmul.f32 %v1179, %v1244
      %v1262 = vmul.f32 %v1182, %v1244
      %v1263 = vmul.f32 %v1187, %v1244
      %v1264 = vmul.f32 %v1190, %v1244
      %v1265 = vmul.f32 %v1195, %v1244
      %v1266 = vmul.f32 %v1198, %v1244
      %v1267 = vmul.f32 %v1203, %v1244
      %v1268 = vmul.f32 %v1206, %v1244
      %v1269 = vmul.f32 %v1211, %v1244
      %v1270 = vmul.f32 %v1214, %v1244
      %v1271 = vmul.f32 %v1219, %v1244
      %v1272 = vmul.f32 %v1222, %v1244
      %v1273 = vmul.f32 %v1227, %v1244
      %v1274 = vmul.f32 %v1230, %v1244
      %v1275 = vmul.f32 %v1235, %v1244
      %v1276 = vmul.f32 %v1238, %v1244
      %v1277 = vadd.f32 %v1245, %v872
      %v1278 = vadd.f32 %v1246, %v873
      %v1279 = vadd.f32 %v1247, %v874
      %v1280 = vadd.f32 %v1248, %v875
      %v1281 = vadd.f32 %v1249, %v876
      %v1282 = vadd.f32 %v1250, %v877
      %v1283 = vadd.f32 %v1251, %v878
      %v1284 = vadd.f32 %v1252, %v879
      %v1285 = vadd.f32 %v1253, %v880
      %v1286 = vadd.f32 %v1254, %v881
      %v1287 = vadd.f32 %v1255, %v882
      %v1288 = vadd.f32 %v1256, %v883
      %v1289 = vadd.f32 %v1257, %v884
      %v1290 = vadd.f32 %v1258, %v885
      %v1291 = vadd.f32 %v1259, %v886
      %v1292 = vadd.f32 %v1260, %v887
      %v1293 = vadd.f32 %v1261, %v888
      %v1294 = vadd.f32 %v1262, %v889
      %v1295 = vadd.f32 %v1263, %v890
      %v1296 = vadd.f32 %v1264, %v891
      %v1297 = vadd.f32 %v1265, %v892
      %v1298 = vadd.f32 %v1266, %v893
      %v1299 = vadd.f32 %v1267, %v894
      %v1300 = vadd.f32 %v1268, %v895
      %v1301 = vadd.f32 %v1269, %v896
      %v1302 = vadd.f32 %v1270, %v897
      %v1303 = vadd.f32 %v1271, %v898
      %v1304 = vadd.f32 %v1272, %v899
      %v1305 = vadd.f32 %v1273, %v900
      %v1306 = vadd.f32 %v1274, %v901
      %v1307 = vadd.f32 %v1275, %v902
      %v1308 = vadd.f32 %v1276, %v903
      %v1309 = vsel %vm293, %v1277, 0.0
      %1310 = vadd.xlane.f32.xlu0 %v1309
      %v1311 = vpop.xlane.xlu0 %1310
      %v1312 = vsel %vm293, %v1278, 0.0
      %1313 = vadd.xlane.f32.xlu0 %v1312
      %v1314 = vpop.xlane.xlu0 %1313
      %v1315 = vsel %vm293, %v1279, 0.0
      %1316 = vadd.xlane.f32.xlu0 %v1315
      %v1317 = vpop.xlane.xlu0 %1316
      %v1318 = vsel %vm293, %v1280, 0.0
      %1319 = vadd.xlane.f32.xlu0 %v1318
      %v1320 = vpop.xlane.xlu0 %1319
      %v1321 = vsel %vm293, %v1281, 0.0
      %1322 = vadd.xlane.f32.xlu0 %v1321
      %v1323 = vpop.xlane.xlu0 %1322
      %v1324 = vsel %vm293, %v1282, 0.0
      %1325 = vadd.xlane.f32.xlu0 %v1324
      %v1326 = vpop.xlane.xlu0 %1325
      %v1327 = vsel %vm293, %v1283, 0.0
      %1328 = vadd.xlane.f32.xlu0 %v1327
      %v1329 = vpop.xlane.xlu0 %1328
      %v1330 = vsel %vm293, %v1284, 0.0
      %1331 = vadd.xlane.f32.xlu0 %v1330
      %v1332 = vpop.xlane.xlu0 %1331
      %v1333 = vsel %vm293, %v1285, 0.0
      %1334 = vadd.xlane.f32.xlu0 %v1333
      %v1335 = vpop.xlane.xlu0 %1334
      %v1336 = vsel %vm293, %v1286, 0.0
      %1337 = vadd.xlane.f32.xlu0 %v1336
      %v1338 = vpop.xlane.xlu0 %1337
      %v1339 = vsel %vm293, %v1287, 0.0
      %1340 = vadd.xlane.f32.xlu0 %v1339
      %v1341 = vpop.xlane.xlu0 %1340
      %v1342 = vsel %vm293, %v1288, 0.0
      %1343 = vadd.xlane.f32.xlu0 %v1342
      %v1344 = vpop.xlane.xlu0 %1343
      %v1345 = vsel %vm293, %v1289, 0.0
      %1346 = vadd.xlane.f32.xlu0 %v1345
      %v1347 = vpop.xlane.xlu0 %1346
      %v1348 = vsel %vm293, %v1290, 0.0
      %1349 = vadd.xlane.f32.xlu0 %v1348
      %v1350 = vpop.xlane.xlu0 %1349
      %v1351 = vsel %vm293, %v1291, 0.0
      %1352 = vadd.xlane.f32.xlu0 %v1351
      %v1353 = vpop.xlane.xlu0 %1352
      %v1354 = vsel %vm293, %v1292, 0.0
      %1355 = vadd.xlane.f32.xlu0 %v1354
      %v1356 = vpop.xlane.xlu0 %1355
      %v1357 = vsel %vm293, %v1293, 0.0
      %1358 = vadd.xlane.f32.xlu0 %v1357
      %v1359 = vpop.xlane.xlu0 %1358
      %v1360 = vsel %vm293, %v1294, 0.0
      %1361 = vadd.xlane.f32.xlu0 %v1360
      %v1362 = vpop.xlane.xlu0 %1361
      %v1363 = vsel %vm293, %v1295, 0.0
      %1364 = vadd.xlane.f32.xlu0 %v1363
      %v1365 = vpop.xlane.xlu0 %1364
      %v1366 = vsel %vm293, %v1296, 0.0
      %1367 = vadd.xlane.f32.xlu0 %v1366
      %v1368 = vpop.xlane.xlu0 %1367
      %v1369 = vsel %vm293, %v1297, 0.0
      %1370 = vadd.xlane.f32.xlu0 %v1369
      %v1371 = vpop.xlane.xlu0 %1370
      %v1372 = vsel %vm293, %v1298, 0.0
      %1373 = vadd.xlane.f32.xlu0 %v1372
      %v1374 = vpop.xlane.xlu0 %1373
      %v1375 = vsel %vm293, %v1299, 0.0
      %1376 = vadd.xlane.f32.xlu0 %v1375
      %v1377 = vpop.xlane.xlu0 %1376
      %v1378 = vsel %vm293, %v1300, 0.0
      %1379 = vadd.xlane.f32.xlu0 %v1378
      %v1380 = vpop.xlane.xlu0 %1379
      %v1381 = vsel %vm293, %v1301, 0.0
      %1382 = vadd.xlane.f32.xlu0 %v1381
      %v1383 = vpop.xlane.xlu0 %1382
      %v1384 = vsel %vm293, %v1302, 0.0
      %1385 = vadd.xlane.f32.xlu0 %v1384
      %v1386 = vpop.xlane.xlu0 %1385
      %v1387 = vsel %vm293, %v1303, 0.0
      %1388 = vadd.xlane.f32.xlu0 %v1387
      %v1389 = vpop.xlane.xlu0 %1388
      %v1390 = vsel %vm293, %v1304, 0.0
      %1391 = vadd.xlane.f32.xlu0 %v1390
      %v1392 = vpop.xlane.xlu0 %1391
      %v1393 = vsel %vm293, %v1305, 0.0
      %1394 = vadd.xlane.f32.xlu0 %v1393
      %v1395 = vpop.xlane.xlu0 %1394
      %v1396 = vsel %vm293, %v1306, 0.0
      %1397 = vadd.xlane.f32.xlu0 %v1396
      %v1398 = vpop.xlane.xlu0 %1397
      %v1399 = vsel %vm293, %v1307, 0.0
      %1400 = vadd.xlane.f32.xlu0 %v1399
      %v1401 = vpop.xlane.xlu0 %1400
      %v1402 = vsel %vm293, %v1308, 0.0
      %1403 = vadd.xlane.f32.xlu0 %v1402
      %v1404 = vpop.xlane.xlu0 %1403
      %v1405 = vrcp.pop 32.0
      %v1406 = vmul.f32 %v1311, %v1405
      %v1407 = vmul.f32 %v1314, %v1405
      %v1408 = vmul.f32 %v1317, %v1405
      %v1409 = vmul.f32 %v1320, %v1405
      %v1410 = vmul.f32 %v1323, %v1405
      %v1411 = vmul.f32 %v1326, %v1405
      %v1412 = vmul.f32 %v1329, %v1405
      %v1413 = vmul.f32 %v1332, %v1405
      %v1414 = vmul.f32 %v1335, %v1405
      %v1415 = vmul.f32 %v1338, %v1405
      %v1416 = vmul.f32 %v1341, %v1405
      %v1417 = vmul.f32 %v1344, %v1405
      %v1418 = vmul.f32 %v1347, %v1405
      %v1419 = vmul.f32 %v1350, %v1405
      %v1420 = vmul.f32 %v1353, %v1405
      %v1421 = vmul.f32 %v1356, %v1405
      %v1422 = vmul.f32 %v1359, %v1405
      %v1423 = vmul.f32 %v1362, %v1405
      %v1424 = vmul.f32 %v1365, %v1405
      %v1425 = vmul.f32 %v1368, %v1405
      %v1426 = vmul.f32 %v1371, %v1405
      %v1427 = vmul.f32 %v1374, %v1405
      %v1428 = vmul.f32 %v1377, %v1405
      %v1429 = vmul.f32 %v1380, %v1405
      %v1430 = vmul.f32 %v1383, %v1405
      %v1431 = vmul.f32 %v1386, %v1405
      %v1432 = vmul.f32 %v1389, %v1405
      %v1433 = vmul.f32 %v1392, %v1405
      %v1434 = vmul.f32 %v1395, %v1405
      %v1435 = vmul.f32 %v1398, %v1405
      %v1436 = vmul.f32 %v1401, %v1405
      %v1437 = vmul.f32 %v1404, %v1405
      %v1438 = vsub.f32 %v1277, %v1406
      %v1439 = vsub.f32 %v1278, %v1407
      %v1440 = vsub.f32 %v1279, %v1408
      %v1441 = vsub.f32 %v1280, %v1409
      %v1442 = vsub.f32 %v1281, %v1410
      %v1443 = vsub.f32 %v1282, %v1411
      %v1444 = vsub.f32 %v1283, %v1412
      %v1445 = vsub.f32 %v1284, %v1413
      %v1446 = vsub.f32 %v1285, %v1414
      %v1447 = vsub.f32 %v1286, %v1415
      %v1448 = vsub.f32 %v1287, %v1416
      %v1449 = vsub.f32 %v1288, %v1417
      %v1450 = vsub.f32 %v1289, %v1418
      %v1451 = vsub.f32 %v1290, %v1419
      %v1452 = vsub.f32 %v1291, %v1420
      %v1453 = vsub.f32 %v1292, %v1421
      %v1454 = vsub.f32 %v1293, %v1422
      %v1455 = vsub.f32 %v1294, %v1423
      %v1456 = vsub.f32 %v1295, %v1424
      %v1457 = vsub.f32 %v1296, %v1425
      %v1458 = vsub.f32 %v1297, %v1426
      %v1459 = vsub.f32 %v1298, %v1427
      %v1460 = vsub.f32 %v1299, %v1428
      %v1461 = vsub.f32 %v1300, %v1429
      %v1462 = vsub.f32 %v1301, %v1430
      %v1463 = vsub.f32 %v1302, %v1431
      %v1464 = vsub.f32 %v1303, %v1432
      %v1465 = vsub.f32 %v1304, %v1433
      %v1466 = vsub.f32 %v1305, %v1434
      %v1467 = vsub.f32 %v1306, %v1435
      %v1468 = vsub.f32 %v1307, %v1436
      %v1469 = vsub.f32 %v1308, %v1437
      %v1470 = vmul.f32 %v1438, %v1438
      %v1471 = vmul.f32 %v1439, %v1439
      %v1472 = vmul.f32 %v1440, %v1440
      %v1473 = vmul.f32 %v1441, %v1441
      %v1474 = vmul.f32 %v1442, %v1442
      %v1475 = vmul.f32 %v1443, %v1443
      %v1476 = vmul.f32 %v1444, %v1444
      %v1477 = vmul.f32 %v1445, %v1445
      %v1478 = vmul.f32 %v1446, %v1446
      %v1479 = vmul.f32 %v1447, %v1447
      %v1480 = vmul.f32 %v1448, %v1448
      %v1481 = vmul.f32 %v1449, %v1449
      %v1482 = vmul.f32 %v1450, %v1450
      %v1483 = vmul.f32 %v1451, %v1451
      %v1484 = vmul.f32 %v1452, %v1452
      %v1485 = vmul.f32 %v1453, %v1453
      %v1486 = vmul.f32 %v1454, %v1454
      %v1487 = vmul.f32 %v1455, %v1455
      %v1488 = vmul.f32 %v1456, %v1456
      %v1489 = vmul.f32 %v1457, %v1457
      %v1490 = vmul.f32 %v1458, %v1458
      %v1491 = vmul.f32 %v1459, %v1459
      %v1492 = vmul.f32 %v1460, %v1460
      %v1493 = vmul.f32 %v1461, %v1461
      %v1494 = vmul.f32 %v1462, %v1462
      %v1495 = vmul.f32 %v1463, %v1463
      %v1496 = vmul.f32 %v1464, %v1464
      %v1497 = vmul.f32 %v1465, %v1465
      %v1498 = vmul.f32 %v1466, %v1466
      %v1499 = vmul.f32 %v1467, %v1467
      %v1500 = vmul.f32 %v1468, %v1468
      %v1501 = vmul.f32 %v1469, %v1469
      %v1502 = vsel %vm293, %v1470, 0.0
      %1503 = vadd.xlane.f32.xlu0 %v1502
      %v1504 = vpop.xlane.xlu0 %1503
      %v1505 = vsel %vm293, %v1471, 0.0
      %1506 = vadd.xlane.f32.xlu0 %v1505
      %v1507 = vpop.xlane.xlu0 %1506
      %v1508 = vsel %vm293, %v1472, 0.0
      %1509 = vadd.xlane.f32.xlu0 %v1508
      %v1510 = vpop.xlane.xlu0 %1509
      %v1511 = vsel %vm293, %v1473, 0.0
      %1512 = vadd.xlane.f32.xlu0 %v1511
      %v1513 = vpop.xlane.xlu0 %1512
      %v1514 = vsel %vm293, %v1474, 0.0
      %1515 = vadd.xlane.f32.xlu0 %v1514
      %v1516 = vpop.xlane.xlu0 %1515
      %v1517 = vsel %vm293, %v1475, 0.0
      %1518 = vadd.xlane.f32.xlu0 %v1517
      %v1519 = vpop.xlane.xlu0 %1518
      %v1520 = vsel %vm293, %v1476, 0.0
      %1521 = vadd.xlane.f32.xlu0 %v1520
      %v1522 = vpop.xlane.xlu0 %1521
      %v1523 = vsel %vm293, %v1477, 0.0
      %1524 = vadd.xlane.f32.xlu0 %v1523
      %v1525 = vpop.xlane.xlu0 %1524
      %v1526 = vsel %vm293, %v1478, 0.0
      %1527 = vadd.xlane.f32.xlu0 %v1526
      %v1528 = vpop.xlane.xlu0 %1527
      %v1529 = vsel %vm293, %v1479, 0.0
      %1530 = vadd.xlane.f32.xlu0 %v1529
      %v1531 = vpop.xlane.xlu0 %1530
      %v1532 = vsel %vm293, %v1480, 0.0
      %1533 = vadd.xlane.f32.xlu0 %v1532
      %v1534 = vpop.xlane.xlu0 %1533
      %v1535 = vsel %vm293, %v1481, 0.0
      %1536 = vadd.xlane.f32.xlu0 %v1535
      %v1537 = vpop.xlane.xlu0 %1536
      %v1538 = vsel %vm293, %v1482, 0.0
      %1539 = vadd.xlane.f32.xlu0 %v1538
      %v1540 = vpop.xlane.xlu0 %1539
      %v1541 = vsel %vm293, %v1483, 0.0
      %1542 = vadd.xlane.f32.xlu0 %v1541
      %v1543 = vpop.xlane.xlu0 %1542
      %v1544 = vsel %vm293, %v1484, 0.0
      %1545 = vadd.xlane.f32.xlu0 %v1544
      %v1546 = vpop.xlane.xlu0 %1545
      %v1547 = vsel %vm293, %v1485, 0.0
      %1548 = vadd.xlane.f32.xlu0 %v1547
      %v1549 = vpop.xlane.xlu0 %1548
      %v1550 = vsel %vm293, %v1486, 0.0
      %1551 = vadd.xlane.f32.xlu0 %v1550
      %v1552 = vpop.xlane.xlu0 %1551
      %v1553 = vsel %vm293, %v1487, 0.0
      %1554 = vadd.xlane.f32.xlu0 %v1553
      %v1555 = vpop.xlane.xlu0 %1554
      %v1556 = vsel %vm293, %v1488, 0.0
      %1557 = vadd.xlane.f32.xlu0 %v1556
      %v1558 = vpop.xlane.xlu0 %1557
      %v1559 = vsel %vm293, %v1489, 0.0
      %1560 = vadd.xlane.f32.xlu0 %v1559
      %v1561 = vpop.xlane.xlu0 %1560
      %v1562 = vsel %vm293, %v1490, 0.0
      %1563 = vadd.xlane.f32.xlu0 %v1562
      %v1564 = vpop.xlane.xlu0 %1563
      %v1565 = vsel %vm293, %v1491, 0.0
      %1566 = vadd.xlane.f32.xlu0 %v1565
      %v1567 = vpop.xlane.xlu0 %1566
      %v1568 = vsel %vm293, %v1492, 0.0
      %1569 = vadd.xlane.f32.xlu0 %v1568
      %v1570 = vpop.xlane.xlu0 %1569
      %v1571 = vsel %vm293, %v1493, 0.0
      %1572 = vadd.xlane.f32.xlu0 %v1571
      %v1573 = vpop.xlane.xlu0 %1572
      %v1574 = vsel %vm293, %v1494, 0.0
      %1575 = vadd.xlane.f32.xlu0 %v1574
      %v1576 = vpop.xlane.xlu0 %1575
      %v1577 = vsel %vm293, %v1495, 0.0
      %1578 = vadd.xlane.f32.xlu0 %v1577
      %v1579 = vpop.xlane.xlu0 %1578
      %v1580 = vsel %vm293, %v1496, 0.0
      %1581 = vadd.xlane.f32.xlu0 %v1580
      %v1582 = vpop.xlane.xlu0 %1581
      %v1583 = vsel %vm293, %v1497, 0.0
      %1584 = vadd.xlane.f32.xlu0 %v1583
      %v1585 = vpop.xlane.xlu0 %1584
      %v1586 = vsel %vm293, %v1498, 0.0
      %1587 = vadd.xlane.f32.xlu0 %v1586
      %v1588 = vpop.xlane.xlu0 %1587
      %v1589 = vsel %vm293, %v1499, 0.0
      %1590 = vadd.xlane.f32.xlu0 %v1589
      %v1591 = vpop.xlane.xlu0 %1590
      %v1592 = vsel %vm293, %v1500, 0.0
      %1593 = vadd.xlane.f32.xlu0 %v1592
      %v1594 = vpop.xlane.xlu0 %1593
      %v1595 = vsel %vm293, %v1501, 0.0
      %1596 = vadd.xlane.f32.xlu0 %v1595
      %v1597 = vpop.xlane.xlu0 %1596
      %v1598 = vmul.f32 %v1504, %v1405
      %v1599 = vmul.f32 %v1507, %v1405
      %v1600 = vmul.f32 %v1510, %v1405
      %v1601 = vmul.f32 %v1513, %v1405
      %v1602 = vmul.f32 %v1516, %v1405
      %v1603 = vmul.f32 %v1519, %v1405
      %v1604 = vmul.f32 %v1522, %v1405
      %v1605 = vmul.f32 %v1525, %v1405
      %v1606 = vmul.f32 %v1528, %v1405
      %v1607 = vmul.f32 %v1531, %v1405
      %v1608 = vmul.f32 %v1534, %v1405
      %v1609 = vmul.f32 %v1537, %v1405
      %v1610 = vmul.f32 %v1540, %v1405
      %v1611 = vmul.f32 %v1543, %v1405
      %v1612 = vmul.f32 %v1546, %v1405
      %v1613 = vmul.f32 %v1549, %v1405
      %v1614 = vmul.f32 %v1552, %v1405
      %v1615 = vmul.f32 %v1555, %v1405
      %v1616 = vmul.f32 %v1558, %v1405
      %v1617 = vmul.f32 %v1561, %v1405
      %v1618 = vmul.f32 %v1564, %v1405
      %v1619 = vmul.f32 %v1567, %v1405
      %v1620 = vmul.f32 %v1570, %v1405
      %v1621 = vmul.f32 %v1573, %v1405
      %v1622 = vmul.f32 %v1576, %v1405
      %v1623 = vmul.f32 %v1579, %v1405
      %v1624 = vmul.f32 %v1582, %v1405
      %v1625 = vmul.f32 %v1585, %v1405
      %v1626 = vmul.f32 %v1588, %v1405
      %v1627 = vmul.f32 %v1591, %v1405
      %v1628 = vmul.f32 %v1594, %v1405
      %v1629 = vmul.f32 %v1597, %v1405
      %v1630 = vadd.f32 %v1598, 1e-05
      %v1631 = vadd.f32 %v1599, 1e-05
      %v1632 = vadd.f32 %v1600, 1e-05
      %v1633 = vadd.f32 %v1601, 1e-05
      %v1634 = vadd.f32 %v1602, 1e-05
      %v1635 = vadd.f32 %v1603, 1e-05
      %v1636 = vadd.f32 %v1604, 1e-05
      %v1637 = vadd.f32 %v1605, 1e-05
      %v1638 = vadd.f32 %v1606, 1e-05
      %v1639 = vadd.f32 %v1607, 1e-05
      %v1640 = vadd.f32 %v1608, 1e-05
      %v1641 = vadd.f32 %v1609, 1e-05
      %v1642 = vadd.f32 %v1610, 1e-05
      %v1643 = vadd.f32 %v1611, 1e-05
      %v1644 = vadd.f32 %v1612, 1e-05
      %v1645 = vadd.f32 %v1613, 1e-05
      %v1646 = vadd.f32 %v1614, 1e-05
      %v1647 = vadd.f32 %v1615, 1e-05
      %v1648 = vadd.f32 %v1616, 1e-05
      %v1649 = vadd.f32 %v1617, 1e-05
      %v1650 = vadd.f32 %v1618, 1e-05
      %v1651 = vadd.f32 %v1619, 1e-05
      %v1652 = vadd.f32 %v1620, 1e-05
      %v1653 = vadd.f32 %v1621, 1e-05
      %v1654 = vadd.f32 %v1622, 1e-05
      %v1655 = vadd.f32 %v1623, 1e-05
      %v1656 = vadd.f32 %v1624, 1e-05
      %v1657 = vadd.f32 %v1625, 1e-05
      %v1658 = vadd.f32 %v1626, 1e-05
      %v1659 = vadd.f32 %v1627, 1e-05
      %v1660 = vadd.f32 %v1628, 1e-05
      %v1661 = vadd.f32 %v1629, 1e-05
      %v1662 = vrsqrt.pop %v1630
      %v1663 = vrsqrt.pop %v1631
      %v1664 = vrsqrt.pop %v1632
      %v1665 = vrsqrt.pop %v1633
      %v1666 = vrsqrt.pop %v1634
      %v1667 = vrsqrt.pop %v1635
      %v1668 = vrsqrt.pop %v1636
      %v1669 = vrsqrt.pop %v1637
      %v1670 = vrsqrt.pop %v1638
      %v1671 = vrsqrt.pop %v1639
      %v1672 = vrsqrt.pop %v1640
      %v1673 = vrsqrt.pop %v1641
      %v1674 = vrsqrt.pop %v1642
      %v1675 = vrsqrt.pop %v1643
      %v1676 = vrsqrt.pop %v1644
      %v1677 = vrsqrt.pop %v1645
      %v1678 = vrsqrt.pop %v1646
      %v1679 = vrsqrt.pop %v1647
      %v1680 = vrsqrt.pop %v1648
      %v1681 = vrsqrt.pop %v1649
      %v1682 = vrsqrt.pop %v1650
      %v1683 = vrsqrt.pop %v1651
      %v1684 = vrsqrt.pop %v1652
      %v1685 = vrsqrt.pop %v1653
      %v1686 = vrsqrt.pop %v1654
      %v1687 = vrsqrt.pop %v1655
      %v1688 = vrsqrt.pop %v1656
      %v1689 = vrsqrt.pop %v1657
      %v1690 = vrsqrt.pop %v1658
      %v1691 = vrsqrt.pop %v1659
      %v1692 = vrsqrt.pop %v1660
      %v1693 = vrsqrt.pop %v1661
      %v1694 = vmul.f32 %v1438, %v1662
      %v1695 = vmul.f32 %v1439, %v1663
      %v1696 = vmul.f32 %v1440, %v1664
      %v1697 = vmul.f32 %v1441, %v1665
      %v1698 = vmul.f32 %v1442, %v1666
      %v1699 = vmul.f32 %v1443, %v1667
      %v1700 = vmul.f32 %v1444, %v1668
      %v1701 = vmul.f32 %v1445, %v1669
      %v1702 = vmul.f32 %v1446, %v1670
      %v1703 = vmul.f32 %v1447, %v1671
      %v1704 = vmul.f32 %v1448, %v1672
      %v1705 = vmul.f32 %v1449, %v1673
      %v1706 = vmul.f32 %v1450, %v1674
      %v1707 = vmul.f32 %v1451, %v1675
      %v1708 = vmul.f32 %v1452, %v1676
      %v1709 = vmul.f32 %v1453, %v1677
      %v1710 = vmul.f32 %v1454, %v1678
      %v1711 = vmul.f32 %v1455, %v1679
      %v1712 = vmul.f32 %v1456, %v1680
      %v1713 = vmul.f32 %v1457, %v1681
      %v1714 = vmul.f32 %v1458, %v1682
      %v1715 = vmul.f32 %v1459, %v1683
      %v1716 = vmul.f32 %v1460, %v1684
      %v1717 = vmul.f32 %v1461, %v1685
      %v1718 = vmul.f32 %v1462, %v1686
      %v1719 = vmul.f32 %v1463, %v1687
      %v1720 = vmul.f32 %v1464, %v1688
      %v1721 = vmul.f32 %v1465, %v1689
      %v1722 = vmul.f32 %v1466, %v1690
      %v1723 = vmul.f32 %v1467, %v1691
      %v1724 = vmul.f32 %v1468, %v1692
      %v1725 = vmul.f32 %v1469, %v1693
      %v1727 = vlaneseq
      %v1728 = vshrl.u32 %v1727, 7
      %v1729 = vsub.s32 0, %v1728
      %v1730 = vrot.slane %v838, %v1729
      %v1732 = vmul.f32 %v1694, %v1730
      %v1733 = vmul.f32 %v1695, %v1730
      %v1734 = vmul.f32 %v1696, %v1730
      %v1735 = vmul.f32 %v1697, %v1730
      %v1736 = vmul.f32 %v1698, %v1730
      %v1737 = vmul.f32 %v1699, %v1730
      %v1738 = vmul.f32 %v1700, %v1730
      %v1739 = vmul.f32 %v1701, %v1730
      %v1740 = vmul.f32 %v1702, %v1730
      %v1741 = vmul.f32 %v1703, %v1730
      %v1742 = vmul.f32 %v1704, %v1730
      %v1743 = vmul.f32 %v1705, %v1730
      %v1744 = vmul.f32 %v1706, %v1730
      %v1745 = vmul.f32 %v1707, %v1730
      %v1746 = vmul.f32 %v1708, %v1730
      %v1747 = vmul.f32 %v1709, %v1730
      %v1748 = vmul.f32 %v1710, %v1730
      %v1749 = vmul.f32 %v1711, %v1730
      %v1750 = vmul.f32 %v1712, %v1730
      %v1751 = vmul.f32 %v1713, %v1730
      %v1752 = vmul.f32 %v1714, %v1730
      %v1753 = vmul.f32 %v1715, %v1730
      %v1754 = vmul.f32 %v1716, %v1730
      %v1755 = vmul.f32 %v1717, %v1730
      %v1756 = vmul.f32 %v1718, %v1730
      %v1757 = vmul.f32 %v1719, %v1730
      %v1758 = vmul.f32 %v1720, %v1730
      %v1759 = vmul.f32 %v1721, %v1730
      %v1760 = vmul.f32 %v1722, %v1730
      %v1761 = vmul.f32 %v1723, %v1730
      %v1762 = vmul.f32 %v1724, %v1730
      %v1763 = vmul.f32 %v1725, %v1730
      %v1765 = vlaneseq
      %v1766 = vshrl.u32 %v1765, 7
      %v1767 = vsub.s32 0, %v1766
      %v1768 = vrot.slane %v839, %v1767
      %v1770 = vadd.f32 %v1732, %v1768
      %v1771 = vadd.f32 %v1733, %v1768
      %v1772 = vadd.f32 %v1734, %v1768
      %v1773 = vadd.f32 %v1735, %v1768
      %v1774 = vadd.f32 %v1736, %v1768
      %v1775 = vadd.f32 %v1737, %v1768
      %v1776 = vadd.f32 %v1738, %v1768
      %v1777 = vadd.f32 %v1739, %v1768
      %v1778 = vadd.f32 %v1740, %v1768
      %v1779 = vadd.f32 %v1741, %v1768
      %v1780 = vadd.f32 %v1742, %v1768
      %v1781 = vadd.f32 %v1743, %v1768
      %v1782 = vadd.f32 %v1744, %v1768
      %v1783 = vadd.f32 %v1745, %v1768
      %v1784 = vadd.f32 %v1746, %v1768
      %v1785 = vadd.f32 %v1747, %v1768
      %v1786 = vadd.f32 %v1748, %v1768
      %v1787 = vadd.f32 %v1749, %v1768
      %v1788 = vadd.f32 %v1750, %v1768
      %v1789 = vadd.f32 %v1751, %v1768
      %v1790 = vadd.f32 %v1752, %v1768
      %v1791 = vadd.f32 %v1753, %v1768
      %v1792 = vadd.f32 %v1754, %v1768
      %v1793 = vadd.f32 %v1755, %v1768
      %v1794 = vadd.f32 %v1756, %v1768
      %v1795 = vadd.f32 %v1757, %v1768
      %v1796 = vadd.f32 %v1758, %v1768
      %v1797 = vadd.f32 %v1759, %v1768
      %v1798 = vadd.f32 %v1760, %v1768
      %v1799 = vadd.f32 %v1761, %v1768
      %v1800 = vadd.f32 %v1762, %v1768
      %v1801 = vadd.f32 %v1763, %v1768
      %1802 = vst.msk [vmem:[%s258] sm:$0xff] %vm293, %v1770
      %1803 = vst.msk [vmem:[%s258 + $0x8] sm:$0xff] %vm293, %v1771
      %1804 = vst.msk [vmem:[%s258 + $0x10] sm:$0xff] %vm293, %v1772
      %1805 = vst.msk [vmem:[%s258 + $0x18] sm:$0xff] %vm293, %v1773
      %1806 = vst.msk [vmem:[%s258 + $0x20] sm:$0xff] %vm293, %v1774
      %1807 = vst.msk [vmem:[%s258 + $0x28] sm:$0xff] %vm293, %v1775
      %1808 = vst.msk [vmem:[%s258 + $0x30] sm:$0xff] %vm293, %v1776
      %1809 = vst.msk [vmem:[%s258 + $0x38] sm:$0xff] %vm293, %v1777
      %1810 = vst.msk [vmem:[%s258 + $0x40] sm:$0xff] %vm293, %v1778
      %1811 = vst.msk [vmem:[%s258 + $0x48] sm:$0xff] %vm293, %v1779
      %1812 = vst.msk [vmem:[%s258 + $0x50] sm:$0xff] %vm293, %v1780
      %1813 = vst.msk [vmem:[%s258 + $0x58] sm:$0xff] %vm293, %v1781
      %1814 = vst.msk [vmem:[%s258 + $0x60] sm:$0xff] %vm293, %v1782
      %1815 = vst.msk [vmem:[%s258 + $0x68] sm:$0xff] %vm293, %v1783
      %1816 = vst.msk [vmem:[%s258 + $0x70] sm:$0xff] %vm293, %v1784
      %1817 = vst.msk [vmem:[%s258 + $0x78] sm:$0xff] %vm293, %v1785
      %1818 = vst.msk [vmem:[%s258 + $0x80] sm:$0xff] %vm293, %v1786
      %1819 = vst.msk [vmem:[%s258 + $0x88] sm:$0xff] %vm293, %v1787
      %1820 = vst.msk [vmem:[%s258 + $0x90] sm:$0xff] %vm293, %v1788
      %1821 = vst.msk [vmem:[%s258 + $0x98] sm:$0xff] %vm293, %v1789
      %1822 = vst.msk [vmem:[%s258 + $0xa0] sm:$0xff] %vm293, %v1790
      %1823 = vst.msk [vmem:[%s258 + $0xa8] sm:$0xff] %vm293, %v1791
      %1824 = vst.msk [vmem:[%s258 + $0xb0] sm:$0xff] %vm293, %v1792
      %1825 = vst.msk [vmem:[%s258 + $0xb8] sm:$0xff] %vm293, %v1793
      %1826 = vst.msk [vmem:[%s258 + $0xc0] sm:$0xff] %vm293, %v1794
      %1827 = vst.msk [vmem:[%s258 + $0xc8] sm:$0xff] %vm293, %v1795
      %1828 = vst.msk [vmem:[%s258 + $0xd0] sm:$0xff] %vm293, %v1796
      %1829 = vst.msk [vmem:[%s258 + $0xd8] sm:$0xff] %vm293, %v1797
      %1830 = vst.msk [vmem:[%s258 + $0xe0] sm:$0xff] %vm293, %v1798
      %1831 = vst.msk [vmem:[%s258 + $0xe8] sm:$0xff] %vm293, %v1799
      %1832 = vst.msk [vmem:[%s258 + $0xf0] sm:$0xff] %vm293, %v1800
      %1833 = vst.msk [vmem:[%s258 + $0xf8] sm:$0xff] %vm293, %v1801
      %v1834 = vld [vmem:[%s1] sm:$0xff]
      %v1835 = vld [vmem:[%s1 + $0x8] sm:$0xff]
      %v1836 = vld [vmem:[%s1 + $0x10] sm:$0xff]
      %v1837 = vld [vmem:[%s1 + $0x18] sm:$0xff]
      %v1838 = vld [vmem:[%s1 + $0x20] sm:$0xff]
      %v1839 = vld [vmem:[%s1 + $0x28] sm:$0xff]
      %v1840 = vld [vmem:[%s1 + $0x30] sm:$0xff]
      %v1841 = vld [vmem:[%s1 + $0x38] sm:$0xff]
      %v1842 = vld [vmem:[%s1 + $0x40] sm:$0xff]
      %v1843 = vld [vmem:[%s1 + $0x48] sm:$0xff]
      %v1844 = vld [vmem:[%s1 + $0x50] sm:$0xff]
      %v1845 = vld [vmem:[%s1 + $0x58] sm:$0xff]
      %v1846 = vld [vmem:[%s1 + $0x60] sm:$0xff]
      %v1847 = vld [vmem:[%s1 + $0x68] sm:$0xff]
      %v1848 = vld [vmem:[%s1 + $0x70] sm:$0xff]
      %v1849 = vld [vmem:[%s1 + $0x78] sm:$0xff]
      %v1850 = vld [vmem:[%s1 + $0x80] sm:$0xff]
      %v1851 = vld [vmem:[%s1 + $0x88] sm:$0xff]
      %v1852 = vld [vmem:[%s1 + $0x90] sm:$0xff]
      %v1853 = vld [vmem:[%s1 + $0x98] sm:$0xff]
      %v1854 = vld [vmem:[%s1 + $0xa0] sm:$0xff]
      %v1855 = vld [vmem:[%s1 + $0xa8] sm:$0xff]
      %v1856 = vld [vmem:[%s1 + $0xb0] sm:$0xff]
      %v1857 = vld [vmem:[%s1 + $0xb8] sm:$0xff]
      %v1858 = vld [vmem:[%s1 + $0xc0] sm:$0xff]
      %v1859 = vld [vmem:[%s1 + $0xc8] sm:$0xff]
      %v1860 = vld [vmem:[%s1 + $0xd0] sm:$0xff]
      %v1861 = vld [vmem:[%s1 + $0xd8] sm:$0xff]
      %v1862 = vld [vmem:[%s1 + $0xe0] sm:$0xff]
      %v1863 = vld [vmem:[%s1 + $0xe8] sm:$0xff]
      %v1864 = vld [vmem:[%s1 + $0xf0] sm:$0xff]
      %v1865 = vld [vmem:[%s1 + $0xf8] sm:$0xff]
      %v1866 = vld [vmem:[%s366] sm:$0xff]
      %v1867 = vld [vmem:[%s366 + $0x8] sm:$0xff]
      %v1868 = vld [vmem:[%s366 + $0x10] sm:$0xff]
      %v1869 = vld [vmem:[%s366 + $0x18] sm:$0xff]
      %v1870 = vld [vmem:[%s366 + $0x20] sm:$0xff]
      %v1871 = vld [vmem:[%s366 + $0x28] sm:$0xff]
      %v1872 = vld [vmem:[%s366 + $0x30] sm:$0xff]
      %v1873 = vld [vmem:[%s366 + $0x38] sm:$0xff]
      %v1874 = vld [vmem:[%s366 + $0x40] sm:$0xff]
      %v1875 = vld [vmem:[%s366 + $0x48] sm:$0xff]
      %v1876 = vld [vmem:[%s366 + $0x50] sm:$0xff]
      %v1877 = vld [vmem:[%s366 + $0x58] sm:$0xff]
      %v1878 = vld [vmem:[%s366 + $0x60] sm:$0xff]
      %v1879 = vld [vmem:[%s366 + $0x68] sm:$0xff]
      %v1880 = vld [vmem:[%s366 + $0x70] sm:$0xff]
      %v1881 = vld [vmem:[%s366 + $0x78] sm:$0xff]
      %v1882 = vld [vmem:[%s366 + $0x80] sm:$0xff]
      %v1883 = vld [vmem:[%s366 + $0x88] sm:$0xff]
      %v1884 = vld [vmem:[%s366 + $0x90] sm:$0xff]
      %v1885 = vld [vmem:[%s366 + $0x98] sm:$0xff]
      %v1886 = vld [vmem:[%s366 + $0xa0] sm:$0xff]
      %v1887 = vld [vmem:[%s366 + $0xa8] sm:$0xff]
      %v1888 = vld [vmem:[%s366 + $0xb0] sm:$0xff]
      %v1889 = vld [vmem:[%s366 + $0xb8] sm:$0xff]
      %v1890 = vld [vmem:[%s366 + $0xc0] sm:$0xff]
      %v1891 = vld [vmem:[%s366 + $0xc8] sm:$0xff]
      %v1892 = vld [vmem:[%s366 + $0xd0] sm:$0xff]
      %v1893 = vld [vmem:[%s366 + $0xd8] sm:$0xff]
      %v1894 = vld [vmem:[%s366 + $0xe0] sm:$0xff]
      %v1895 = vld [vmem:[%s366 + $0xe8] sm:$0xff]
      %v1896 = vld [vmem:[%s366 + $0xf0] sm:$0xff]
      %v1897 = vld [vmem:[%s366 + $0xf8] sm:$0xff]
      %v1898 = vpack.c.bf16 %v1867, %v1866
      %v1899 = vpack.c.bf16 %v1869, %v1868
      %v1900 = vpack.c.bf16 %v1871, %v1870
      %v1901 = vpack.c.bf16 %v1873, %v1872
      %v1902 = vpack.c.bf16 %v1875, %v1874
      %v1903 = vpack.c.bf16 %v1877, %v1876
      %v1904 = vpack.c.bf16 %v1879, %v1878
      %v1905 = vpack.c.bf16 %v1881, %v1880
      %v1906 = vpack.c.bf16 %v1883, %v1882
      %v1907 = vpack.c.bf16 %v1885, %v1884
      %v1908 = vpack.c.bf16 %v1887, %v1886
      %v1909 = vpack.c.bf16 %v1889, %v1888
      %v1910 = vpack.c.bf16 %v1891, %v1890
      %v1911 = vpack.c.bf16 %v1893, %v1892
      %v1912 = vpack.c.bf16 %v1895, %v1894
      %v1913 = vpack.c.bf16 %v1897, %v1896
      %v1946 = vunpack.c.l.b16 %v1834
      %v1947 = vunpack.c.h.b16 %v1834
      %v1948 = vunpack.c.l.b16 %v1835
      %v1949 = vunpack.c.h.b16 %v1835
      %v1950 = vunpack.c.l.b16 %v1836
      %v1951 = vunpack.c.h.b16 %v1836
      %v1952 = vunpack.c.l.b16 %v1837
      %v1953 = vunpack.c.h.b16 %v1837
      %v1954 = vunpack.c.l.b16 %v1838
      %v1955 = vunpack.c.h.b16 %v1838
      %v1956 = vunpack.c.l.b16 %v1839
      %v1957 = vunpack.c.h.b16 %v1839
      %v1958 = vunpack.c.l.b16 %v1840
      %v1959 = vunpack.c.h.b16 %v1840
      %v1960 = vunpack.c.l.b16 %v1841
      %v1961 = vunpack.c.h.b16 %v1841
      %v1962 = vunpack.c.l.b16 %v1842
      %v1963 = vunpack.c.h.b16 %v1842
      %v1964 = vunpack.c.l.b16 %v1843
      %v1965 = vunpack.c.h.b16 %v1843
      %v1966 = vunpack.c.l.b16 %v1844
      %v1967 = vunpack.c.h.b16 %v1844
      %v1968 = vunpack.c.l.b16 %v1845
      %v1969 = vunpack.c.h.b16 %v1845
      %v1970 = vunpack.c.l.b16 %v1846
      %v1971 = vunpack.c.h.b16 %v1846
      %v1972 = vunpack.c.l.b16 %v1847
      %v1973 = vunpack.c.h.b16 %v1847
      %v1974 = vunpack.c.l.b16 %v1848
      %v1975 = vunpack.c.h.b16 %v1848
      %v1976 = vunpack.c.l.b16 %v1849
      %v1977 = vunpack.c.h.b16 %v1849
      %v1978 = vunpack.c.l.b16 %v1850
      %v1979 = vunpack.c.h.b16 %v1850
      %v1980 = vunpack.c.l.b16 %v1851
      %v1981 = vunpack.c.h.b16 %v1851
      %v1982 = vunpack.c.l.b16 %v1852
      %v1983 = vunpack.c.h.b16 %v1852
      %v1984 = vunpack.c.l.b16 %v1853
      %v1985 = vunpack.c.h.b16 %v1853
      %v1986 = vunpack.c.l.b16 %v1854
      %v1987 = vunpack.c.h.b16 %v1854
      %v1988 = vunpack.c.l.b16 %v1855
      %v1989 = vunpack.c.h.b16 %v1855
      %v1990 = vunpack.c.l.b16 %v1856
      %v1991 = vunpack.c.h.b16 %v1856
      %v1992 = vunpack.c.l.b16 %v1857
      %v1993 = vunpack.c.h.b16 %v1857
      %v1994 = vunpack.c.l.b16 %v1858
      %v1995 = vunpack.c.h.b16 %v1858
      %v1996 = vunpack.c.l.b16 %v1859
      %v1997 = vunpack.c.h.b16 %v1859
      %v1998 = vunpack.c.l.b16 %v1860
      %v1999 = vunpack.c.h.b16 %v1860
      %v2000 = vunpack.c.l.b16 %v1861
      %v2001 = vunpack.c.h.b16 %v1861
      %v2002 = vunpack.c.l.b16 %v1862
      %v2003 = vunpack.c.h.b16 %v1862
      %v2004 = vunpack.c.l.b16 %v1863
      %v2005 = vunpack.c.h.b16 %v1863
      %v2006 = vunpack.c.l.b16 %v1864
      %v2007 = vunpack.c.h.b16 %v1864
      %v2008 = vunpack.c.l.b16 %v1865
      %v2009 = vunpack.c.h.b16 %v1865
      %v2010 = vpack.c.b16 %v1948, %v1946
      %v2011 = vpack.c.b16 %v1949, %v1947
      %v2012 = vpack.c.b16 %v1952, %v1950
      %v2013 = vpack.c.b16 %v1953, %v1951
      %v2014 = vpack.c.b16 %v1956, %v1954
      %v2015 = vpack.c.b16 %v1957, %v1955
      %v2016 = vpack.c.b16 %v1960, %v1958
      %v2017 = vpack.c.b16 %v1961, %v1959
      %v2018 = vpack.c.b16 %v1964, %v1962
      %v2019 = vpack.c.b16 %v1965, %v1963
      %v2020 = vpack.c.b16 %v1968, %v1966
      %v2021 = vpack.c.b16 %v1969, %v1967
      %v2022 = vpack.c.b16 %v1972, %v1970
      %v2023 = vpack.c.b16 %v1973, %v1971
      %v2024 = vpack.c.b16 %v1976, %v1974
      %v2025 = vpack.c.b16 %v1977, %v1975
      %v2026 = vpack.c.b16 %v1980, %v1978
      %v2027 = vpack.c.b16 %v1981, %v1979
      %v2028 = vpack.c.b16 %v1984, %v1982
      %v2029 = vpack.c.b16 %v1985, %v1983
      %v2030 = vpack.c.b16 %v1988, %v1986
      %v2031 = vpack.c.b16 %v1989, %v1987
      %v2032 = vpack.c.b16 %v1992, %v1990
      %v2033 = vpack.c.b16 %v1993, %v1991
      %v2034 = vpack.c.b16 %v1996, %v1994
      %v2035 = vpack.c.b16 %v1997, %v1995
      %v2036 = vpack.c.b16 %v2000, %v1998
      %v2037 = vpack.c.b16 %v2001, %v1999
      %v2038 = vpack.c.b16 %v2004, %v2002
      %v2039 = vpack.c.b16 %v2005, %v2003
      %v2040 = vpack.c.b16 %v2008, %v2006
      %v2041 = vpack.c.b16 %v2009, %v2007
      %2074 = vmatprep.subr.bf16.mxu0 0
      %2075 = vmatpush1.bf16.msra.mxu0 %v1905
      %2076 = vmatprep.subr.bf16.mxu0 0
      %2077 = vmatpush1.bf16.msra.mxu0 %v1904
      %2078 = vmatprep.subr.bf16.mxu0 0
      %2079 = vmatpush1.bf16.msra.mxu0 %v1903
      %2080 = vmatprep.subr.bf16.mxu0 0
      %2081 = vmatpush1.bf16.msra.mxu0 %v1902
      %2082 = vmatprep.subr.bf16.mxu0 0
      %2083 = vmatpush1.bf16.msra.mxu0 %v1901
      %2084 = vmatprep.subr.bf16.mxu0 0
      %2085 = vmatpush1.bf16.msra.mxu0 %v1900
      %2086 = vmatprep.subr.bf16.mxu0 0
      %2087 = vmatpush1.bf16.msra.mxu0 %v1899
      %2088 = vmatprep.subr.bf16.mxu0 0
      %2089 = vmatpush1.bf16.msra.mxu0 %v1898
      %2090 = vmatprep.subr.bf16.mxu0 0
      %2091 = vmatpush2.bf16.msra.mxu0 %v1913
      %2092 = vmatprep.subr.bf16.mxu0 0
      %2093 = vmatpush2.bf16.msra.mxu0 %v1912
      %2094 = vmatprep.subr.bf16.mxu0 0
      %2095 = vmatpush2.bf16.msra.mxu0 %v1911
      %2096 = vmatprep.subr.bf16.mxu0 0
      %2097 = vmatpush2.bf16.msra.mxu0 %v1910
      %2098 = vmatprep.subr.bf16.mxu0 0
      %2099 = vmatpush2.bf16.msra.mxu0 %v1909
      %2100 = vmatprep.subr.bf16.mxu0 0
      %2101 = vmatpush2.bf16.msra.mxu0 %v1908
      %2102 = vmatprep.subr.bf16.mxu0 0
      %2103 = vmatpush2.bf16.msra.mxu0 %v1907
      %2104 = vmatprep.subr.bf16.mxu0 0
      %2105 = vmatpush2.bf16.msra.mxu0 %v1906
      %2106 = vmatprep.mubr.bf16.mxu0 %v2011
      %2107 = vmatmul.mubr.bf16.gmra.mxu0 %v2010
      %v2108 = vpop.f32.mrf.mxu0
      %v2109 = vadd.f32 0.0, %v2108
      %v2110 = vpop.f32.mrf.mxu0
      %v2111 = vpop.f32.mrf.mxu0
      %v2112 = vadd.f32 0.0, %v2111
      %v2113 = vpop.f32.mrf.mxu0
      %2114 = vmatprep.mubr.bf16.mxu0 %v2013
      %2115 = vmatmul.mubr.bf16.gmra.mxu0 %v2012
      %v2116 = vpop.f32.mrf.mxu0
      %v2117 = vadd.f32 0.0, %v2116
      %v2118 = vpop.f32.mrf.mxu0
      %v2119 = vpop.f32.mrf.mxu0
      %v2120 = vadd.f32 0.0, %v2119
      %v2121 = vpop.f32.mrf.mxu0
      %2122 = vmatprep.mubr.bf16.mxu0 %v2015
      %2123 = vmatmul.mubr.bf16.gmra.mxu0 %v2014
      %v2124 = vpop.f32.mrf.mxu0
      %v2125 = vadd.f32 0.0, %v2124
      %v2126 = vpop.f32.mrf.mxu0
      %v2127 = vpop.f32.mrf.mxu0
      %v2128 = vadd.f32 0.0, %v2127
      %v2129 = vpop.f32.mrf.mxu0
      %2130 = vmatprep.mubr.bf16.mxu0 %v2017
      %2131 = vmatmul.mubr.bf16.gmra.mxu0 %v2016
      %v2132 = vpop.f32.mrf.mxu0
      %v2133 = vadd.f32 0.0, %v2132
      %v2134 = vpop.f32.mrf.mxu0
      %v2135 = vpop.f32.mrf.mxu0
      %v2136 = vadd.f32 0.0, %v2135
      %v2137 = vpop.f32.mrf.mxu0
      %2138 = vmatprep.mubr.bf16.mxu0 %v2019
      %2139 = vmatmul.mubr.bf16.gmra.mxu0 %v2018
      %v2140 = vpop.f32.mrf.mxu0
      %v2141 = vadd.f32 0.0, %v2140
      %v2142 = vpop.f32.mrf.mxu0
      %v2143 = vpop.f32.mrf.mxu0
      %v2144 = vadd.f32 0.0, %v2143
      %v2145 = vpop.f32.mrf.mxu0
      %2146 = vmatprep.mubr.bf16.mxu0 %v2021
      %2147 = vmatmul.mubr.bf16.gmra.mxu0 %v2020
      %v2148 = vpop.f32.mrf.mxu0
      %v2149 = vadd.f32 0.0, %v2148
      %v2150 = vpop.f32.mrf.mxu0
      %v2151 = vpop.f32.mrf.mxu0
      %v2152 = vadd.f32 0.0, %v2151
      %v2153 = vpop.f32.mrf.mxu0
      %2154 = vmatprep.mubr.bf16.mxu0 %v2023
      %2155 = vmatmul.mubr.bf16.gmra.mxu0 %v2022
      %v2156 = vpop.f32.mrf.mxu0
      %v2157 = vadd.f32 0.0, %v2156
      %v2158 = vpop.f32.mrf.mxu0
      %v2159 = vpop.f32.mrf.mxu0
      %v2160 = vadd.f32 0.0, %v2159
      %v2161 = vpop.f32.mrf.mxu0
      %2162 = vmatprep.mubr.bf16.mxu0 %v2025
      %2163 = vmatmul.mubr.bf16.gmra.mxu0 %v2024
      %v2164 = vpop.f32.mrf.mxu0
      %v2165 = vadd.f32 0.0, %v2164
      %v2166 = vpop.f32.mrf.mxu0
      %v2167 = vpop.f32.mrf.mxu0
      %v2168 = vadd.f32 0.0, %v2167
      %v2169 = vpop.f32.mrf.mxu0
      %2170 = vmatprep.mubr.bf16.mxu0 %v2027
      %2171 = vmatmul.mubr.bf16.gmra.mxu0 %v2026
      %v2172 = vpop.f32.mrf.mxu0
      %v2173 = vadd.f32 0.0, %v2172
      %v2174 = vpop.f32.mrf.mxu0
      %v2175 = vpop.f32.mrf.mxu0
      %v2176 = vadd.f32 0.0, %v2175
      %v2177 = vpop.f32.mrf.mxu0
      %2178 = vmatprep.mubr.bf16.mxu0 %v2029
      %2179 = vmatmul.mubr.bf16.gmra.mxu0 %v2028
      %v2180 = vpop.f32.mrf.mxu0
      %v2181 = vadd.f32 0.0, %v2180
      %v2182 = vpop.f32.mrf.mxu0
      %v2183 = vpop.f32.mrf.mxu0
      %v2184 = vadd.f32 0.0, %v2183
      %v2185 = vpop.f32.mrf.mxu0
      %2186 = vmatprep.mubr.bf16.mxu0 %v2031
      %2187 = vmatmul.mubr.bf16.gmra.mxu0 %v2030
      %v2188 = vpop.f32.mrf.mxu0
      %v2189 = vadd.f32 0.0, %v2188
      %v2190 = vpop.f32.mrf.mxu0
      %v2191 = vpop.f32.mrf.mxu0
      %v2192 = vadd.f32 0.0, %v2191
      %v2193 = vpop.f32.mrf.mxu0
      %2194 = vmatprep.mubr.bf16.mxu0 %v2033
      %2195 = vmatmul.mubr.bf16.gmra.mxu0 %v2032
      %v2196 = vpop.f32.mrf.mxu0
      %v2197 = vadd.f32 0.0, %v2196
      %v2198 = vpop.f32.mrf.mxu0
      %v2199 = vpop.f32.mrf.mxu0
      %v2200 = vadd.f32 0.0, %v2199
      %v2201 = vpop.f32.mrf.mxu0
      %2202 = vmatprep.mubr.bf16.mxu0 %v2035
      %2203 = vmatmul.mubr.bf16.gmra.mxu0 %v2034
      %v2204 = vpop.f32.mrf.mxu0
      %v2205 = vadd.f32 0.0, %v2204
      %v2206 = vpop.f32.mrf.mxu0
      %v2207 = vpop.f32.mrf.mxu0
      %v2208 = vadd.f32 0.0, %v2207
      %v2209 = vpop.f32.mrf.mxu0
      %2210 = vmatprep.mubr.bf16.mxu0 %v2037
      %2211 = vmatmul.mubr.bf16.gmra.mxu0 %v2036
      %v2212 = vpop.f32.mrf.mxu0
      %v2213 = vadd.f32 0.0, %v2212
      %v2214 = vpop.f32.mrf.mxu0
      %v2215 = vpop.f32.mrf.mxu0
      %v2216 = vadd.f32 0.0, %v2215
      %v2217 = vpop.f32.mrf.mxu0
      %2218 = vmatprep.mubr.bf16.mxu0 %v2039
      %2219 = vmatmul.mubr.bf16.gmra.mxu0 %v2038
      %v2220 = vpop.f32.mrf.mxu0
      %v2221 = vadd.f32 0.0, %v2220
      %v2222 = vpop.f32.mrf.mxu0
      %v2223 = vpop.f32.mrf.mxu0
      %v2224 = vadd.f32 0.0, %v2223
      %v2225 = vpop.f32.mrf.mxu0
      %2226 = vmatprep.mubr.bf16.mxu0 %v2041
      %2227 = vmatmul.mubr.bf16.gmra.mxu0 %v2040
      %v2228 = vpop.f32.mrf.mxu0
      %v2229 = vadd.f32 0.0, %v2228
      %v2230 = vpop.f32.mrf.mxu0
      %v2231 = vpop.f32.mrf.mxu0
      %v2232 = vadd.f32 0.0, %v2231
      %v2233 = vpop.f32.mrf.mxu0
      %2234 = vdwg.mxu0
      %v2235 = vlaneseq
      %v2236 = vshrl.u32 %v2235, 7
      %v2237 = vsub.s32 1, %v2236
      %v2238 = vrot.slane %v837, %v2237
      %v2239 = vmul.f32 %v2109, %v2238
      %v2240 = vmul.f32 %v2112, %v2238
      %v2241 = vmul.f32 %v2117, %v2238
      %v2242 = vmul.f32 %v2120, %v2238
      %v2243 = vmul.f32 %v2125, %v2238
      %v2244 = vmul.f32 %v2128, %v2238
      %v2245 = vmul.f32 %v2133, %v2238
      %v2246 = vmul.f32 %v2136, %v2238
      %v2247 = vmul.f32 %v2141, %v2238
      %v2248 = vmul.f32 %v2144, %v2238
      %v2249 = vmul.f32 %v2149, %v2238
      %v2250 = vmul.f32 %v2152, %v2238
      %v2251 = vmul.f32 %v2157, %v2238
      %v2252 = vmul.f32 %v2160, %v2238
      %v2253 = vmul.f32 %v2165, %v2238
      %v2254 = vmul.f32 %v2168, %v2238
      %v2255 = vmul.f32 %v2173, %v2238
      %v2256 = vmul.f32 %v2176, %v2238
      %v2257 = vmul.f32 %v2181, %v2238
      %v2258 = vmul.f32 %v2184, %v2238
      %v2259 = vmul.f32 %v2189, %v2238
      %v2260 = vmul.f32 %v2192, %v2238
      %v2261 = vmul.f32 %v2197, %v2238
      %v2262 = vmul.f32 %v2200, %v2238
      %v2263 = vmul.f32 %v2205, %v2238
      %v2264 = vmul.f32 %v2208, %v2238
      %v2265 = vmul.f32 %v2213, %v2238
      %v2266 = vmul.f32 %v2216, %v2238
      %v2267 = vmul.f32 %v2221, %v2238
      %v2268 = vmul.f32 %v2224, %v2238
      %v2269 = vmul.f32 %v2229, %v2238
      %v2270 = vmul.f32 %v2232, %v2238
      %v2271 = vadd.f32 %v2239, %v1866
      %v2272 = vadd.f32 %v2240, %v1867
      %v2273 = vadd.f32 %v2241, %v1868
      %v2274 = vadd.f32 %v2242, %v1869
      %v2275 = vadd.f32 %v2243, %v1870
      %v2276 = vadd.f32 %v2244, %v1871
      %v2277 = vadd.f32 %v2245, %v1872
      %v2278 = vadd.f32 %v2246, %v1873
      %v2279 = vadd.f32 %v2247, %v1874
      %v2280 = vadd.f32 %v2248, %v1875
      %v2281 = vadd.f32 %v2249, %v1876
      %v2282 = vadd.f32 %v2250, %v1877
      %v2283 = vadd.f32 %v2251, %v1878
      %v2284 = vadd.f32 %v2252, %v1879
      %v2285 = vadd.f32 %v2253, %v1880
      %v2286 = vadd.f32 %v2254, %v1881
      %v2287 = vadd.f32 %v2255, %v1882
      %v2288 = vadd.f32 %v2256, %v1883
      %v2289 = vadd.f32 %v2257, %v1884
      %v2290 = vadd.f32 %v2258, %v1885
      %v2291 = vadd.f32 %v2259, %v1886
      %v2292 = vadd.f32 %v2260, %v1887
      %v2293 = vadd.f32 %v2261, %v1888
      %v2294 = vadd.f32 %v2262, %v1889
      %v2295 = vadd.f32 %v2263, %v1890
      %v2296 = vadd.f32 %v2264, %v1891
      %v2297 = vadd.f32 %v2265, %v1892
      %v2298 = vadd.f32 %v2266, %v1893
      %v2299 = vadd.f32 %v2267, %v1894
      %v2300 = vadd.f32 %v2268, %v1895
      %v2301 = vadd.f32 %v2269, %v1896
      %v2302 = vadd.f32 %v2270, %v1897
      %v2303 = vsel %vm293, %v2271, 0.0
      %2304 = vadd.xlane.f32.xlu0 %v2303
      %v2305 = vpop.xlane.xlu0 %2304
      %v2306 = vsel %vm293, %v2272, 0.0
      %2307 = vadd.xlane.f32.xlu0 %v2306
      %v2308 = vpop.xlane.xlu0 %2307
      %v2309 = vsel %vm293, %v2273, 0.0
      %2310 = vadd.xlane.f32.xlu0 %v2309
      %v2311 = vpop.xlane.xlu0 %2310
      %v2312 = vsel %vm293, %v2274, 0.0
      %2313 = vadd.xlane.f32.xlu0 %v2312
      %v2314 = vpop.xlane.xlu0 %2313
      %v2315 = vsel %vm293, %v2275, 0.0
      %2316 = vadd.xlane.f32.xlu0 %v2315
      %v2317 = vpop.xlane.xlu0 %2316
      %v2318 = vsel %vm293, %v2276, 0.0
      %2319 = vadd.xlane.f32.xlu0 %v2318
      %v2320 = vpop.xlane.xlu0 %2319
      %v2321 = vsel %vm293, %v2277, 0.0
      %2322 = vadd.xlane.f32.xlu0 %v2321
      %v2323 = vpop.xlane.xlu0 %2322
      %v2324 = vsel %vm293, %v2278, 0.0
      %2325 = vadd.xlane.f32.xlu0 %v2324
      %v2326 = vpop.xlane.xlu0 %2325
      %v2327 = vsel %vm293, %v2279, 0.0
      %2328 = vadd.xlane.f32.xlu0 %v2327
      %v2329 = vpop.xlane.xlu0 %2328
      %v2330 = vsel %vm293, %v2280, 0.0
      %2331 = vadd.xlane.f32.xlu0 %v2330
      %v2332 = vpop.xlane.xlu0 %2331
      %v2333 = vsel %vm293, %v2281, 0.0
      %2334 = vadd.xlane.f32.xlu0 %v2333
      %v2335 = vpop.xlane.xlu0 %2334
      %v2336 = vsel %vm293, %v2282, 0.0
      %2337 = vadd.xlane.f32.xlu0 %v2336
      %v2338 = vpop.xlane.xlu0 %2337
      %v2339 = vsel %vm293, %v2283, 0.0
      %2340 = vadd.xlane.f32.xlu0 %v2339
      %v2341 = vpop.xlane.xlu0 %2340
      %v2342 = vsel %vm293, %v2284, 0.0
      %2343 = vadd.xlane.f32.xlu0 %v2342
      %v2344 = vpop.xlane.xlu0 %2343
      %v2345 = vsel %vm293, %v2285, 0.0
      %2346 = vadd.xlane.f32.xlu0 %v2345
      %v2347 = vpop.xlane.xlu0 %2346
      %v2348 = vsel %vm293, %v2286, 0.0
      %2349 = vadd.xlane.f32.xlu0 %v2348
      %v2350 = vpop.xlane.xlu0 %2349
      %v2351 = vsel %vm293, %v2287, 0.0
      %2352 = vadd.xlane.f32.xlu0 %v2351
      %v2353 = vpop.xlane.xlu0 %2352
      %v2354 = vsel %vm293, %v2288, 0.0
      %2355 = vadd.xlane.f32.xlu0 %v2354
      %v2356 = vpop.xlane.xlu0 %2355
      %v2357 = vsel %vm293, %v2289, 0.0
      %2358 = vadd.xlane.f32.xlu0 %v2357
      %v2359 = vpop.xlane.xlu0 %2358
      %v2360 = vsel %vm293, %v2290, 0.0
      %2361 = vadd.xlane.f32.xlu0 %v2360
      %v2362 = vpop.xlane.xlu0 %2361
      %v2363 = vsel %vm293, %v2291, 0.0
      %2364 = vadd.xlane.f32.xlu0 %v2363
      %v2365 = vpop.xlane.xlu0 %2364
      %v2366 = vsel %vm293, %v2292, 0.0
      %2367 = vadd.xlane.f32.xlu0 %v2366
      %v2368 = vpop.xlane.xlu0 %2367
      %v2369 = vsel %vm293, %v2293, 0.0
      %2370 = vadd.xlane.f32.xlu0 %v2369
      %v2371 = vpop.xlane.xlu0 %2370
      %v2372 = vsel %vm293, %v2294, 0.0
      %2373 = vadd.xlane.f32.xlu0 %v2372
      %v2374 = vpop.xlane.xlu0 %2373
      %v2375 = vsel %vm293, %v2295, 0.0
      %2376 = vadd.xlane.f32.xlu0 %v2375
      %v2377 = vpop.xlane.xlu0 %2376
      %v2378 = vsel %vm293, %v2296, 0.0
      %2379 = vadd.xlane.f32.xlu0 %v2378
      %v2380 = vpop.xlane.xlu0 %2379
      %v2381 = vsel %vm293, %v2297, 0.0
      %2382 = vadd.xlane.f32.xlu0 %v2381
      %v2383 = vpop.xlane.xlu0 %2382
      %v2384 = vsel %vm293, %v2298, 0.0
      %2385 = vadd.xlane.f32.xlu0 %v2384
      %v2386 = vpop.xlane.xlu0 %2385
      %v2387 = vsel %vm293, %v2299, 0.0
      %2388 = vadd.xlane.f32.xlu0 %v2387
      %v2389 = vpop.xlane.xlu0 %2388
      %v2390 = vsel %vm293, %v2300, 0.0
      %2391 = vadd.xlane.f32.xlu0 %v2390
      %v2392 = vpop.xlane.xlu0 %2391
      %v2393 = vsel %vm293, %v2301, 0.0
      %2394 = vadd.xlane.f32.xlu0 %v2393
      %v2395 = vpop.xlane.xlu0 %2394
      %v2396 = vsel %vm293, %v2302, 0.0
      %2397 = vadd.xlane.f32.xlu0 %v2396
      %v2398 = vpop.xlane.xlu0 %2397
      %v2399 = vmul.f32 %v2305, %v1405
      %v2400 = vmul.f32 %v2308, %v1405
      %v2401 = vmul.f32 %v2311, %v1405
      %v2402 = vmul.f32 %v2314, %v1405
      %v2403 = vmul.f32 %v2317, %v1405
      %v2404 = vmul.f32 %v2320, %v1405
      %v2405 = vmul.f32 %v2323, %v1405
      %v2406 = vmul.f32 %v2326, %v1405
      %v2407 = vmul.f32 %v2329, %v1405
      %v2408 = vmul.f32 %v2332, %v1405
      %v2409 = vmul.f32 %v2335, %v1405
      %v2410 = vmul.f32 %v2338, %v1405
      %v2411 = vmul.f32 %v2341, %v1405
      %v2412 = vmul.f32 %v2344, %v1405
      %v2413 = vmul.f32 %v2347, %v1405
      %v2414 = vmul.f32 %v2350, %v1405
      %v2415 = vmul.f32 %v2353, %v1405
      %v2416 = vmul.f32 %v2356, %v1405
      %v2417 = vmul.f32 %v2359, %v1405
      %v2418 = vmul.f32 %v2362, %v1405
      %v2419 = vmul.f32 %v2365, %v1405
      %v2420 = vmul.f32 %v2368, %v1405
      %v2421 = vmul.f32 %v2371, %v1405
      %v2422 = vmul.f32 %v2374, %v1405
      %v2423 = vmul.f32 %v2377, %v1405
      %v2424 = vmul.f32 %v2380, %v1405
      %v2425 = vmul.f32 %v2383, %v1405
      %v2426 = vmul.f32 %v2386, %v1405
      %v2427 = vmul.f32 %v2389, %v1405
      %v2428 = vmul.f32 %v2392, %v1405
      %v2429 = vmul.f32 %v2395, %v1405
      %v2430 = vmul.f32 %v2398, %v1405
      %v2431 = vsub.f32 %v2271, %v2399
      %v2432 = vsub.f32 %v2272, %v2400
      %v2433 = vsub.f32 %v2273, %v2401
      %v2434 = vsub.f32 %v2274, %v2402
      %v2435 = vsub.f32 %v2275, %v2403
      %v2436 = vsub.f32 %v2276, %v2404
      %v2437 = vsub.f32 %v2277, %v2405
      %v2438 = vsub.f32 %v2278, %v2406
      %v2439 = vsub.f32 %v2279, %v2407
      %v2440 = vsub.f32 %v2280, %v2408
      %v2441 = vsub.f32 %v2281, %v2409
      %v2442 = vsub.f32 %v2282, %v2410
      %v2443 = vsub.f32 %v2283, %v2411
      %v2444 = vsub.f32 %v2284, %v2412
      %v2445 = vsub.f32 %v2285, %v2413
      %v2446 = vsub.f32 %v2286, %v2414
      %v2447 = vsub.f32 %v2287, %v2415
      %v2448 = vsub.f32 %v2288, %v2416
      %v2449 = vsub.f32 %v2289, %v2417
      %v2450 = vsub.f32 %v2290, %v2418
      %v2451 = vsub.f32 %v2291, %v2419
      %v2452 = vsub.f32 %v2292, %v2420
      %v2453 = vsub.f32 %v2293, %v2421
      %v2454 = vsub.f32 %v2294, %v2422
      %v2455 = vsub.f32 %v2295, %v2423
      %v2456 = vsub.f32 %v2296, %v2424
      %v2457 = vsub.f32 %v2297, %v2425
      %v2458 = vsub.f32 %v2298, %v2426
      %v2459 = vsub.f32 %v2299, %v2427
      %v2460 = vsub.f32 %v2300, %v2428
      %v2461 = vsub.f32 %v2301, %v2429
      %v2462 = vsub.f32 %v2302, %v2430
      %v2463 = vmul.f32 %v2431, %v2431
      %v2464 = vmul.f32 %v2432, %v2432
      %v2465 = vmul.f32 %v2433, %v2433
      %v2466 = vmul.f32 %v2434, %v2434
      %v2467 = vmul.f32 %v2435, %v2435
      %v2468 = vmul.f32 %v2436, %v2436
      %v2469 = vmul.f32 %v2437, %v2437
      %v2470 = vmul.f32 %v2438, %v2438
      %v2471 = vmul.f32 %v2439, %v2439
      %v2472 = vmul.f32 %v2440, %v2440
      %v2473 = vmul.f32 %v2441, %v2441
      %v2474 = vmul.f32 %v2442, %v2442
      %v2475 = vmul.f32 %v2443, %v2443
      %v2476 = vmul.f32 %v2444, %v2444
      %v2477 = vmul.f32 %v2445, %v2445
      %v2478 = vmul.f32 %v2446, %v2446
      %v2479 = vmul.f32 %v2447, %v2447
      %v2480 = vmul.f32 %v2448, %v2448
      %v2481 = vmul.f32 %v2449, %v2449
      %v2482 = vmul.f32 %v2450, %v2450
      %v2483 = vmul.f32 %v2451, %v2451
      %v2484 = vmul.f32 %v2452, %v2452
      %v2485 = vmul.f32 %v2453, %v2453
      %v2486 = vmul.f32 %v2454, %v2454
      %v2487 = vmul.f32 %v2455, %v2455
      %v2488 = vmul.f32 %v2456, %v2456
      %v2489 = vmul.f32 %v2457, %v2457
      %v2490 = vmul.f32 %v2458, %v2458
      %v2491 = vmul.f32 %v2459, %v2459
      %v2492 = vmul.f32 %v2460, %v2460
      %v2493 = vmul.f32 %v2461, %v2461
      %v2494 = vmul.f32 %v2462, %v2462
      %v2495 = vsel %vm293, %v2463, 0.0
      %2496 = vadd.xlane.f32.xlu0 %v2495
      %v2497 = vpop.xlane.xlu0 %2496
      %v2498 = vsel %vm293, %v2464, 0.0
      %2499 = vadd.xlane.f32.xlu0 %v2498
      %v2500 = vpop.xlane.xlu0 %2499
      %v2501 = vsel %vm293, %v2465, 0.0
      %2502 = vadd.xlane.f32.xlu0 %v2501
      %v2503 = vpop.xlane.xlu0 %2502
      %v2504 = vsel %vm293, %v2466, 0.0
      %2505 = vadd.xlane.f32.xlu0 %v2504
      %v2506 = vpop.xlane.xlu0 %2505
      %v2507 = vsel %vm293, %v2467, 0.0
      %2508 = vadd.xlane.f32.xlu0 %v2507
      %v2509 = vpop.xlane.xlu0 %2508
      %v2510 = vsel %vm293, %v2468, 0.0
      %2511 = vadd.xlane.f32.xlu0 %v2510
      %v2512 = vpop.xlane.xlu0 %2511
      %v2513 = vsel %vm293, %v2469, 0.0
      %2514 = vadd.xlane.f32.xlu0 %v2513
      %v2515 = vpop.xlane.xlu0 %2514
      %v2516 = vsel %vm293, %v2470, 0.0
      %2517 = vadd.xlane.f32.xlu0 %v2516
      %v2518 = vpop.xlane.xlu0 %2517
      %v2519 = vsel %vm293, %v2471, 0.0
      %2520 = vadd.xlane.f32.xlu0 %v2519
      %v2521 = vpop.xlane.xlu0 %2520
      %v2522 = vsel %vm293, %v2472, 0.0
      %2523 = vadd.xlane.f32.xlu0 %v2522
      %v2524 = vpop.xlane.xlu0 %2523
      %v2525 = vsel %vm293, %v2473, 0.0
      %2526 = vadd.xlane.f32.xlu0 %v2525
      %v2527 = vpop.xlane.xlu0 %2526
      %v2528 = vsel %vm293, %v2474, 0.0
      %2529 = vadd.xlane.f32.xlu0 %v2528
      %v2530 = vpop.xlane.xlu0 %2529
      %v2531 = vsel %vm293, %v2475, 0.0
      %2532 = vadd.xlane.f32.xlu0 %v2531
      %v2533 = vpop.xlane.xlu0 %2532
      %v2534 = vsel %vm293, %v2476, 0.0
      %2535 = vadd.xlane.f32.xlu0 %v2534
      %v2536 = vpop.xlane.xlu0 %2535
      %v2537 = vsel %vm293, %v2477, 0.0
      %2538 = vadd.xlane.f32.xlu0 %v2537
      %v2539 = vpop.xlane.xlu0 %2538
      %v2540 = vsel %vm293, %v2478, 0.0
      %2541 = vadd.xlane.f32.xlu0 %v2540
      %v2542 = vpop.xlane.xlu0 %2541
      %v2543 = vsel %vm293, %v2479, 0.0
      %2544 = vadd.xlane.f32.xlu0 %v2543
      %v2545 = vpop.xlane.xlu0 %2544
      %v2546 = vsel %vm293, %v2480, 0.0
      %2547 = vadd.xlane.f32.xlu0 %v2546
      %v2548 = vpop.xlane.xlu0 %2547
      %v2549 = vsel %vm293, %v2481, 0.0
      %2550 = vadd.xlane.f32.xlu0 %v2549
      %v2551 = vpop.xlane.xlu0 %2550
      %v2552 = vsel %vm293, %v2482, 0.0
      %2553 = vadd.xlane.f32.xlu0 %v2552
      %v2554 = vpop.xlane.xlu0 %2553
      %v2555 = vsel %vm293, %v2483, 0.0
      %2556 = vadd.xlane.f32.xlu0 %v2555
      %v2557 = vpop.xlane.xlu0 %2556
      %v2558 = vsel %vm293, %v2484, 0.0
      %2559 = vadd.xlane.f32.xlu0 %v2558
      %v2560 = vpop.xlane.xlu0 %2559
      %v2561 = vsel %vm293, %v2485, 0.0
      %2562 = vadd.xlane.f32.xlu0 %v2561
      %v2563 = vpop.xlane.xlu0 %2562
      %v2564 = vsel %vm293, %v2486, 0.0
      %2565 = vadd.xlane.f32.xlu0 %v2564
      %v2566 = vpop.xlane.xlu0 %2565
      %v2567 = vsel %vm293, %v2487, 0.0
      %2568 = vadd.xlane.f32.xlu0 %v2567
      %v2569 = vpop.xlane.xlu0 %2568
      %v2570 = vsel %vm293, %v2488, 0.0
      %2571 = vadd.xlane.f32.xlu0 %v2570
      %v2572 = vpop.xlane.xlu0 %2571
      %v2573 = vsel %vm293, %v2489, 0.0
      %2574 = vadd.xlane.f32.xlu0 %v2573
      %v2575 = vpop.xlane.xlu0 %2574
      %v2576 = vsel %vm293, %v2490, 0.0
      %2577 = vadd.xlane.f32.xlu0 %v2576
      %v2578 = vpop.xlane.xlu0 %2577
      %v2579 = vsel %vm293, %v2491, 0.0
      %2580 = vadd.xlane.f32.xlu0 %v2579
      %v2581 = vpop.xlane.xlu0 %2580
      %v2582 = vsel %vm293, %v2492, 0.0
      %2583 = vadd.xlane.f32.xlu0 %v2582
      %v2584 = vpop.xlane.xlu0 %2583
      %v2585 = vsel %vm293, %v2493, 0.0
      %2586 = vadd.xlane.f32.xlu0 %v2585
      %v2587 = vpop.xlane.xlu0 %2586
      %v2588 = vsel %vm293, %v2494, 0.0
      %2589 = vadd.xlane.f32.xlu0 %v2588
      %v2590 = vpop.xlane.xlu0 %2589
      %v2591 = vmul.f32 %v2497, %v1405
      %v2592 = vmul.f32 %v2500, %v1405
      %v2593 = vmul.f32 %v2503, %v1405
      %v2594 = vmul.f32 %v2506, %v1405
      %v2595 = vmul.f32 %v2509, %v1405
      %v2596 = vmul.f32 %v2512, %v1405
      %v2597 = vmul.f32 %v2515, %v1405
      %v2598 = vmul.f32 %v2518, %v1405
      %v2599 = vmul.f32 %v2521, %v1405
      %v2600 = vmul.f32 %v2524, %v1405
      %v2601 = vmul.f32 %v2527, %v1405
      %v2602 = vmul.f32 %v2530, %v1405
      %v2603 = vmul.f32 %v2533, %v1405
      %v2604 = vmul.f32 %v2536, %v1405
      %v2605 = vmul.f32 %v2539, %v1405
      %v2606 = vmul.f32 %v2542, %v1405
      %v2607 = vmul.f32 %v2545, %v1405
      %v2608 = vmul.f32 %v2548, %v1405
      %v2609 = vmul.f32 %v2551, %v1405
      %v2610 = vmul.f32 %v2554, %v1405
      %v2611 = vmul.f32 %v2557, %v1405
      %v2612 = vmul.f32 %v2560, %v1405
      %v2613 = vmul.f32 %v2563, %v1405
      %v2614 = vmul.f32 %v2566, %v1405
      %v2615 = vmul.f32 %v2569, %v1405
      %v2616 = vmul.f32 %v2572, %v1405
      %v2617 = vmul.f32 %v2575, %v1405
      %v2618 = vmul.f32 %v2578, %v1405
      %v2619 = vmul.f32 %v2581, %v1405
      %v2620 = vmul.f32 %v2584, %v1405
      %v2621 = vmul.f32 %v2587, %v1405
      %v2622 = vmul.f32 %v2590, %v1405
      %v2623 = vadd.f32 %v2591, 1e-05
      %v2624 = vadd.f32 %v2592, 1e-05
      %v2625 = vadd.f32 %v2593, 1e-05
      %v2626 = vadd.f32 %v2594, 1e-05
      %v2627 = vadd.f32 %v2595, 1e-05
      %v2628 = vadd.f32 %v2596, 1e-05
      %v2629 = vadd.f32 %v2597, 1e-05
      %v2630 = vadd.f32 %v2598, 1e-05
      %v2631 = vadd.f32 %v2599, 1e-05
      %v2632 = vadd.f32 %v2600, 1e-05
      %v2633 = vadd.f32 %v2601, 1e-05
      %v2634 = vadd.f32 %v2602, 1e-05
      %v2635 = vadd.f32 %v2603, 1e-05
      %v2636 = vadd.f32 %v2604, 1e-05
      %v2637 = vadd.f32 %v2605, 1e-05
      %v2638 = vadd.f32 %v2606, 1e-05
      %v2639 = vadd.f32 %v2607, 1e-05
      %v2640 = vadd.f32 %v2608, 1e-05
      %v2641 = vadd.f32 %v2609, 1e-05
      %v2642 = vadd.f32 %v2610, 1e-05
      %v2643 = vadd.f32 %v2611, 1e-05
      %v2644 = vadd.f32 %v2612, 1e-05
      %v2645 = vadd.f32 %v2613, 1e-05
      %v2646 = vadd.f32 %v2614, 1e-05
      %v2647 = vadd.f32 %v2615, 1e-05
      %v2648 = vadd.f32 %v2616, 1e-05
      %v2649 = vadd.f32 %v2617, 1e-05
      %v2650 = vadd.f32 %v2618, 1e-05
      %v2651 = vadd.f32 %v2619, 1e-05
      %v2652 = vadd.f32 %v2620, 1e-05
      %v2653 = vadd.f32 %v2621, 1e-05
      %v2654 = vadd.f32 %v2622, 1e-05
      %v2655 = vrsqrt.pop %v2623
      %v2656 = vrsqrt.pop %v2624
      %v2657 = vrsqrt.pop %v2625
      %v2658 = vrsqrt.pop %v2626
      %v2659 = vrsqrt.pop %v2627
      %v2660 = vrsqrt.pop %v2628
      %v2661 = vrsqrt.pop %v2629
      %v2662 = vrsqrt.pop %v2630
      %v2663 = vrsqrt.pop %v2631
      %v2664 = vrsqrt.pop %v2632
      %v2665 = vrsqrt.pop %v2633
      %v2666 = vrsqrt.pop %v2634
      %v2667 = vrsqrt.pop %v2635
      %v2668 = vrsqrt.pop %v2636
      %v2669 = vrsqrt.pop %v2637
      %v2670 = vrsqrt.pop %v2638
      %v2671 = vrsqrt.pop %v2639
      %v2672 = vrsqrt.pop %v2640
      %v2673 = vrsqrt.pop %v2641
      %v2674 = vrsqrt.pop %v2642
      %v2675 = vrsqrt.pop %v2643
      %v2676 = vrsqrt.pop %v2644
      %v2677 = vrsqrt.pop %v2645
      %v2678 = vrsqrt.pop %v2646
      %v2679 = vrsqrt.pop %v2647
      %v2680 = vrsqrt.pop %v2648
      %v2681 = vrsqrt.pop %v2649
      %v2682 = vrsqrt.pop %v2650
      %v2683 = vrsqrt.pop %v2651
      %v2684 = vrsqrt.pop %v2652
      %v2685 = vrsqrt.pop %v2653
      %v2686 = vrsqrt.pop %v2654
      %v2687 = vmul.f32 %v2431, %v2655
      %v2688 = vmul.f32 %v2432, %v2656
      %v2689 = vmul.f32 %v2433, %v2657
      %v2690 = vmul.f32 %v2434, %v2658
      %v2691 = vmul.f32 %v2435, %v2659
      %v2692 = vmul.f32 %v2436, %v2660
      %v2693 = vmul.f32 %v2437, %v2661
      %v2694 = vmul.f32 %v2438, %v2662
      %v2695 = vmul.f32 %v2439, %v2663
      %v2696 = vmul.f32 %v2440, %v2664
      %v2697 = vmul.f32 %v2441, %v2665
      %v2698 = vmul.f32 %v2442, %v2666
      %v2699 = vmul.f32 %v2443, %v2667
      %v2700 = vmul.f32 %v2444, %v2668
      %v2701 = vmul.f32 %v2445, %v2669
      %v2702 = vmul.f32 %v2446, %v2670
      %v2703 = vmul.f32 %v2447, %v2671
      %v2704 = vmul.f32 %v2448, %v2672
      %v2705 = vmul.f32 %v2449, %v2673
      %v2706 = vmul.f32 %v2450, %v2674
      %v2707 = vmul.f32 %v2451, %v2675
      %v2708 = vmul.f32 %v2452, %v2676
      %v2709 = vmul.f32 %v2453, %v2677
      %v2710 = vmul.f32 %v2454, %v2678
      %v2711 = vmul.f32 %v2455, %v2679
      %v2712 = vmul.f32 %v2456, %v2680
      %v2713 = vmul.f32 %v2457, %v2681
      %v2714 = vmul.f32 %v2458, %v2682
      %v2715 = vmul.f32 %v2459, %v2683
      %v2716 = vmul.f32 %v2460, %v2684
      %v2717 = vmul.f32 %v2461, %v2685
      %v2718 = vmul.f32 %v2462, %v2686
      %v2719 = vmul.f32 %v2687, %v1730
      %v2720 = vmul.f32 %v2688, %v1730
      %v2721 = vmul.f32 %v2689, %v1730
      %v2722 = vmul.f32 %v2690, %v1730
      %v2723 = vmul.f32 %v2691, %v1730
      %v2724 = vmul.f32 %v2692, %v1730
      %v2725 = vmul.f32 %v2693, %v1730
      %v2726 = vmul.f32 %v2694, %v1730
      %v2727 = vmul.f32 %v2695, %v1730
      %v2728 = vmul.f32 %v2696, %v1730
      %v2729 = vmul.f32 %v2697, %v1730
      %v2730 = vmul.f32 %v2698, %v1730
      %v2731 = vmul.f32 %v2699, %v1730
      %v2732 = vmul.f32 %v2700, %v1730
      %v2733 = vmul.f32 %v2701, %v1730
      %v2734 = vmul.f32 %v2702, %v1730
      %v2735 = vmul.f32 %v2703, %v1730
      %v2736 = vmul.f32 %v2704, %v1730
      %v2737 = vmul.f32 %v2705, %v1730
      %v2738 = vmul.f32 %v2706, %v1730
      %v2739 = vmul.f32 %v2707, %v1730
      %v2740 = vmul.f32 %v2708, %v1730
      %v2741 = vmul.f32 %v2709, %v1730
      %v2742 = vmul.f32 %v2710, %v1730
      %v2743 = vmul.f32 %v2711, %v1730
      %v2744 = vmul.f32 %v2712, %v1730
      %v2745 = vmul.f32 %v2713, %v1730
      %v2746 = vmul.f32 %v2714, %v1730
      %v2747 = vmul.f32 %v2715, %v1730
      %v2748 = vmul.f32 %v2716, %v1730
      %v2749 = vmul.f32 %v2717, %v1730
      %v2750 = vmul.f32 %v2718, %v1730
      %v2751 = vadd.f32 %v2719, %v1768
      %v2752 = vadd.f32 %v2720, %v1768
      %v2753 = vadd.f32 %v2721, %v1768
      %v2754 = vadd.f32 %v2722, %v1768
      %v2755 = vadd.f32 %v2723, %v1768
      %v2756 = vadd.f32 %v2724, %v1768
      %v2757 = vadd.f32 %v2725, %v1768
      %v2758 = vadd.f32 %v2726, %v1768
      %v2759 = vadd.f32 %v2727, %v1768
      %v2760 = vadd.f32 %v2728, %v1768
      %v2761 = vadd.f32 %v2729, %v1768
      %v2762 = vadd.f32 %v2730, %v1768
      %v2763 = vadd.f32 %v2731, %v1768
      %v2764 = vadd.f32 %v2732, %v1768
      %v2765 = vadd.f32 %v2733, %v1768
      %v2766 = vadd.f32 %v2734, %v1768
      %v2767 = vadd.f32 %v2735, %v1768
      %v2768 = vadd.f32 %v2736, %v1768
      %v2769 = vadd.f32 %v2737, %v1768
      %v2770 = vadd.f32 %v2738, %v1768
      %v2771 = vadd.f32 %v2739, %v1768
      %v2772 = vadd.f32 %v2740, %v1768
      %v2773 = vadd.f32 %v2741, %v1768
      %v2774 = vadd.f32 %v2742, %v1768
      %v2775 = vadd.f32 %v2743, %v1768
      %v2776 = vadd.f32 %v2744, %v1768
      %v2777 = vadd.f32 %v2745, %v1768
      %v2778 = vadd.f32 %v2746, %v1768
      %v2779 = vadd.f32 %v2747, %v1768
      %v2780 = vadd.f32 %v2748, %v1768
      %v2781 = vadd.f32 %v2749, %v1768
      %v2782 = vadd.f32 %v2750, %v1768
      %s2783 = scalar_lea.vmem %s258, 256
      %2784 = vst.msk [vmem:[%s2783] sm:$0xff] %vm293, %v2751
      %2785 = vst.msk [vmem:[%s2783 + $0x8] sm:$0xff] %vm293, %v2752
      %2786 = vst.msk [vmem:[%s2783 + $0x10] sm:$0xff] %vm293, %v2753
      %2787 = vst.msk [vmem:[%s2783 + $0x18] sm:$0xff] %vm293, %v2754
      %2788 = vst.msk [vmem:[%s2783 + $0x20] sm:$0xff] %vm293, %v2755
      %2789 = vst.msk [vmem:[%s2783 + $0x28] sm:$0xff] %vm293, %v2756
      %2790 = vst.msk [vmem:[%s2783 + $0x30] sm:$0xff] %vm293, %v2757
      %2791 = vst.msk [vmem:[%s2783 + $0x38] sm:$0xff] %vm293, %v2758
      %2792 = vst.msk [vmem:[%s2783 + $0x40] sm:$0xff] %vm293, %v2759
      %2793 = vst.msk [vmem:[%s2783 + $0x48] sm:$0xff] %vm293, %v2760
      %2794 = vst.msk [vmem:[%s2783 + $0x50] sm:$0xff] %vm293, %v2761
      %2795 = vst.msk [vmem:[%s2783 + $0x58] sm:$0xff] %vm293, %v2762
      %2796 = vst.msk [vmem:[%s2783 + $0x60] sm:$0xff] %vm293, %v2763
      %2797 = vst.msk [vmem:[%s2783 + $0x68] sm:$0xff] %vm293, %v2764
      %2798 = vst.msk [vmem:[%s2783 + $0x70] sm:$0xff] %vm293, %v2765
      %2799 = vst.msk [vmem:[%s2783 + $0x78] sm:$0xff] %vm293, %v2766
      %2800 = vst.msk [vmem:[%s2783 + $0x80] sm:$0xff] %vm293, %v2767
      %2801 = vst.msk [vmem:[%s2783 + $0x88] sm:$0xff] %vm293, %v2768
      %2802 = vst.msk [vmem:[%s2783 + $0x90] sm:$0xff] %vm293, %v2769
      %2803 = vst.msk [vmem:[%s2783 + $0x98] sm:$0xff] %vm293, %v2770
      %2804 = vst.msk [vmem:[%s2783 + $0xa0] sm:$0xff] %vm293, %v2771
      %2805 = vst.msk [vmem:[%s2783 + $0xa8] sm:$0xff] %vm293, %v2772
      %2806 = vst.msk [vmem:[%s2783 + $0xb0] sm:$0xff] %vm293, %v2773
      %2807 = vst.msk [vmem:[%s2783 + $0xb8] sm:$0xff] %vm293, %v2774
      %2808 = vst.msk [vmem:[%s2783 + $0xc0] sm:$0xff] %vm293, %v2775
      %2809 = vst.msk [vmem:[%s2783 + $0xc8] sm:$0xff] %vm293, %v2776
      %2810 = vst.msk [vmem:[%s2783 + $0xd0] sm:$0xff] %vm293, %v2777
      %2811 = vst.msk [vmem:[%s2783 + $0xd8] sm:$0xff] %vm293, %v2778
      %2812 = vst.msk [vmem:[%s2783 + $0xe0] sm:$0xff] %vm293, %v2779
      %2813 = vst.msk [vmem:[%s2783 + $0xe8] sm:$0xff] %vm293, %v2780
      %2814 = vst.msk [vmem:[%s2783 + $0xf0] sm:$0xff] %vm293, %v2781
      %2815 = vst.msk [vmem:[%s2783 + $0xf8] sm:$0xff] %vm293, %v2782
      %v2816 = vld [vmem:[%s1] sm:$0xff]
      %v2817 = vld [vmem:[%s1 + $0x8] sm:$0xff]
      %v2818 = vld [vmem:[%s1 + $0x10] sm:$0xff]
      %v2819 = vld [vmem:[%s1 + $0x18] sm:$0xff]
      %v2820 = vld [vmem:[%s1 + $0x20] sm:$0xff]
      %v2821 = vld [vmem:[%s1 + $0x28] sm:$0xff]
      %v2822 = vld [vmem:[%s1 + $0x30] sm:$0xff]
      %v2823 = vld [vmem:[%s1 + $0x38] sm:$0xff]
      %v2824 = vld [vmem:[%s1 + $0x40] sm:$0xff]
      %v2825 = vld [vmem:[%s1 + $0x48] sm:$0xff]
      %v2826 = vld [vmem:[%s1 + $0x50] sm:$0xff]
      %v2827 = vld [vmem:[%s1 + $0x58] sm:$0xff]
      %v2828 = vld [vmem:[%s1 + $0x60] sm:$0xff]
      %v2829 = vld [vmem:[%s1 + $0x68] sm:$0xff]
      %v2830 = vld [vmem:[%s1 + $0x70] sm:$0xff]
      %v2831 = vld [vmem:[%s1 + $0x78] sm:$0xff]
      %v2832 = vld [vmem:[%s1 + $0x80] sm:$0xff]
      %v2833 = vld [vmem:[%s1 + $0x88] sm:$0xff]
      %v2834 = vld [vmem:[%s1 + $0x90] sm:$0xff]
      %v2835 = vld [vmem:[%s1 + $0x98] sm:$0xff]
      %v2836 = vld [vmem:[%s1 + $0xa0] sm:$0xff]
      %v2837 = vld [vmem:[%s1 + $0xa8] sm:$0xff]
      %v2838 = vld [vmem:[%s1 + $0xb0] sm:$0xff]
      %v2839 = vld [vmem:[%s1 + $0xb8] sm:$0xff]
      %v2840 = vld [vmem:[%s1 + $0xc0] sm:$0xff]
      %v2841 = vld [vmem:[%s1 + $0xc8] sm:$0xff]
      %v2842 = vld [vmem:[%s1 + $0xd0] sm:$0xff]
      %v2843 = vld [vmem:[%s1 + $0xd8] sm:$0xff]
      %v2844 = vld [vmem:[%s1 + $0xe0] sm:$0xff]
      %v2845 = vld [vmem:[%s1 + $0xe8] sm:$0xff]
      %v2846 = vld [vmem:[%s1 + $0xf0] sm:$0xff]
      %v2847 = vld [vmem:[%s1 + $0xf8] sm:$0xff]
      %v2848 = vld [vmem:[%s470] sm:$0xff]
      %v2849 = vld [vmem:[%s470 + $0x8] sm:$0xff]
      %v2850 = vld [vmem:[%s470 + $0x10] sm:$0xff]
      %v2851 = vld [vmem:[%s470 + $0x18] sm:$0xff]
      %v2852 = vld [vmem:[%s470 + $0x20] sm:$0xff]
      %v2853 = vld [vmem:[%s470 + $0x28] sm:$0xff]
      %v2854 = vld [vmem:[%s470 + $0x30] sm:$0xff]
      %v2855 = vld [vmem:[%s470 + $0x38] sm:$0xff]
      %v2856 = vld [vmem:[%s470 + $0x40] sm:$0xff]
      %v2857 = vld [vmem:[%s470 + $0x48] sm:$0xff]
      %v2858 = vld [vmem:[%s470 + $0x50] sm:$0xff]
      %v2859 = vld [vmem:[%s470 + $0x58] sm:$0xff]
      %v2860 = vld [vmem:[%s470 + $0x60] sm:$0xff]
      %v2861 = vld [vmem:[%s470 + $0x68] sm:$0xff]
      %v2862 = vld [vmem:[%s470 + $0x70] sm:$0xff]
      %v2863 = vld [vmem:[%s470 + $0x78] sm:$0xff]
      %v2864 = vld [vmem:[%s470 + $0x80] sm:$0xff]
      %v2865 = vld [vmem:[%s470 + $0x88] sm:$0xff]
      %v2866 = vld [vmem:[%s470 + $0x90] sm:$0xff]
      %v2867 = vld [vmem:[%s470 + $0x98] sm:$0xff]
      %v2868 = vld [vmem:[%s470 + $0xa0] sm:$0xff]
      %v2869 = vld [vmem:[%s470 + $0xa8] sm:$0xff]
      %v2870 = vld [vmem:[%s470 + $0xb0] sm:$0xff]
      %v2871 = vld [vmem:[%s470 + $0xb8] sm:$0xff]
      %v2872 = vld [vmem:[%s470 + $0xc0] sm:$0xff]
      %v2873 = vld [vmem:[%s470 + $0xc8] sm:$0xff]
      %v2874 = vld [vmem:[%s470 + $0xd0] sm:$0xff]
      %v2875 = vld [vmem:[%s470 + $0xd8] sm:$0xff]
      %v2876 = vld [vmem:[%s470 + $0xe0] sm:$0xff]
      %v2877 = vld [vmem:[%s470 + $0xe8] sm:$0xff]
      %v2878 = vld [vmem:[%s470 + $0xf0] sm:$0xff]
      %v2879 = vld [vmem:[%s470 + $0xf8] sm:$0xff]
      %v2880 = vpack.c.bf16 %v2849, %v2848
      %v2881 = vpack.c.bf16 %v2851, %v2850
      %v2882 = vpack.c.bf16 %v2853, %v2852
      %v2883 = vpack.c.bf16 %v2855, %v2854
      %v2884 = vpack.c.bf16 %v2857, %v2856
      %v2885 = vpack.c.bf16 %v2859, %v2858
      %v2886 = vpack.c.bf16 %v2861, %v2860
      %v2887 = vpack.c.bf16 %v2863, %v2862
      %v2888 = vpack.c.bf16 %v2865, %v2864
      %v2889 = vpack.c.bf16 %v2867, %v2866
      %v2890 = vpack.c.bf16 %v2869, %v2868
      %v2891 = vpack.c.bf16 %v2871, %v2870
      %v2892 = vpack.c.bf16 %v2873, %v2872
      %v2893 = vpack.c.bf16 %v2875, %v2874
      %v2894 = vpack.c.bf16 %v2877, %v2876
      %v2895 = vpack.c.bf16 %v2879, %v2878
      %v2928 = vunpack.c.l.b16 %v2816
      %v2929 = vunpack.c.h.b16 %v2816
      %v2930 = vunpack.c.l.b16 %v2817
      %v2931 = vunpack.c.h.b16 %v2817
      %v2932 = vunpack.c.l.b16 %v2818
      %v2933 = vunpack.c.h.b16 %v2818
      %v2934 = vunpack.c.l.b16 %v2819
      %v2935 = vunpack.c.h.b16 %v2819
      %v2936 = vunpack.c.l.b16 %v2820
      %v2937 = vunpack.c.h.b16 %v2820
      %v2938 = vunpack.c.l.b16 %v2821
      %v2939 = vunpack.c.h.b16 %v2821
      %v2940 = vunpack.c.l.b16 %v2822
      %v2941 = vunpack.c.h.b16 %v2822
      %v2942 = vunpack.c.l.b16 %v2823
      %v2943 = vunpack.c.h.b16 %v2823
      %v2944 = vunpack.c.l.b16 %v2824
      %v2945 = vunpack.c.h.b16 %v2824
      %v2946 = vunpack.c.l.b16 %v2825
      %v2947 = vunpack.c.h.b16 %v2825
      %v2948 = vunpack.c.l.b16 %v2826
      %v2949 = vunpack.c.h.b16 %v2826
      %v2950 = vunpack.c.l.b16 %v2827
      %v2951 = vunpack.c.h.b16 %v2827
      %v2952 = vunpack.c.l.b16 %v2828
      %v2953 = vunpack.c.h.b16 %v2828
      %v2954 = vunpack.c.l.b16 %v2829
      %v2955 = vunpack.c.h.b16 %v2829
      %v2956 = vunpack.c.l.b16 %v2830
      %v2957 = vunpack.c.h.b16 %v2830
      %v2958 = vunpack.c.l.b16 %v2831
      %v2959 = vunpack.c.h.b16 %v2831
      %v2960 = vunpack.c.l.b16 %v2832
      %v2961 = vunpack.c.h.b16 %v2832
      %v2962 = vunpack.c.l.b16 %v2833
      %v2963 = vunpack.c.h.b16 %v2833
      %v2964 = vunpack.c.l.b16 %v2834
      %v2965 = vunpack.c.h.b16 %v2834
      %v2966 = vunpack.c.l.b16 %v2835
      %v2967 = vunpack.c.h.b16 %v2835
      %v2968 = vunpack.c.l.b16 %v2836
      %v2969 = vunpack.c.h.b16 %v2836
      %v2970 = vunpack.c.l.b16 %v2837
      %v2971 = vunpack.c.h.b16 %v2837
      %v2972 = vunpack.c.l.b16 %v2838
      %v2973 = vunpack.c.h.b16 %v2838
      %v2974 = vunpack.c.l.b16 %v2839
      %v2975 = vunpack.c.h.b16 %v2839
      %v2976 = vunpack.c.l.b16 %v2840
      %v2977 = vunpack.c.h.b16 %v2840
      %v2978 = vunpack.c.l.b16 %v2841
      %v2979 = vunpack.c.h.b16 %v2841
      %v2980 = vunpack.c.l.b16 %v2842
      %v2981 = vunpack.c.h.b16 %v2842
      %v2982 = vunpack.c.l.b16 %v2843
      %v2983 = vunpack.c.h.b16 %v2843
      %v2984 = vunpack.c.l.b16 %v2844
      %v2985 = vunpack.c.h.b16 %v2844
      %v2986 = vunpack.c.l.b16 %v2845
      %v2987 = vunpack.c.h.b16 %v2845
      %v2988 = vunpack.c.l.b16 %v2846
      %v2989 = vunpack.c.h.b16 %v2846
      %v2990 = vunpack.c.l.b16 %v2847
      %v2991 = vunpack.c.h.b16 %v2847
      %v2992 = vpack.c.b16 %v2930, %v2928
      %v2993 = vpack.c.b16 %v2931, %v2929
      %v2994 = vpack.c.b16 %v2934, %v2932
      %v2995 = vpack.c.b16 %v2935, %v2933
      %v2996 = vpack.c.b16 %v2938, %v2936
      %v2997 = vpack.c.b16 %v2939, %v2937
      %v2998 = vpack.c.b16 %v2942, %v2940
      %v2999 = vpack.c.b16 %v2943, %v2941
      %v3000 = vpack.c.b16 %v2946, %v2944
      %v3001 = vpack.c.b16 %v2947, %v2945
      %v3002 = vpack.c.b16 %v2950, %v2948
      %v3003 = vpack.c.b16 %v2951, %v2949
      %v3004 = vpack.c.b16 %v2954, %v2952
      %v3005 = vpack.c.b16 %v2955, %v2953
      %v3006 = vpack.c.b16 %v2958, %v2956
      %v3007 = vpack.c.b16 %v2959, %v2957
      %v3008 = vpack.c.b16 %v2962, %v2960
      %v3009 = vpack.c.b16 %v2963, %v2961
      %v3010 = vpack.c.b16 %v2966, %v2964
      %v3011 = vpack.c.b16 %v2967, %v2965
      %v3012 = vpack.c.b16 %v2970, %v2968
      %v3013 = vpack.c.b16 %v2971, %v2969
      %v3014 = vpack.c.b16 %v2974, %v2972
      %v3015 = vpack.c.b16 %v2975, %v2973
      %v3016 = vpack.c.b16 %v2978, %v2976
      %v3017 = vpack.c.b16 %v2979, %v2977
      %v3018 = vpack.c.b16 %v2982, %v2980
      %v3019 = vpack.c.b16 %v2983, %v2981
      %v3020 = vpack.c.b16 %v2986, %v2984
      %v3021 = vpack.c.b16 %v2987, %v2985
      %v3022 = vpack.c.b16 %v2990, %v2988
      %v3023 = vpack.c.b16 %v2991, %v2989
      %3056 = vmatprep.subr.bf16.mxu0 0
      %3057 = vmatpush1.bf16.msra.mxu0 %v2887
      %3058 = vmatprep.subr.bf16.mxu0 0
      %3059 = vmatpush1.bf16.msra.mxu0 %v2886
      %3060 = vmatprep.subr.bf16.mxu0 0
      %3061 = vmatpush1.bf16.msra.mxu0 %v2885
      %3062 = vmatprep.subr.bf16.mxu0 0
      %3063 = vmatpush1.bf16.msra.mxu0 %v2884
      %3064 = vmatprep.subr.bf16.mxu0 0
      %3065 = vmatpush1.bf16.msra.mxu0 %v2883
      %3066 = vmatprep.subr.bf16.mxu0 0
      %3067 = vmatpush1.bf16.msra.mxu0 %v2882
      %3068 = vmatprep.subr.bf16.mxu0 0
      %3069 = vmatpush1.bf16.msra.mxu0 %v2881
      %3070 = vmatprep.subr.bf16.mxu0 0
      %3071 = vmatpush1.bf16.msra.mxu0 %v2880
      %3072 = vmatprep.subr.bf16.mxu0 0
      %3073 = vmatpush2.bf16.msra.mxu0 %v2895
      %3074 = vmatprep.subr.bf16.mxu0 0
      %3075 = vmatpush2.bf16.msra.mxu0 %v2894
      %3076 = vmatprep.subr.bf16.mxu0 0
      %3077 = vmatpush2.bf16.msra.mxu0 %v2893
      %3078 = vmatprep.subr.bf16.mxu0 0
      %3079 = vmatpush2.bf16.msra.mxu0 %v2892
      %3080 = vmatprep.subr.bf16.mxu0 0
      %3081 = vmatpush2.bf16.msra.mxu0 %v2891
      %3082 = vmatprep.subr.bf16.mxu0 0
      %3083 = vmatpush2.bf16.msra.mxu0 %v2890
      %3084 = vmatprep.subr.bf16.mxu0 0
      %3085 = vmatpush2.bf16.msra.mxu0 %v2889
      %3086 = vmatprep.subr.bf16.mxu0 0
      %3087 = vmatpush2.bf16.msra.mxu0 %v2888
      %3088 = vmatprep.mubr.bf16.mxu0 %v2993
      %3089 = vmatmul.mubr.bf16.gmra.mxu0 %v2992
      %v3090 = vpop.f32.mrf.mxu0
      %v3091 = vadd.f32 0.0, %v3090
      %v3092 = vpop.f32.mrf.mxu0
      %v3093 = vpop.f32.mrf.mxu0
      %v3094 = vadd.f32 0.0, %v3093
      %v3095 = vpop.f32.mrf.mxu0
      %3096 = vmatprep.mubr.bf16.mxu0 %v2995
      %3097 = vmatmul.mubr.bf16.gmra.mxu0 %v2994
      %v3098 = vpop.f32.mrf.mxu0
      %v3099 = vadd.f32 0.0, %v3098
      %v3100 = vpop.f32.mrf.mxu0
      %v3101 = vpop.f32.mrf.mxu0
      %v3102 = vadd.f32 0.0, %v3101
      %v3103 = vpop.f32.mrf.mxu0
      %3104 = vmatprep.mubr.bf16.mxu0 %v2997
      %3105 = vmatmul.mubr.bf16.gmra.mxu0 %v2996
      %v3106 = vpop.f32.mrf.mxu0
      %v3107 = vadd.f32 0.0, %v3106
      %v3108 = vpop.f32.mrf.mxu0
      %v3109 = vpop.f32.mrf.mxu0
      %v3110 = vadd.f32 0.0, %v3109
      %v3111 = vpop.f32.mrf.mxu0
      %3112 = vmatprep.mubr.bf16.mxu0 %v2999
      %3113 = vmatmul.mubr.bf16.gmra.mxu0 %v2998
      %v3114 = vpop.f32.mrf.mxu0
      %v3115 = vadd.f32 0.0, %v3114
      %v3116 = vpop.f32.mrf.mxu0
      %v3117 = vpop.f32.mrf.mxu0
      %v3118 = vadd.f32 0.0, %v3117
      %v3119 = vpop.f32.mrf.mxu0
      %3120 = vmatprep.mubr.bf16.mxu0 %v3001
      %3121 = vmatmul.mubr.bf16.gmra.mxu0 %v3000
      %v3122 = vpop.f32.mrf.mxu0
      %v3123 = vadd.f32 0.0, %v3122
      %v3124 = vpop.f32.mrf.mxu0
      %v3125 = vpop.f32.mrf.mxu0
      %v3126 = vadd.f32 0.0, %v3125
      %v3127 = vpop.f32.mrf.mxu0
      %3128 = vmatprep.mubr.bf16.mxu0 %v3003
      %3129 = vmatmul.mubr.bf16.gmra.mxu0 %v3002
      %v3130 = vpop.f32.mrf.mxu0
      %v3131 = vadd.f32 0.0, %v3130
      %v3132 = vpop.f32.mrf.mxu0
      %v3133 = vpop.f32.mrf.mxu0
      %v3134 = vadd.f32 0.0, %v3133
      %v3135 = vpop.f32.mrf.mxu0
      %3136 = vmatprep.mubr.bf16.mxu0 %v3005
      %3137 = vmatmul.mubr.bf16.gmra.mxu0 %v3004
      %v3138 = vpop.f32.mrf.mxu0
      %v3139 = vadd.f32 0.0, %v3138
      %v3140 = vpop.f32.mrf.mxu0
      %v3141 = vpop.f32.mrf.mxu0
      %v3142 = vadd.f32 0.0, %v3141
      %v3143 = vpop.f32.mrf.mxu0
      %3144 = vmatprep.mubr.bf16.mxu0 %v3007
      %3145 = vmatmul.mubr.bf16.gmra.mxu0 %v3006
      %v3146 = vpop.f32.mrf.mxu0
      %v3147 = vadd.f32 0.0, %v3146
      %v3148 = vpop.f32.mrf.mxu0
      %v3149 = vpop.f32.mrf.mxu0
      %v3150 = vadd.f32 0.0, %v3149
      %v3151 = vpop.f32.mrf.mxu0
      %3152 = vmatprep.mubr.bf16.mxu0 %v3009
      %3153 = vmatmul.mubr.bf16.gmra.mxu0 %v3008
      %v3154 = vpop.f32.mrf.mxu0
      %v3155 = vadd.f32 0.0, %v3154
      %v3156 = vpop.f32.mrf.mxu0
      %v3157 = vpop.f32.mrf.mxu0
      %v3158 = vadd.f32 0.0, %v3157
      %v3159 = vpop.f32.mrf.mxu0
      %3160 = vmatprep.mubr.bf16.mxu0 %v3011
      %3161 = vmatmul.mubr.bf16.gmra.mxu0 %v3010
      %v3162 = vpop.f32.mrf.mxu0
      %v3163 = vadd.f32 0.0, %v3162
      %v3164 = vpop.f32.mrf.mxu0
      %v3165 = vpop.f32.mrf.mxu0
      %v3166 = vadd.f32 0.0, %v3165
      %v3167 = vpop.f32.mrf.mxu0
      %3168 = vmatprep.mubr.bf16.mxu0 %v3013
      %3169 = vmatmul.mubr.bf16.gmra.mxu0 %v3012
      %v3170 = vpop.f32.mrf.mxu0
      %v3171 = vadd.f32 0.0, %v3170
      %v3172 = vpop.f32.mrf.mxu0
      %v3173 = vpop.f32.mrf.mxu0
      %v3174 = vadd.f32 0.0, %v3173
      %v3175 = vpop.f32.mrf.mxu0
      %3176 = vmatprep.mubr.bf16.mxu0 %v3015
      %3177 = vmatmul.mubr.bf16.gmra.mxu0 %v3014
      %v3178 = vpop.f32.mrf.mxu0
      %v3179 = vadd.f32 0.0, %v3178
      %v3180 = vpop.f32.mrf.mxu0
      %v3181 = vpop.f32.mrf.mxu0
      %v3182 = vadd.f32 0.0, %v3181
      %v3183 = vpop.f32.mrf.mxu0
      %3184 = vmatprep.mubr.bf16.mxu0 %v3017
      %3185 = vmatmul.mubr.bf16.gmra.mxu0 %v3016
      %v3186 = vpop.f32.mrf.mxu0
      %v3187 = vadd.f32 0.0, %v3186
      %v3188 = vpop.f32.mrf.mxu0
      %v3189 = vpop.f32.mrf.mxu0
      %v3190 = vadd.f32 0.0, %v3189
      %v3191 = vpop.f32.mrf.mxu0
      %3192 = vmatprep.mubr.bf16.mxu0 %v3019
      %3193 = vmatmul.mubr.bf16.gmra.mxu0 %v3018
      %v3194 = vpop.f32.mrf.mxu0
      %v3195 = vadd.f32 0.0, %v3194
      %v3196 = vpop.f32.mrf.mxu0
      %v3197 = vpop.f32.mrf.mxu0
      %v3198 = vadd.f32 0.0, %v3197
      %v3199 = vpop.f32.mrf.mxu0
      %3200 = vmatprep.mubr.bf16.mxu0 %v3021
      %3201 = vmatmul.mubr.bf16.gmra.mxu0 %v3020
      %v3202 = vpop.f32.mrf.mxu0
      %v3203 = vadd.f32 0.0, %v3202
      %v3204 = vpop.f32.mrf.mxu0
      %v3205 = vpop.f32.mrf.mxu0
      %v3206 = vadd.f32 0.0, %v3205
      %v3207 = vpop.f32.mrf.mxu0
      %3208 = vmatprep.mubr.bf16.mxu0 %v3023
      %3209 = vmatmul.mubr.bf16.gmra.mxu0 %v3022
      %v3210 = vpop.f32.mrf.mxu0
      %v3211 = vadd.f32 0.0, %v3210
      %v3212 = vpop.f32.mrf.mxu0
      %v3213 = vpop.f32.mrf.mxu0
      %v3214 = vadd.f32 0.0, %v3213
      %v3215 = vpop.f32.mrf.mxu0
      %3216 = vdwg.mxu0
      %v3217 = vlaneseq
      %v3218 = vshrl.u32 %v3217, 7
      %v3219 = vsub.s32 2, %v3218
      %v3220 = vrot.slane %v837, %v3219
      %v3221 = vmul.f32 %v3091, %v3220
      %v3222 = vmul.f32 %v3094, %v3220
      %v3223 = vmul.f32 %v3099, %v3220
      %v3224 = vmul.f32 %v3102, %v3220
      %v3225 = vmul.f32 %v3107, %v3220
      %v3226 = vmul.f32 %v3110, %v3220
      %v3227 = vmul.f32 %v3115, %v3220
      %v3228 = vmul.f32 %v3118, %v3220
      %v3229 = vmul.f32 %v3123, %v3220
      %v3230 = vmul.f32 %v3126, %v3220
      %v3231 = vmul.f32 %v3131, %v3220
      %v3232 = vmul.f32 %v3134, %v3220
      %v3233 = vmul.f32 %v3139, %v3220
      %v3234 = vmul.f32 %v3142, %v3220
      %v3235 = vmul.f32 %v3147, %v3220
      %v3236 = vmul.f32 %v3150, %v3220
      %v3237 = vmul.f32 %v3155, %v3220
      %v3238 = vmul.f32 %v3158, %v3220
      %v3239 = vmul.f32 %v3163, %v3220
      %v3240 = vmul.f32 %v3166, %v3220
      %v3241 = vmul.f32 %v3171, %v3220
      %v3242 = vmul.f32 %v3174, %v3220
      %v3243 = vmul.f32 %v3179, %v3220
      %v3244 = vmul.f32 %v3182, %v3220
      %v3245 = vmul.f32 %v3187, %v3220
      %v3246 = vmul.f32 %v3190, %v3220
      %v3247 = vmul.f32 %v3195, %v3220
      %v3248 = vmul.f32 %v3198, %v3220
      %v3249 = vmul.f32 %v3203, %v3220
      %v3250 = vmul.f32 %v3206, %v3220
      %v3251 = vmul.f32 %v3211, %v3220
      %v3252 = vmul.f32 %v3214, %v3220
      %v3253 = vadd.f32 %v3221, %v2848
      %v3254 = vadd.f32 %v3222, %v2849
      %v3255 = vadd.f32 %v3223, %v2850
      %v3256 = vadd.f32 %v3224, %v2851
      %v3257 = vadd.f32 %v3225, %v2852
      %v3258 = vadd.f32 %v3226, %v2853
      %v3259 = vadd.f32 %v3227, %v2854
      %v3260 = vadd.f32 %v3228, %v2855
      %v3261 = vadd.f32 %v3229, %v2856
      %v3262 = vadd.f32 %v3230, %v2857
      %v3263 = vadd.f32 %v3231, %v2858
      %v3264 = vadd.f32 %v3232, %v2859
      %v3265 = vadd.f32 %v3233, %v2860
      %v3266 = vadd.f32 %v3234, %v2861
      %v3267 = vadd.f32 %v3235, %v2862
      %v3268 = vadd.f32 %v3236, %v2863
      %v3269 = vadd.f32 %v3237, %v2864
      %v3270 = vadd.f32 %v3238, %v2865
      %v3271 = vadd.f32 %v3239, %v2866
      %v3272 = vadd.f32 %v3240, %v2867
      %v3273 = vadd.f32 %v3241, %v2868
      %v3274 = vadd.f32 %v3242, %v2869
      %v3275 = vadd.f32 %v3243, %v2870
      %v3276 = vadd.f32 %v3244, %v2871
      %v3277 = vadd.f32 %v3245, %v2872
      %v3278 = vadd.f32 %v3246, %v2873
      %v3279 = vadd.f32 %v3247, %v2874
      %v3280 = vadd.f32 %v3248, %v2875
      %v3281 = vadd.f32 %v3249, %v2876
      %v3282 = vadd.f32 %v3250, %v2877
      %v3283 = vadd.f32 %v3251, %v2878
      %v3284 = vadd.f32 %v3252, %v2879
      %v3285 = vsel %vm293, %v3253, 0.0
      %3286 = vadd.xlane.f32.xlu0 %v3285
      %v3287 = vpop.xlane.xlu0 %3286
      %v3288 = vsel %vm293, %v3254, 0.0
      %3289 = vadd.xlane.f32.xlu0 %v3288
      %v3290 = vpop.xlane.xlu0 %3289
      %v3291 = vsel %vm293, %v3255, 0.0
      %3292 = vadd.xlane.f32.xlu0 %v3291
      %v3293 = vpop.xlane.xlu0 %3292
      %v3294 = vsel %vm293, %v3256, 0.0
      %3295 = vadd.xlane.f32.xlu0 %v3294
      %v3296 = vpop.xlane.xlu0 %3295
      %v3297 = vsel %vm293, %v3257, 0.0
      %3298 = vadd.xlane.f32.xlu0 %v3297
      %v3299 = vpop.xlane.xlu0 %3298
      %v3300 = vsel %vm293, %v3258, 0.0
      %3301 = vadd.xlane.f32.xlu0 %v3300
      %v3302 = vpop.xlane.xlu0 %3301
      %v3303 = vsel %vm293, %v3259, 0.0
      %3304 = vadd.xlane.f32.xlu0 %v3303
      %v3305 = vpop.xlane.xlu0 %3304
      %v3306 = vsel %vm293, %v3260, 0.0
      %3307 = vadd.xlane.f32.xlu0 %v3306
      %v3308 = vpop.xlane.xlu0 %3307
      %v3309 = vsel %vm293, %v3261, 0.0
      %3310 = vadd.xlane.f32.xlu0 %v3309
      %v3311 = vpop.xlane.xlu0 %3310
      %v3312 = vsel %vm293, %v3262, 0.0
      %3313 = vadd.xlane.f32.xlu0 %v3312
      %v3314 = vpop.xlane.xlu0 %3313
      %v3315 = vsel %vm293, %v3263, 0.0
      %3316 = vadd.xlane.f32.xlu0 %v3315
      %v3317 = vpop.xlane.xlu0 %3316
      %v3318 = vsel %vm293, %v3264, 0.0
      %3319 = vadd.xlane.f32.xlu0 %v3318
      %v3320 = vpop.xlane.xlu0 %3319
      %v3321 = vsel %vm293, %v3265, 0.0
      %3322 = vadd.xlane.f32.xlu0 %v3321
      %v3323 = vpop.xlane.xlu0 %3322
      %v3324 = vsel %vm293, %v3266, 0.0
      %3325 = vadd.xlane.f32.xlu0 %v3324
      %v3326 = vpop.xlane.xlu0 %3325
      %v3327 = vsel %vm293, %v3267, 0.0
      %3328 = vadd.xlane.f32.xlu0 %v3327
      %v3329 = vpop.xlane.xlu0 %3328
      %v3330 = vsel %vm293, %v3268, 0.0
      %3331 = vadd.xlane.f32.xlu0 %v3330
      %v3332 = vpop.xlane.xlu0 %3331
      %v3333 = vsel %vm293, %v3269, 0.0
      %3334 = vadd.xlane.f32.xlu0 %v3333
      %v3335 = vpop.xlane.xlu0 %3334
      %v3336 = vsel %vm293, %v3270, 0.0
      %3337 = vadd.xlane.f32.xlu0 %v3336
      %v3338 = vpop.xlane.xlu0 %3337
      %v3339 = vsel %vm293, %v3271, 0.0
      %3340 = vadd.xlane.f32.xlu0 %v3339
      %v3341 = vpop.xlane.xlu0 %3340
      %v3342 = vsel %vm293, %v3272, 0.0
      %3343 = vadd.xlane.f32.xlu0 %v3342
      %v3344 = vpop.xlane.xlu0 %3343
      %v3345 = vsel %vm293, %v3273, 0.0
      %3346 = vadd.xlane.f32.xlu0 %v3345
      %v3347 = vpop.xlane.xlu0 %3346
      %v3348 = vsel %vm293, %v3274, 0.0
      %3349 = vadd.xlane.f32.xlu0 %v3348
      %v3350 = vpop.xlane.xlu0 %3349
      %v3351 = vsel %vm293, %v3275, 0.0
      %3352 = vadd.xlane.f32.xlu0 %v3351
      %v3353 = vpop.xlane.xlu0 %3352
      %v3354 = vsel %vm293, %v3276, 0.0
      %3355 = vadd.xlane.f32.xlu0 %v3354
      %v3356 = vpop.xlane.xlu0 %3355
      %v3357 = vsel %vm293, %v3277, 0.0
      %3358 = vadd.xlane.f32.xlu0 %v3357
      %v3359 = vpop.xlane.xlu0 %3358
      %v3360 = vsel %vm293, %v3278, 0.0
      %3361 = vadd.xlane.f32.xlu0 %v3360
      %v3362 = vpop.xlane.xlu0 %3361
      %v3363 = vsel %vm293, %v3279, 0.0
      %3364 = vadd.xlane.f32.xlu0 %v3363
      %v3365 = vpop.xlane.xlu0 %3364
      %v3366 = vsel %vm293, %v3280, 0.0
      %3367 = vadd.xlane.f32.xlu0 %v3366
      %v3368 = vpop.xlane.xlu0 %3367
      %v3369 = vsel %vm293, %v3281, 0.0
      %3370 = vadd.xlane.f32.xlu0 %v3369
      %v3371 = vpop.xlane.xlu0 %3370
      %v3372 = vsel %vm293, %v3282, 0.0
      %3373 = vadd.xlane.f32.xlu0 %v3372
      %v3374 = vpop.xlane.xlu0 %3373
      %v3375 = vsel %vm293, %v3283, 0.0
      %3376 = vadd.xlane.f32.xlu0 %v3375
      %v3377 = vpop.xlane.xlu0 %3376
      %v3378 = vsel %vm293, %v3284, 0.0
      %3379 = vadd.xlane.f32.xlu0 %v3378
      %v3380 = vpop.xlane.xlu0 %3379
      %v3381 = vmul.f32 %v3287, %v1405
      %v3382 = vmul.f32 %v3290, %v1405
      %v3383 = vmul.f32 %v3293, %v1405
      %v3384 = vmul.f32 %v3296, %v1405
      %v3385 = vmul.f32 %v3299, %v1405
      %v3386 = vmul.f32 %v3302, %v1405
      %v3387 = vmul.f32 %v3305, %v1405
      %v3388 = vmul.f32 %v3308, %v1405
      %v3389 = vmul.f32 %v3311, %v1405
      %v3390 = vmul.f32 %v3314, %v1405
      %v3391 = vmul.f32 %v3317, %v1405
      %v3392 = vmul.f32 %v3320, %v1405
      %v3393 = vmul.f32 %v3323, %v1405
      %v3394 = vmul.f32 %v3326, %v1405
      %v3395 = vmul.f32 %v3329, %v1405
      %v3396 = vmul.f32 %v3332, %v1405
      %v3397 = vmul.f32 %v3335, %v1405
      %v3398 = vmul.f32 %v3338, %v1405
      %v3399 = vmul.f32 %v3341, %v1405
      %v3400 = vmul.f32 %v3344, %v1405
      %v3401 = vmul.f32 %v3347, %v1405
      %v3402 = vmul.f32 %v3350, %v1405
      %v3403 = vmul.f32 %v3353, %v1405
      %v3404 = vmul.f32 %v3356, %v1405
      %v3405 = vmul.f32 %v3359, %v1405
      %v3406 = vmul.f32 %v3362, %v1405
      %v3407 = vmul.f32 %v3365, %v1405
      %v3408 = vmul.f32 %v3368, %v1405
      %v3409 = vmul.f32 %v3371, %v1405
      %v3410 = vmul.f32 %v3374, %v1405
      %v3411 = vmul.f32 %v3377, %v1405
      %v3412 = vmul.f32 %v3380, %v1405
      %v3413 = vsub.f32 %v3253, %v3381
      %v3414 = vsub.f32 %v3254, %v3382
      %v3415 = vsub.f32 %v3255, %v3383
      %v3416 = vsub.f32 %v3256, %v3384
      %v3417 = vsub.f32 %v3257, %v3385
      %v3418 = vsub.f32 %v3258, %v3386
      %v3419 = vsub.f32 %v3259, %v3387
      %v3420 = vsub.f32 %v3260, %v3388
      %v3421 = vsub.f32 %v3261, %v3389
      %v3422 = vsub.f32 %v3262, %v3390
      %v3423 = vsub.f32 %v3263, %v3391
      %v3424 = vsub.f32 %v3264, %v3392
      %v3425 = vsub.f32 %v3265, %v3393
      %v3426 = vsub.f32 %v3266, %v3394
      %v3427 = vsub.f32 %v3267, %v3395
      %v3428 = vsub.f32 %v3268, %v3396
      %v3429 = vsub.f32 %v3269, %v3397
      %v3430 = vsub.f32 %v3270, %v3398
      %v3431 = vsub.f32 %v3271, %v3399
      %v3432 = vsub.f32 %v3272, %v3400
      %v3433 = vsub.f32 %v3273, %v3401
      %v3434 = vsub.f32 %v3274, %v3402
      %v3435 = vsub.f32 %v3275, %v3403
      %v3436 = vsub.f32 %v3276, %v3404
      %v3437 = vsub.f32 %v3277, %v3405
      %v3438 = vsub.f32 %v3278, %v3406
      %v3439 = vsub.f32 %v3279, %v3407
      %v3440 = vsub.f32 %v3280, %v3408
      %v3441 = vsub.f32 %v3281, %v3409
      %v3442 = vsub.f32 %v3282, %v3410
      %v3443 = vsub.f32 %v3283, %v3411
      %v3444 = vsub.f32 %v3284, %v3412
      %v3445 = vmul.f32 %v3413, %v3413
      %v3446 = vmul.f32 %v3414, %v3414
      %v3447 = vmul.f32 %v3415, %v3415
      %v3448 = vmul.f32 %v3416, %v3416
      %v3449 = vmul.f32 %v3417, %v3417
      %v3450 = vmul.f32 %v3418, %v3418
      %v3451 = vmul.f32 %v3419, %v3419
      %v3452 = vmul.f32 %v3420, %v3420
      %v3453 = vmul.f32 %v3421, %v3421
      %v3454 = vmul.f32 %v3422, %v3422
      %v3455 = vmul.f32 %v3423, %v3423
      %v3456 = vmul.f32 %v3424, %v3424
      %v3457 = vmul.f32 %v3425, %v3425
      %v3458 = vmul.f32 %v3426, %v3426
      %v3459 = vmul.f32 %v3427, %v3427
      %v3460 = vmul.f32 %v3428, %v3428
      %v3461 = vmul.f32 %v3429, %v3429
      %v3462 = vmul.f32 %v3430, %v3430
      %v3463 = vmul.f32 %v3431, %v3431
      %v3464 = vmul.f32 %v3432, %v3432
      %v3465 = vmul.f32 %v3433, %v3433
      %v3466 = vmul.f32 %v3434, %v3434
      %v3467 = vmul.f32 %v3435, %v3435
      %v3468 = vmul.f32 %v3436, %v3436
      %v3469 = vmul.f32 %v3437, %v3437
      %v3470 = vmul.f32 %v3438, %v3438
      %v3471 = vmul.f32 %v3439, %v3439
      %v3472 = vmul.f32 %v3440, %v3440
      %v3473 = vmul.f32 %v3441, %v3441
      %v3474 = vmul.f32 %v3442, %v3442
      %v3475 = vmul.f32 %v3443, %v3443
      %v3476 = vmul.f32 %v3444, %v3444
      %v3477 = vsel %vm293, %v3445, 0.0
      %3478 = vadd.xlane.f32.xlu0 %v3477
      %v3479 = vpop.xlane.xlu0 %3478
      %v3480 = vsel %vm293, %v3446, 0.0
      %3481 = vadd.xlane.f32.xlu0 %v3480
      %v3482 = vpop.xlane.xlu0 %3481
      %v3483 = vsel %vm293, %v3447, 0.0
      %3484 = vadd.xlane.f32.xlu0 %v3483
      %v3485 = vpop.xlane.xlu0 %3484
      %v3486 = vsel %vm293, %v3448, 0.0
      %3487 = vadd.xlane.f32.xlu0 %v3486
      %v3488 = vpop.xlane.xlu0 %3487
      %v3489 = vsel %vm293, %v3449, 0.0
      %3490 = vadd.xlane.f32.xlu0 %v3489
      %v3491 = vpop.xlane.xlu0 %3490
      %v3492 = vsel %vm293, %v3450, 0.0
      %3493 = vadd.xlane.f32.xlu0 %v3492
      %v3494 = vpop.xlane.xlu0 %3493
      %v3495 = vsel %vm293, %v3451, 0.0
      %3496 = vadd.xlane.f32.xlu0 %v3495
      %v3497 = vpop.xlane.xlu0 %3496
      %v3498 = vsel %vm293, %v3452, 0.0
      %3499 = vadd.xlane.f32.xlu0 %v3498
      %v3500 = vpop.xlane.xlu0 %3499
      %v3501 = vsel %vm293, %v3453, 0.0
      %3502 = vadd.xlane.f32.xlu0 %v3501
      %v3503 = vpop.xlane.xlu0 %3502
      %v3504 = vsel %vm293, %v3454, 0.0
      %3505 = vadd.xlane.f32.xlu0 %v3504
      %v3506 = vpop.xlane.xlu0 %3505
      %v3507 = vsel %vm293, %v3455, 0.0
      %3508 = vadd.xlane.f32.xlu0 %v3507
      %v3509 = vpop.xlane.xlu0 %3508
      %v3510 = vsel %vm293, %v3456, 0.0
      %3511 = vadd.xlane.f32.xlu0 %v3510
      %v3512 = vpop.xlane.xlu0 %3511
      %v3513 = vsel %vm293, %v3457, 0.0
      %3514 = vadd.xlane.f32.xlu0 %v3513
      %v3515 = vpop.xlane.xlu0 %3514
      %v3516 = vsel %vm293, %v3458, 0.0
      %3517 = vadd.xlane.f32.xlu0 %v3516
      %v3518 = vpop.xlane.xlu0 %3517
      %v3519 = vsel %vm293, %v3459, 0.0
      %3520 = vadd.xlane.f32.xlu0 %v3519
      %v3521 = vpop.xlane.xlu0 %3520
      %v3522 = vsel %vm293, %v3460, 0.0
      %3523 = vadd.xlane.f32.xlu0 %v3522
      %v3524 = vpop.xlane.xlu0 %3523
      %v3525 = vsel %vm293, %v3461, 0.0
      %3526 = vadd.xlane.f32.xlu0 %v3525
      %v3527 = vpop.xlane.xlu0 %3526
      %v3528 = vsel %vm293, %v3462, 0.0
      %3529 = vadd.xlane.f32.xlu0 %v3528
      %v3530 = vpop.xlane.xlu0 %3529
      %v3531 = vsel %vm293, %v3463, 0.0
      %3532 = vadd.xlane.f32.xlu0 %v3531
      %v3533 = vpop.xlane.xlu0 %3532
      %v3534 = vsel %vm293, %v3464, 0.0
      %3535 = vadd.xlane.f32.xlu0 %v3534
      %v3536 = vpop.xlane.xlu0 %3535
      %v3537 = vsel %vm293, %v3465, 0.0
      %3538 = vadd.xlane.f32.xlu0 %v3537
      %v3539 = vpop.xlane.xlu0 %3538
      %v3540 = vsel %vm293, %v3466, 0.0
      %3541 = vadd.xlane.f32.xlu0 %v3540
      %v3542 = vpop.xlane.xlu0 %3541
      %v3543 = vsel %vm293, %v3467, 0.0
      %3544 = vadd.xlane.f32.xlu0 %v3543
      %v3545 = vpop.xlane.xlu0 %3544
      %v3546 = vsel %vm293, %v3468, 0.0
      %3547 = vadd.xlane.f32.xlu0 %v3546
      %v3548 = vpop.xlane.xlu0 %3547
      %v3549 = vsel %vm293, %v3469, 0.0
      %3550 = vadd.xlane.f32.xlu0 %v3549
      %v3551 = vpop.xlane.xlu0 %3550
      %v3552 = vsel %vm293, %v3470, 0.0
      %3553 = vadd.xlane.f32.xlu0 %v3552
      %v3554 = vpop.xlane.xlu0 %3553
      %v3555 = vsel %vm293, %v3471, 0.0
      %3556 = vadd.xlane.f32.xlu0 %v3555
      %v3557 = vpop.xlane.xlu0 %3556
      %v3558 = vsel %vm293, %v3472, 0.0
      %3559 = vadd.xlane.f32.xlu0 %v3558
      %v3560 = vpop.xlane.xlu0 %3559
      %v3561 = vsel %vm293, %v3473, 0.0
      %3562 = vadd.xlane.f32.xlu0 %v3561
      %v3563 = vpop.xlane.xlu0 %3562
      %v3564 = vsel %vm293, %v3474, 0.0
      %3565 = vadd.xlane.f32.xlu0 %v3564
      %v3566 = vpop.xlane.xlu0 %3565
      %v3567 = vsel %vm293, %v3475, 0.0
      %3568 = vadd.xlane.f32.xlu0 %v3567
      %v3569 = vpop.xlane.xlu0 %3568
      %v3570 = vsel %vm293, %v3476, 0.0
      %3571 = vadd.xlane.f32.xlu0 %v3570
      %v3572 = vpop.xlane.xlu0 %3571
      %v3573 = vmul.f32 %v3479, %v1405
      %v3574 = vmul.f32 %v3482, %v1405
      %v3575 = vmul.f32 %v3485, %v1405
      %v3576 = vmul.f32 %v3488, %v1405
      %v3577 = vmul.f32 %v3491, %v1405
      %v3578 = vmul.f32 %v3494, %v1405
      %v3579 = vmul.f32 %v3497, %v1405
      %v3580 = vmul.f32 %v3500, %v1405
      %v3581 = vmul.f32 %v3503, %v1405
      %v3582 = vmul.f32 %v3506, %v1405
      %v3583 = vmul.f32 %v3509, %v1405
      %v3584 = vmul.f32 %v3512, %v1405
      %v3585 = vmul.f32 %v3515, %v1405
      %v3586 = vmul.f32 %v3518, %v1405
      %v3587 = vmul.f32 %v3521, %v1405
      %v3588 = vmul.f32 %v3524, %v1405
      %v3589 = vmul.f32 %v3527, %v1405
      %v3590 = vmul.f32 %v3530, %v1405
      %v3591 = vmul.f32 %v3533, %v1405
      %v3592 = vmul.f32 %v3536, %v1405
      %v3593 = vmul.f32 %v3539, %v1405
      %v3594 = vmul.f32 %v3542, %v1405
      %v3595 = vmul.f32 %v3545, %v1405
      %v3596 = vmul.f32 %v3548, %v1405
      %v3597 = vmul.f32 %v3551, %v1405
      %v3598 = vmul.f32 %v3554, %v1405
      %v3599 = vmul.f32 %v3557, %v1405
      %v3600 = vmul.f32 %v3560, %v1405
      %v3601 = vmul.f32 %v3563, %v1405
      %v3602 = vmul.f32 %v3566, %v1405
      %v3603 = vmul.f32 %v3569, %v1405
      %v3604 = vmul.f32 %v3572, %v1405
      %v3605 = vadd.f32 %v3573, 1e-05
      %v3606 = vadd.f32 %v3574, 1e-05
      %v3607 = vadd.f32 %v3575, 1e-05
      %v3608 = vadd.f32 %v3576, 1e-05
      %v3609 = vadd.f32 %v3577, 1e-05
      %v3610 = vadd.f32 %v3578, 1e-05
      %v3611 = vadd.f32 %v3579, 1e-05
      %v3612 = vadd.f32 %v3580, 1e-05
      %v3613 = vadd.f32 %v3581, 1e-05
      %v3614 = vadd.f32 %v3582, 1e-05
      %v3615 = vadd.f32 %v3583, 1e-05
      %v3616 = vadd.f32 %v3584, 1e-05
      %v3617 = vadd.f32 %v3585, 1e-05
      %v3618 = vadd.f32 %v3586, 1e-05
      %v3619 = vadd.f32 %v3587, 1e-05
      %v3620 = vadd.f32 %v3588, 1e-05
      %v3621 = vadd.f32 %v3589, 1e-05
      %v3622 = vadd.f32 %v3590, 1e-05
      %v3623 = vadd.f32 %v3591, 1e-05
      %v3624 = vadd.f32 %v3592, 1e-05
      %v3625 = vadd.f32 %v3593, 1e-05
      %v3626 = vadd.f32 %v3594, 1e-05
      %v3627 = vadd.f32 %v3595, 1e-05
      %v3628 = vadd.f32 %v3596, 1e-05
      %v3629 = vadd.f32 %v3597, 1e-05
      %v3630 = vadd.f32 %v3598, 1e-05
      %v3631 = vadd.f32 %v3599, 1e-05
      %v3632 = vadd.f32 %v3600, 1e-05
      %v3633 = vadd.f32 %v3601, 1e-05
      %v3634 = vadd.f32 %v3602, 1e-05
      %v3635 = vadd.f32 %v3603, 1e-05
      %v3636 = vadd.f32 %v3604, 1e-05
      %v3637 = vrsqrt.pop %v3605
      %v3638 = vrsqrt.pop %v3606
      %v3639 = vrsqrt.pop %v3607
      %v3640 = vrsqrt.pop %v3608
      %v3641 = vrsqrt.pop %v3609
      %v3642 = vrsqrt.pop %v3610
      %v3643 = vrsqrt.pop %v3611
      %v3644 = vrsqrt.pop %v3612
      %v3645 = vrsqrt.pop %v3613
      %v3646 = vrsqrt.pop %v3614
      %v3647 = vrsqrt.pop %v3615
      %v3648 = vrsqrt.pop %v3616
      %v3649 = vrsqrt.pop %v3617
      %v3650 = vrsqrt.pop %v3618
      %v3651 = vrsqrt.pop %v3619
      %v3652 = vrsqrt.pop %v3620
      %v3653 = vrsqrt.pop %v3621
      %v3654 = vrsqrt.pop %v3622
      %v3655 = vrsqrt.pop %v3623
      %v3656 = vrsqrt.pop %v3624
      %v3657 = vrsqrt.pop %v3625
      %v3658 = vrsqrt.pop %v3626
      %v3659 = vrsqrt.pop %v3627
      %v3660 = vrsqrt.pop %v3628
      %v3661 = vrsqrt.pop %v3629
      %v3662 = vrsqrt.pop %v3630
      %v3663 = vrsqrt.pop %v3631
      %v3664 = vrsqrt.pop %v3632
      %v3665 = vrsqrt.pop %v3633
      %v3666 = vrsqrt.pop %v3634
      %v3667 = vrsqrt.pop %v3635
      %v3668 = vrsqrt.pop %v3636
      %v3669 = vmul.f32 %v3413, %v3637
      %v3670 = vmul.f32 %v3414, %v3638
      %v3671 = vmul.f32 %v3415, %v3639
      %v3672 = vmul.f32 %v3416, %v3640
      %v3673 = vmul.f32 %v3417, %v3641
      %v3674 = vmul.f32 %v3418, %v3642
      %v3675 = vmul.f32 %v3419, %v3643
      %v3676 = vmul.f32 %v3420, %v3644
      %v3677 = vmul.f32 %v3421, %v3645
      %v3678 = vmul.f32 %v3422, %v3646
      %v3679 = vmul.f32 %v3423, %v3647
      %v3680 = vmul.f32 %v3424, %v3648
      %v3681 = vmul.f32 %v3425, %v3649
      %v3682 = vmul.f32 %v3426, %v3650
      %v3683 = vmul.f32 %v3427, %v3651
      %v3684 = vmul.f32 %v3428, %v3652
      %v3685 = vmul.f32 %v3429, %v3653
      %v3686 = vmul.f32 %v3430, %v3654
      %v3687 = vmul.f32 %v3431, %v3655
      %v3688 = vmul.f32 %v3432, %v3656
      %v3689 = vmul.f32 %v3433, %v3657
      %v3690 = vmul.f32 %v3434, %v3658
      %v3691 = vmul.f32 %v3435, %v3659
      %v3692 = vmul.f32 %v3436, %v3660
      %v3693 = vmul.f32 %v3437, %v3661
      %v3694 = vmul.f32 %v3438, %v3662
      %v3695 = vmul.f32 %v3439, %v3663
      %v3696 = vmul.f32 %v3440, %v3664
      %v3697 = vmul.f32 %v3441, %v3665
      %v3698 = vmul.f32 %v3442, %v3666
      %v3699 = vmul.f32 %v3443, %v3667
      %v3700 = vmul.f32 %v3444, %v3668
      %v3701 = vmul.f32 %v3669, %v1730
      %v3702 = vmul.f32 %v3670, %v1730
      %v3703 = vmul.f32 %v3671, %v1730
      %v3704 = vmul.f32 %v3672, %v1730
      %v3705 = vmul.f32 %v3673, %v1730
      %v3706 = vmul.f32 %v3674, %v1730
      %v3707 = vmul.f32 %v3675, %v1730
      %v3708 = vmul.f32 %v3676, %v1730
      %v3709 = vmul.f32 %v3677, %v1730
      %v3710 = vmul.f32 %v3678, %v1730
      %v3711 = vmul.f32 %v3679, %v1730
      %v3712 = vmul.f32 %v3680, %v1730
      %v3713 = vmul.f32 %v3681, %v1730
      %v3714 = vmul.f32 %v3682, %v1730
      %v3715 = vmul.f32 %v3683, %v1730
      %v3716 = vmul.f32 %v3684, %v1730
      %v3717 = vmul.f32 %v3685, %v1730
      %v3718 = vmul.f32 %v3686, %v1730
      %v3719 = vmul.f32 %v3687, %v1730
      %v3720 = vmul.f32 %v3688, %v1730
      %v3721 = vmul.f32 %v3689, %v1730
      %v3722 = vmul.f32 %v3690, %v1730
      %v3723 = vmul.f32 %v3691, %v1730
      %v3724 = vmul.f32 %v3692, %v1730
      %v3725 = vmul.f32 %v3693, %v1730
      %v3726 = vmul.f32 %v3694, %v1730
      %v3727 = vmul.f32 %v3695, %v1730
      %v3728 = vmul.f32 %v3696, %v1730
      %v3729 = vmul.f32 %v3697, %v1730
      %v3730 = vmul.f32 %v3698, %v1730
      %v3731 = vmul.f32 %v3699, %v1730
      %v3732 = vmul.f32 %v3700, %v1730
      %v3733 = vadd.f32 %v3701, %v1768
      %v3734 = vadd.f32 %v3702, %v1768
      %v3735 = vadd.f32 %v3703, %v1768
      %v3736 = vadd.f32 %v3704, %v1768
      %v3737 = vadd.f32 %v3705, %v1768
      %v3738 = vadd.f32 %v3706, %v1768
      %v3739 = vadd.f32 %v3707, %v1768
      %v3740 = vadd.f32 %v3708, %v1768
      %v3741 = vadd.f32 %v3709, %v1768
      %v3742 = vadd.f32 %v3710, %v1768
      %v3743 = vadd.f32 %v3711, %v1768
      %v3744 = vadd.f32 %v3712, %v1768
      %v3745 = vadd.f32 %v3713, %v1768
      %v3746 = vadd.f32 %v3714, %v1768
      %v3747 = vadd.f32 %v3715, %v1768
      %v3748 = vadd.f32 %v3716, %v1768
      %v3749 = vadd.f32 %v3717, %v1768
      %v3750 = vadd.f32 %v3718, %v1768
      %v3751 = vadd.f32 %v3719, %v1768
      %v3752 = vadd.f32 %v3720, %v1768
      %v3753 = vadd.f32 %v3721, %v1768
      %v3754 = vadd.f32 %v3722, %v1768
      %v3755 = vadd.f32 %v3723, %v1768
      %v3756 = vadd.f32 %v3724, %v1768
      %v3757 = vadd.f32 %v3725, %v1768
      %v3758 = vadd.f32 %v3726, %v1768
      %v3759 = vadd.f32 %v3727, %v1768
      %v3760 = vadd.f32 %v3728, %v1768
      %v3761 = vadd.f32 %v3729, %v1768
      %v3762 = vadd.f32 %v3730, %v1768
      %v3763 = vadd.f32 %v3731, %v1768
      %v3764 = vadd.f32 %v3732, %v1768
      %s3765 = scalar_lea.vmem %s258, 512
      %3766 = vst.msk [vmem:[%s3765] sm:$0xff] %vm293, %v3733
      %3767 = vst.msk [vmem:[%s3765 + $0x8] sm:$0xff] %vm293, %v3734
      %3768 = vst.msk [vmem:[%s3765 + $0x10] sm:$0xff] %vm293, %v3735
      %3769 = vst.msk [vmem:[%s3765 + $0x18] sm:$0xff] %vm293, %v3736
      %3770 = vst.msk [vmem:[%s3765 + $0x20] sm:$0xff] %vm293, %v3737
      %3771 = vst.msk [vmem:[%s3765 + $0x28] sm:$0xff] %vm293, %v3738
      %3772 = vst.msk [vmem:[%s3765 + $0x30] sm:$0xff] %vm293, %v3739
      %3773 = vst.msk [vmem:[%s3765 + $0x38] sm:$0xff] %vm293, %v3740
      %3774 = vst.msk [vmem:[%s3765 + $0x40] sm:$0xff] %vm293, %v3741
      %3775 = vst.msk [vmem:[%s3765 + $0x48] sm:$0xff] %vm293, %v3742
      %3776 = vst.msk [vmem:[%s3765 + $0x50] sm:$0xff] %vm293, %v3743
      %3777 = vst.msk [vmem:[%s3765 + $0x58] sm:$0xff] %vm293, %v3744
      %3778 = vst.msk [vmem:[%s3765 + $0x60] sm:$0xff] %vm293, %v3745
      %3779 = vst.msk [vmem:[%s3765 + $0x68] sm:$0xff] %vm293, %v3746
      %3780 = vst.msk [vmem:[%s3765 + $0x70] sm:$0xff] %vm293, %v3747
      %3781 = vst.msk [vmem:[%s3765 + $0x78] sm:$0xff] %vm293, %v3748
      %3782 = vst.msk [vmem:[%s3765 + $0x80] sm:$0xff] %vm293, %v3749
      %3783 = vst.msk [vmem:[%s3765 + $0x88] sm:$0xff] %vm293, %v3750
      %3784 = vst.msk [vmem:[%s3765 + $0x90] sm:$0xff] %vm293, %v3751
      %3785 = vst.msk [vmem:[%s3765 + $0x98] sm:$0xff] %vm293, %v3752
      %3786 = vst.msk [vmem:[%s3765 + $0xa0] sm:$0xff] %vm293, %v3753
      %3787 = vst.msk [vmem:[%s3765 + $0xa8] sm:$0xff] %vm293, %v3754
      %3788 = vst.msk [vmem:[%s3765 + $0xb0] sm:$0xff] %vm293, %v3755
      %3789 = vst.msk [vmem:[%s3765 + $0xb8] sm:$0xff] %vm293, %v3756
      %3790 = vst.msk [vmem:[%s3765 + $0xc0] sm:$0xff] %vm293, %v3757
      %3791 = vst.msk [vmem:[%s3765 + $0xc8] sm:$0xff] %vm293, %v3758
      %3792 = vst.msk [vmem:[%s3765 + $0xd0] sm:$0xff] %vm293, %v3759
      %3793 = vst.msk [vmem:[%s3765 + $0xd8] sm:$0xff] %vm293, %v3760
      %3794 = vst.msk [vmem:[%s3765 + $0xe0] sm:$0xff] %vm293, %v3761
      %3795 = vst.msk [vmem:[%s3765 + $0xe8] sm:$0xff] %vm293, %v3762
      %3796 = vst.msk [vmem:[%s3765 + $0xf0] sm:$0xff] %vm293, %v3763
      %3797 = vst.msk [vmem:[%s3765 + $0xf8] sm:$0xff] %vm293, %v3764
      %v3798 = vld [vmem:[%s1] sm:$0xff]
      %v3799 = vld [vmem:[%s1 + $0x8] sm:$0xff]
      %v3800 = vld [vmem:[%s1 + $0x10] sm:$0xff]
      %v3801 = vld [vmem:[%s1 + $0x18] sm:$0xff]
      %v3802 = vld [vmem:[%s1 + $0x20] sm:$0xff]
      %v3803 = vld [vmem:[%s1 + $0x28] sm:$0xff]
      %v3804 = vld [vmem:[%s1 + $0x30] sm:$0xff]
      %v3805 = vld [vmem:[%s1 + $0x38] sm:$0xff]
      %v3806 = vld [vmem:[%s1 + $0x40] sm:$0xff]
      %v3807 = vld [vmem:[%s1 + $0x48] sm:$0xff]
      %v3808 = vld [vmem:[%s1 + $0x50] sm:$0xff]
      %v3809 = vld [vmem:[%s1 + $0x58] sm:$0xff]
      %v3810 = vld [vmem:[%s1 + $0x60] sm:$0xff]
      %v3811 = vld [vmem:[%s1 + $0x68] sm:$0xff]
      %v3812 = vld [vmem:[%s1 + $0x70] sm:$0xff]
      %v3813 = vld [vmem:[%s1 + $0x78] sm:$0xff]
      %v3814 = vld [vmem:[%s1 + $0x80] sm:$0xff]
      %v3815 = vld [vmem:[%s1 + $0x88] sm:$0xff]
      %v3816 = vld [vmem:[%s1 + $0x90] sm:$0xff]
      %v3817 = vld [vmem:[%s1 + $0x98] sm:$0xff]
      %v3818 = vld [vmem:[%s1 + $0xa0] sm:$0xff]
      %v3819 = vld [vmem:[%s1 + $0xa8] sm:$0xff]
      %v3820 = vld [vmem:[%s1 + $0xb0] sm:$0xff]
      %v3821 = vld [vmem:[%s1 + $0xb8] sm:$0xff]
      %v3822 = vld [vmem:[%s1 + $0xc0] sm:$0xff]
      %v3823 = vld [vmem:[%s1 + $0xc8] sm:$0xff]
      %v3824 = vld [vmem:[%s1 + $0xd0] sm:$0xff]
      %v3825 = vld [vmem:[%s1 + $0xd8] sm:$0xff]
      %v3826 = vld [vmem:[%s1 + $0xe0] sm:$0xff]
      %v3827 = vld [vmem:[%s1 + $0xe8] sm:$0xff]
      %v3828 = vld [vmem:[%s1 + $0xf0] sm:$0xff]
      %v3829 = vld [vmem:[%s1 + $0xf8] sm:$0xff]
      %v3830 = vld [vmem:[%s574] sm:$0xff]
      %v3831 = vld [vmem:[%s574 + $0x8] sm:$0xff]
      %v3832 = vld [vmem:[%s574 + $0x10] sm:$0xff]
      %v3833 = vld [vmem:[%s574 + $0x18] sm:$0xff]
      %v3834 = vld [vmem:[%s574 + $0x20] sm:$0xff]
      %v3835 = vld [vmem:[%s574 + $0x28] sm:$0xff]
      %v3836 = vld [vmem:[%s574 + $0x30] sm:$0xff]
      %v3837 = vld [vmem:[%s574 + $0x38] sm:$0xff]
      %v3838 = vld [vmem:[%s574 + $0x40] sm:$0xff]
      %v3839 = vld [vmem:[%s574 + $0x48] sm:$0xff]
      %v3840 = vld [vmem:[%s574 + $0x50] sm:$0xff]
      %v3841 = vld [vmem:[%s574 + $0x58] sm:$0xff]
      %v3842 = vld [vmem:[%s574 + $0x60] sm:$0xff]
      %v3843 = vld [vmem:[%s574 + $0x68] sm:$0xff]
      %v3844 = vld [vmem:[%s574 + $0x70] sm:$0xff]
      %v3845 = vld [vmem:[%s574 + $0x78] sm:$0xff]
      %v3846 = vld [vmem:[%s574 + $0x80] sm:$0xff]
      %v3847 = vld [vmem:[%s574 + $0x88] sm:$0xff]
      %v3848 = vld [vmem:[%s574 + $0x90] sm:$0xff]
      %v3849 = vld [vmem:[%s574 + $0x98] sm:$0xff]
      %v3850 = vld [vmem:[%s574 + $0xa0] sm:$0xff]
      %v3851 = vld [vmem:[%s574 + $0xa8] sm:$0xff]
      %v3852 = vld [vmem:[%s574 + $0xb0] sm:$0xff]
      %v3853 = vld [vmem:[%s574 + $0xb8] sm:$0xff]
      %v3854 = vld [vmem:[%s574 + $0xc0] sm:$0xff]
      %v3855 = vld [vmem:[%s574 + $0xc8] sm:$0xff]
      %v3856 = vld [vmem:[%s574 + $0xd0] sm:$0xff]
      %v3857 = vld [vmem:[%s574 + $0xd8] sm:$0xff]
      %v3858 = vld [vmem:[%s574 + $0xe0] sm:$0xff]
      %v3859 = vld [vmem:[%s574 + $0xe8] sm:$0xff]
      %v3860 = vld [vmem:[%s574 + $0xf0] sm:$0xff]
      %v3861 = vld [vmem:[%s574 + $0xf8] sm:$0xff]
      %v3862 = vpack.c.bf16 %v3831, %v3830
      %v3863 = vpack.c.bf16 %v3833, %v3832
      %v3864 = vpack.c.bf16 %v3835, %v3834
      %v3865 = vpack.c.bf16 %v3837, %v3836
      %v3866 = vpack.c.bf16 %v3839, %v3838
      %v3867 = vpack.c.bf16 %v3841, %v3840
      %v3868 = vpack.c.bf16 %v3843, %v3842
      %v3869 = vpack.c.bf16 %v3845, %v3844
      %v3870 = vpack.c.bf16 %v3847, %v3846
      %v3871 = vpack.c.bf16 %v3849, %v3848
      %v3872 = vpack.c.bf16 %v3851, %v3850
      %v3873 = vpack.c.bf16 %v3853, %v3852
      %v3874 = vpack.c.bf16 %v3855, %v3854
      %v3875 = vpack.c.bf16 %v3857, %v3856
      %v3876 = vpack.c.bf16 %v3859, %v3858
      %v3877 = vpack.c.bf16 %v3861, %v3860
      %v3910 = vunpack.c.l.b16 %v3798
      %v3911 = vunpack.c.h.b16 %v3798
      %v3912 = vunpack.c.l.b16 %v3799
      %v3913 = vunpack.c.h.b16 %v3799
      %v3914 = vunpack.c.l.b16 %v3800
      %v3915 = vunpack.c.h.b16 %v3800
      %v3916 = vunpack.c.l.b16 %v3801
      %v3917 = vunpack.c.h.b16 %v3801
      %v3918 = vunpack.c.l.b16 %v3802
      %v3919 = vunpack.c.h.b16 %v3802
      %v3920 = vunpack.c.l.b16 %v3803
      %v3921 = vunpack.c.h.b16 %v3803
      %v3922 = vunpack.c.l.b16 %v3804
      %v3923 = vunpack.c.h.b16 %v3804
      %v3924 = vunpack.c.l.b16 %v3805
      %v3925 = vunpack.c.h.b16 %v3805
      %v3926 = vunpack.c.l.b16 %v3806
      %v3927 = vunpack.c.h.b16 %v3806
      %v3928 = vunpack.c.l.b16 %v3807
      %v3929 = vunpack.c.h.b16 %v3807
      %v3930 = vunpack.c.l.b16 %v3808
      %v3931 = vunpack.c.h.b16 %v3808
      %v3932 = vunpack.c.l.b16 %v3809
      %v3933 = vunpack.c.h.b16 %v3809
      %v3934 = vunpack.c.l.b16 %v3810
      %v3935 = vunpack.c.h.b16 %v3810
      %v3936 = vunpack.c.l.b16 %v3811
      %v3937 = vunpack.c.h.b16 %v3811
      %v3938 = vunpack.c.l.b16 %v3812
      %v3939 = vunpack.c.h.b16 %v3812
      %v3940 = vunpack.c.l.b16 %v3813
      %v3941 = vunpack.c.h.b16 %v3813
      %v3942 = vunpack.c.l.b16 %v3814
      %v3943 = vunpack.c.h.b16 %v3814
      %v3944 = vunpack.c.l.b16 %v3815
      %v3945 = vunpack.c.h.b16 %v3815
      %v3946 = vunpack.c.l.b16 %v3816
      %v3947 = vunpack.c.h.b16 %v3816
      %v3948 = vunpack.c.l.b16 %v3817
      %v3949 = vunpack.c.h.b16 %v3817
      %v3950 = vunpack.c.l.b16 %v3818
      %v3951 = vunpack.c.h.b16 %v3818
      %v3952 = vunpack.c.l.b16 %v3819
      %v3953 = vunpack.c.h.b16 %v3819
      %v3954 = vunpack.c.l.b16 %v3820
      %v3955 = vunpack.c.h.b16 %v3820
      %v3956 = vunpack.c.l.b16 %v3821
      %v3957 = vunpack.c.h.b16 %v3821
      %v3958 = vunpack.c.l.b16 %v3822
      %v3959 = vunpack.c.h.b16 %v3822
      %v3960 = vunpack.c.l.b16 %v3823
      %v3961 = vunpack.c.h.b16 %v3823
      %v3962 = vunpack.c.l.b16 %v3824
      %v3963 = vunpack.c.h.b16 %v3824
      %v3964 = vunpack.c.l.b16 %v3825
      %v3965 = vunpack.c.h.b16 %v3825
      %v3966 = vunpack.c.l.b16 %v3826
      %v3967 = vunpack.c.h.b16 %v3826
      %v3968 = vunpack.c.l.b16 %v3827
      %v3969 = vunpack.c.h.b16 %v3827
      %v3970 = vunpack.c.l.b16 %v3828
      %v3971 = vunpack.c.h.b16 %v3828
      %v3972 = vunpack.c.l.b16 %v3829
      %v3973 = vunpack.c.h.b16 %v3829
      %v3974 = vpack.c.b16 %v3912, %v3910
      %v3975 = vpack.c.b16 %v3913, %v3911
      %v3976 = vpack.c.b16 %v3916, %v3914
      %v3977 = vpack.c.b16 %v3917, %v3915
      %v3978 = vpack.c.b16 %v3920, %v3918
      %v3979 = vpack.c.b16 %v3921, %v3919
      %v3980 = vpack.c.b16 %v3924, %v3922
      %v3981 = vpack.c.b16 %v3925, %v3923
      %v3982 = vpack.c.b16 %v3928, %v3926
      %v3983 = vpack.c.b16 %v3929, %v3927
      %v3984 = vpack.c.b16 %v3932, %v3930
      %v3985 = vpack.c.b16 %v3933, %v3931
      %v3986 = vpack.c.b16 %v3936, %v3934
      %v3987 = vpack.c.b16 %v3937, %v3935
      %v3988 = vpack.c.b16 %v3940, %v3938
      %v3989 = vpack.c.b16 %v3941, %v3939
      %v3990 = vpack.c.b16 %v3944, %v3942
      %v3991 = vpack.c.b16 %v3945, %v3943
      %v3992 = vpack.c.b16 %v3948, %v3946
      %v3993 = vpack.c.b16 %v3949, %v3947
      %v3994 = vpack.c.b16 %v3952, %v3950
      %v3995 = vpack.c.b16 %v3953, %v3951
      %v3996 = vpack.c.b16 %v3956, %v3954
      %v3997 = vpack.c.b16 %v3957, %v3955
      %v3998 = vpack.c.b16 %v3960, %v3958
      %v3999 = vpack.c.b16 %v3961, %v3959
      %v4000 = vpack.c.b16 %v3964, %v3962
      %v4001 = vpack.c.b16 %v3965, %v3963
      %v4002 = vpack.c.b16 %v3968, %v3966
      %v4003 = vpack.c.b16 %v3969, %v3967
      %v4004 = vpack.c.b16 %v3972, %v3970
      %v4005 = vpack.c.b16 %v3973, %v3971
      %4038 = vmatprep.subr.bf16.mxu0 0
      %4039 = vmatpush1.bf16.msra.mxu0 %v3869
      %4040 = vmatprep.subr.bf16.mxu0 0
      %4041 = vmatpush1.bf16.msra.mxu0 %v3868
      %4042 = vmatprep.subr.bf16.mxu0 0
      %4043 = vmatpush1.bf16.msra.mxu0 %v3867
      %4044 = vmatprep.subr.bf16.mxu0 0
      %4045 = vmatpush1.bf16.msra.mxu0 %v3866
      %4046 = vmatprep.subr.bf16.mxu0 0
      %4047 = vmatpush1.bf16.msra.mxu0 %v3865
      %4048 = vmatprep.subr.bf16.mxu0 0
      %4049 = vmatpush1.bf16.msra.mxu0 %v3864
      %4050 = vmatprep.subr.bf16.mxu0 0
      %4051 = vmatpush1.bf16.msra.mxu0 %v3863
      %4052 = vmatprep.subr.bf16.mxu0 0
      %4053 = vmatpush1.bf16.msra.mxu0 %v3862
      %4054 = vmatprep.subr.bf16.mxu0 0
      %4055 = vmatpush2.bf16.msra.mxu0 %v3877
      %4056 = vmatprep.subr.bf16.mxu0 0
      %4057 = vmatpush2.bf16.msra.mxu0 %v3876
      %4058 = vmatprep.subr.bf16.mxu0 0
      %4059 = vmatpush2.bf16.msra.mxu0 %v3875
      %4060 = vmatprep.subr.bf16.mxu0 0
      %4061 = vmatpush2.bf16.msra.mxu0 %v3874
      %4062 = vmatprep.subr.bf16.mxu0 0
      %4063 = vmatpush2.bf16.msra.mxu0 %v3873
      %4064 = vmatprep.subr.bf16.mxu0 0
      %4065 = vmatpush2.bf16.msra.mxu0 %v3872
      %4066 = vmatprep.subr.bf16.mxu0 0
      %4067 = vmatpush2.bf16.msra.mxu0 %v3871
      %4068 = vmatprep.subr.bf16.mxu0 0
      %4069 = vmatpush2.bf16.msra.mxu0 %v3870
      %4070 = vmatprep.mubr.bf16.mxu0 %v3975
      %4071 = vmatmul.mubr.bf16.gmra.mxu0 %v3974
      %v4072 = vpop.f32.mrf.mxu0
      %v4073 = vadd.f32 0.0, %v4072
      %v4074 = vpop.f32.mrf.mxu0
      %v4075 = vpop.f32.mrf.mxu0
      %v4076 = vadd.f32 0.0, %v4075
      %v4077 = vpop.f32.mrf.mxu0
      %4078 = vmatprep.mubr.bf16.mxu0 %v3977
      %4079 = vmatmul.mubr.bf16.gmra.mxu0 %v3976
      %v4080 = vpop.f32.mrf.mxu0
      %v4081 = vadd.f32 0.0, %v4080
      %v4082 = vpop.f32.mrf.mxu0
      %v4083 = vpop.f32.mrf.mxu0
      %v4084 = vadd.f32 0.0, %v4083
      %v4085 = vpop.f32.mrf.mxu0
      %4086 = vmatprep.mubr.bf16.mxu0 %v3979
      %4087 = vmatmul.mubr.bf16.gmra.mxu0 %v3978
      %v4088 = vpop.f32.mrf.mxu0
      %v4089 = vadd.f32 0.0, %v4088
      %v4090 = vpop.f32.mrf.mxu0
      %v4091 = vpop.f32.mrf.mxu0
      %v4092 = vadd.f32 0.0, %v4091
      %v4093 = vpop.f32.mrf.mxu0
      %4094 = vmatprep.mubr.bf16.mxu0 %v3981
      %4095 = vmatmul.mubr.bf16.gmra.mxu0 %v3980
      %v4096 = vpop.f32.mrf.mxu0
      %v4097 = vadd.f32 0.0, %v4096
      %v4098 = vpop.f32.mrf.mxu0
      %v4099 = vpop.f32.mrf.mxu0
      %v4100 = vadd.f32 0.0, %v4099
      %v4101 = vpop.f32.mrf.mxu0
      %4102 = vmatprep.mubr.bf16.mxu0 %v3983
      %4103 = vmatmul.mubr.bf16.gmra.mxu0 %v3982
      %v4104 = vpop.f32.mrf.mxu0
      %v4105 = vadd.f32 0.0, %v4104
      %v4106 = vpop.f32.mrf.mxu0
      %v4107 = vpop.f32.mrf.mxu0
      %v4108 = vadd.f32 0.0, %v4107
      %v4109 = vpop.f32.mrf.mxu0
      %4110 = vmatprep.mubr.bf16.mxu0 %v3985
      %4111 = vmatmul.mubr.bf16.gmra.mxu0 %v3984
      %v4112 = vpop.f32.mrf.mxu0
      %v4113 = vadd.f32 0.0, %v4112
      %v4114 = vpop.f32.mrf.mxu0
      %v4115 = vpop.f32.mrf.mxu0
      %v4116 = vadd.f32 0.0, %v4115
      %v4117 = vpop.f32.mrf.mxu0
      %4118 = vmatprep.mubr.bf16.mxu0 %v3987
      %4119 = vmatmul.mubr.bf16.gmra.mxu0 %v3986
      %v4120 = vpop.f32.mrf.mxu0
      %v4121 = vadd.f32 0.0, %v4120
      %v4122 = vpop.f32.mrf.mxu0
      %v4123 = vpop.f32.mrf.mxu0
      %v4124 = vadd.f32 0.0, %v4123
      %v4125 = vpop.f32.mrf.mxu0
      %4126 = vmatprep.mubr.bf16.mxu0 %v3989
      %4127 = vmatmul.mubr.bf16.gmra.mxu0 %v3988
      %v4128 = vpop.f32.mrf.mxu0
      %v4129 = vadd.f32 0.0, %v4128
      %v4130 = vpop.f32.mrf.mxu0
      %v4131 = vpop.f32.mrf.mxu0
      %v4132 = vadd.f32 0.0, %v4131
      %v4133 = vpop.f32.mrf.mxu0
      %4134 = vmatprep.mubr.bf16.mxu0 %v3991
      %4135 = vmatmul.mubr.bf16.gmra.mxu0 %v3990
      %v4136 = vpop.f32.mrf.mxu0
      %v4137 = vadd.f32 0.0, %v4136
      %v4138 = vpop.f32.mrf.mxu0
      %v4139 = vpop.f32.mrf.mxu0
      %v4140 = vadd.f32 0.0, %v4139
      %v4141 = vpop.f32.mrf.mxu0
      %4142 = vmatprep.mubr.bf16.mxu0 %v3993
      %4143 = vmatmul.mubr.bf16.gmra.mxu0 %v3992
      %v4144 = vpop.f32.mrf.mxu0
      %v4145 = vadd.f32 0.0, %v4144
      %v4146 = vpop.f32.mrf.mxu0
      %v4147 = vpop.f32.mrf.mxu0
      %v4148 = vadd.f32 0.0, %v4147
      %v4149 = vpop.f32.mrf.mxu0
      %4150 = vmatprep.mubr.bf16.mxu0 %v3995
      %4151 = vmatmul.mubr.bf16.gmra.mxu0 %v3994
      %v4152 = vpop.f32.mrf.mxu0
      %v4153 = vadd.f32 0.0, %v4152
      %v4154 = vpop.f32.mrf.mxu0
      %v4155 = vpop.f32.mrf.mxu0
      %v4156 = vadd.f32 0.0, %v4155
      %v4157 = vpop.f32.mrf.mxu0
      %4158 = vmatprep.mubr.bf16.mxu0 %v3997
      %4159 = vmatmul.mubr.bf16.gmra.mxu0 %v3996
      %v4160 = vpop.f32.mrf.mxu0
      %v4161 = vadd.f32 0.0, %v4160
      %v4162 = vpop.f32.mrf.mxu0
      %v4163 = vpop.f32.mrf.mxu0
      %v4164 = vadd.f32 0.0, %v4163
      %v4165 = vpop.f32.mrf.mxu0
      %4166 = vmatprep.mubr.bf16.mxu0 %v3999
      %4167 = vmatmul.mubr.bf16.gmra.mxu0 %v3998
      %v4168 = vpop.f32.mrf.mxu0
      %v4169 = vadd.f32 0.0, %v4168
      %v4170 = vpop.f32.mrf.mxu0
      %v4171 = vpop.f32.mrf.mxu0
      %v4172 = vadd.f32 0.0, %v4171
      %v4173 = vpop.f32.mrf.mxu0
      %4174 = vmatprep.mubr.bf16.mxu0 %v4001
      %4175 = vmatmul.mubr.bf16.gmra.mxu0 %v4000
      %v4176 = vpop.f32.mrf.mxu0
      %v4177 = vadd.f32 0.0, %v4176
      %v4178 = vpop.f32.mrf.mxu0
      %v4179 = vpop.f32.mrf.mxu0
      %v4180 = vadd.f32 0.0, %v4179
      %v4181 = vpop.f32.mrf.mxu0
      %4182 = vmatprep.mubr.bf16.mxu0 %v4003
      %4183 = vmatmul.mubr.bf16.gmra.mxu0 %v4002
      %v4184 = vpop.f32.mrf.mxu0
      %v4185 = vadd.f32 0.0, %v4184
      %v4186 = vpop.f32.mrf.mxu0
      %v4187 = vpop.f32.mrf.mxu0
      %v4188 = vadd.f32 0.0, %v4187
      %v4189 = vpop.f32.mrf.mxu0
      %4190 = vmatprep.mubr.bf16.mxu0 %v4005
      %4191 = vmatmul.mubr.bf16.gmra.mxu0 %v4004
      %v4192 = vpop.f32.mrf.mxu0
      %v4193 = vadd.f32 0.0, %v4192
      %v4194 = vpop.f32.mrf.mxu0
      %v4195 = vpop.f32.mrf.mxu0
      %v4196 = vadd.f32 0.0, %v4195
      %v4197 = vpop.f32.mrf.mxu0
      %4198 = vdwg.mxu0
      %v4199 = vlaneseq
      %v4200 = vshrl.u32 %v4199, 7
      %v4201 = vsub.s32 3, %v4200
      %v4202 = vrot.slane %v837, %v4201
      %v4203 = vmul.f32 %v4073, %v4202
      %v4204 = vmul.f32 %v4076, %v4202
      %v4205 = vmul.f32 %v4081, %v4202
      %v4206 = vmul.f32 %v4084, %v4202
      %v4207 = vmul.f32 %v4089, %v4202
      %v4208 = vmul.f32 %v4092, %v4202
      %v4209 = vmul.f32 %v4097, %v4202
      %v4210 = vmul.f32 %v4100, %v4202
      %v4211 = vmul.f32 %v4105, %v4202
      %v4212 = vmul.f32 %v4108, %v4202
      %v4213 = vmul.f32 %v4113, %v4202
      %v4214 = vmul.f32 %v4116, %v4202
      %v4215 = vmul.f32 %v4121, %v4202
      %v4216 = vmul.f32 %v4124, %v4202
      %v4217 = vmul.f32 %v4129, %v4202
      %v4218 = vmul.f32 %v4132, %v4202
      %v4219 = vmul.f32 %v4137, %v4202
      %v4220 = vmul.f32 %v4140, %v4202
      %v4221 = vmul.f32 %v4145, %v4202
      %v4222 = vmul.f32 %v4148, %v4202
      %v4223 = vmul.f32 %v4153, %v4202
      %v4224 = vmul.f32 %v4156, %v4202
      %v4225 = vmul.f32 %v4161, %v4202
      %v4226 = vmul.f32 %v4164, %v4202
      %v4227 = vmul.f32 %v4169, %v4202
      %v4228 = vmul.f32 %v4172, %v4202
      %v4229 = vmul.f32 %v4177, %v4202
      %v4230 = vmul.f32 %v4180, %v4202
      %v4231 = vmul.f32 %v4185, %v4202
      %v4232 = vmul.f32 %v4188, %v4202
      %v4233 = vmul.f32 %v4193, %v4202
      %v4234 = vmul.f32 %v4196, %v4202
      %v4235 = vadd.f32 %v4203, %v3830
      %v4236 = vadd.f32 %v4204, %v3831
      %v4237 = vadd.f32 %v4205, %v3832
      %v4238 = vadd.f32 %v4206, %v3833
      %v4239 = vadd.f32 %v4207, %v3834
      %v4240 = vadd.f32 %v4208, %v3835
      %v4241 = vadd.f32 %v4209, %v3836
      %v4242 = vadd.f32 %v4210, %v3837
      %v4243 = vadd.f32 %v4211, %v3838
      %v4244 = vadd.f32 %v4212, %v3839
      %v4245 = vadd.f32 %v4213, %v3840
      %v4246 = vadd.f32 %v4214, %v3841
      %v4247 = vadd.f32 %v4215, %v3842
      %v4248 = vadd.f32 %v4216, %v3843
      %v4249 = vadd.f32 %v4217, %v3844
      %v4250 = vadd.f32 %v4218, %v3845
      %v4251 = vadd.f32 %v4219, %v3846
      %v4252 = vadd.f32 %v4220, %v3847
      %v4253 = vadd.f32 %v4221, %v3848
      %v4254 = vadd.f32 %v4222, %v3849
      %v4255 = vadd.f32 %v4223, %v3850
      %v4256 = vadd.f32 %v4224, %v3851
      %v4257 = vadd.f32 %v4225, %v3852
      %v4258 = vadd.f32 %v4226, %v3853
      %v4259 = vadd.f32 %v4227, %v3854
      %v4260 = vadd.f32 %v4228, %v3855
      %v4261 = vadd.f32 %v4229, %v3856
      %v4262 = vadd.f32 %v4230, %v3857
      %v4263 = vadd.f32 %v4231, %v3858
      %v4264 = vadd.f32 %v4232, %v3859
      %v4265 = vadd.f32 %v4233, %v3860
      %v4266 = vadd.f32 %v4234, %v3861
      %v4267 = vsel %vm293, %v4235, 0.0
      %4268 = vadd.xlane.f32.xlu0 %v4267
      %v4269 = vpop.xlane.xlu0 %4268
      %v4270 = vsel %vm293, %v4236, 0.0
      %4271 = vadd.xlane.f32.xlu0 %v4270
      %v4272 = vpop.xlane.xlu0 %4271
      %v4273 = vsel %vm293, %v4237, 0.0
      %4274 = vadd.xlane.f32.xlu0 %v4273
      %v4275 = vpop.xlane.xlu0 %4274
      %v4276 = vsel %vm293, %v4238, 0.0
      %4277 = vadd.xlane.f32.xlu0 %v4276
      %v4278 = vpop.xlane.xlu0 %4277
      %v4279 = vsel %vm293, %v4239, 0.0
      %4280 = vadd.xlane.f32.xlu0 %v4279
      %v4281 = vpop.xlane.xlu0 %4280
      %v4282 = vsel %vm293, %v4240, 0.0
      %4283 = vadd.xlane.f32.xlu0 %v4282
      %v4284 = vpop.xlane.xlu0 %4283
      %v4285 = vsel %vm293, %v4241, 0.0
      %4286 = vadd.xlane.f32.xlu0 %v4285
      %v4287 = vpop.xlane.xlu0 %4286
      %v4288 = vsel %vm293, %v4242, 0.0
      %4289 = vadd.xlane.f32.xlu0 %v4288
      %v4290 = vpop.xlane.xlu0 %4289
      %v4291 = vsel %vm293, %v4243, 0.0
      %4292 = vadd.xlane.f32.xlu0 %v4291
      %v4293 = vpop.xlane.xlu0 %4292
      %v4294 = vsel %vm293, %v4244, 0.0
      %4295 = vadd.xlane.f32.xlu0 %v4294
      %v4296 = vpop.xlane.xlu0 %4295
      %v4297 = vsel %vm293, %v4245, 0.0
      %4298 = vadd.xlane.f32.xlu0 %v4297
      %v4299 = vpop.xlane.xlu0 %4298
      %v4300 = vsel %vm293, %v4246, 0.0
      %4301 = vadd.xlane.f32.xlu0 %v4300
      %v4302 = vpop.xlane.xlu0 %4301
      %v4303 = vsel %vm293, %v4247, 0.0
      %4304 = vadd.xlane.f32.xlu0 %v4303
      %v4305 = vpop.xlane.xlu0 %4304
      %v4306 = vsel %vm293, %v4248, 0.0
      %4307 = vadd.xlane.f32.xlu0 %v4306
      %v4308 = vpop.xlane.xlu0 %4307
      %v4309 = vsel %vm293, %v4249, 0.0
      %4310 = vadd.xlane.f32.xlu0 %v4309
      %v4311 = vpop.xlane.xlu0 %4310
      %v4312 = vsel %vm293, %v4250, 0.0
      %4313 = vadd.xlane.f32.xlu0 %v4312
      %v4314 = vpop.xlane.xlu0 %4313
      %v4315 = vsel %vm293, %v4251, 0.0
      %4316 = vadd.xlane.f32.xlu0 %v4315
      %v4317 = vpop.xlane.xlu0 %4316
      %v4318 = vsel %vm293, %v4252, 0.0
      %4319 = vadd.xlane.f32.xlu0 %v4318
      %v4320 = vpop.xlane.xlu0 %4319
      %v4321 = vsel %vm293, %v4253, 0.0
      %4322 = vadd.xlane.f32.xlu0 %v4321
      %v4323 = vpop.xlane.xlu0 %4322
      %v4324 = vsel %vm293, %v4254, 0.0
      %4325 = vadd.xlane.f32.xlu0 %v4324
      %v4326 = vpop.xlane.xlu0 %4325
      %v4327 = vsel %vm293, %v4255, 0.0
      %4328 = vadd.xlane.f32.xlu0 %v4327
      %v4329 = vpop.xlane.xlu0 %4328
      %v4330 = vsel %vm293, %v4256, 0.0
      %4331 = vadd.xlane.f32.xlu0 %v4330
      %v4332 = vpop.xlane.xlu0 %4331
      %v4333 = vsel %vm293, %v4257, 0.0
      %4334 = vadd.xlane.f32.xlu0 %v4333
      %v4335 = vpop.xlane.xlu0 %4334
      %v4336 = vsel %vm293, %v4258, 0.0
      %4337 = vadd.xlane.f32.xlu0 %v4336
      %v4338 = vpop.xlane.xlu0 %4337
      %v4339 = vsel %vm293, %v4259, 0.0
      %4340 = vadd.xlane.f32.xlu0 %v4339
      %v4341 = vpop.xlane.xlu0 %4340
      %v4342 = vsel %vm293, %v4260, 0.0
      %4343 = vadd.xlane.f32.xlu0 %v4342
      %v4344 = vpop.xlane.xlu0 %4343
      %v4345 = vsel %vm293, %v4261, 0.0
      %4346 = vadd.xlane.f32.xlu0 %v4345
      %v4347 = vpop.xlane.xlu0 %4346
      %v4348 = vsel %vm293, %v4262, 0.0
      %4349 = vadd.xlane.f32.xlu0 %v4348
      %v4350 = vpop.xlane.xlu0 %4349
      %v4351 = vsel %vm293, %v4263, 0.0
      %4352 = vadd.xlane.f32.xlu0 %v4351
      %v4353 = vpop.xlane.xlu0 %4352
      %v4354 = vsel %vm293, %v4264, 0.0
      %4355 = vadd.xlane.f32.xlu0 %v4354
      %v4356 = vpop.xlane.xlu0 %4355
      %v4357 = vsel %vm293, %v4265, 0.0
      %4358 = vadd.xlane.f32.xlu0 %v4357
      %v4359 = vpop.xlane.xlu0 %4358
      %v4360 = vsel %vm293, %v4266, 0.0
      %4361 = vadd.xlane.f32.xlu0 %v4360
      %v4362 = vpop.xlane.xlu0 %4361
      %v4363 = vmul.f32 %v4269, %v1405
      %v4364 = vmul.f32 %v4272, %v1405
      %v4365 = vmul.f32 %v4275, %v1405
      %v4366 = vmul.f32 %v4278, %v1405
      %v4367 = vmul.f32 %v4281, %v1405
      %v4368 = vmul.f32 %v4284, %v1405
      %v4369 = vmul.f32 %v4287, %v1405
      %v4370 = vmul.f32 %v4290, %v1405
      %v4371 = vmul.f32 %v4293, %v1405
      %v4372 = vmul.f32 %v4296, %v1405
      %v4373 = vmul.f32 %v4299, %v1405
      %v4374 = vmul.f32 %v4302, %v1405
      %v4375 = vmul.f32 %v4305, %v1405
      %v4376 = vmul.f32 %v4308, %v1405
      %v4377 = vmul.f32 %v4311, %v1405
      %v4378 = vmul.f32 %v4314, %v1405
      %v4379 = vmul.f32 %v4317, %v1405
      %v4380 = vmul.f32 %v4320, %v1405
      %v4381 = vmul.f32 %v4323, %v1405
      %v4382 = vmul.f32 %v4326, %v1405
      %v4383 = vmul.f32 %v4329, %v1405
      %v4384 = vmul.f32 %v4332, %v1405
      %v4385 = vmul.f32 %v4335, %v1405
      %v4386 = vmul.f32 %v4338, %v1405
      %v4387 = vmul.f32 %v4341, %v1405
      %v4388 = vmul.f32 %v4344, %v1405
      %v4389 = vmul.f32 %v4347, %v1405
      %v4390 = vmul.f32 %v4350, %v1405
      %v4391 = vmul.f32 %v4353, %v1405
      %v4392 = vmul.f32 %v4356, %v1405
      %v4393 = vmul.f32 %v4359, %v1405
      %v4394 = vmul.f32 %v4362, %v1405
      %v4395 = vsub.f32 %v4235, %v4363
      %v4396 = vsub.f32 %v4236, %v4364
      %v4397 = vsub.f32 %v4237, %v4365
      %v4398 = vsub.f32 %v4238, %v4366
      %v4399 = vsub.f32 %v4239, %v4367
      %v4400 = vsub.f32 %v4240, %v4368
      %v4401 = vsub.f32 %v4241, %v4369
      %v4402 = vsub.f32 %v4242, %v4370
      %v4403 = vsub.f32 %v4243, %v4371
      %v4404 = vsub.f32 %v4244, %v4372
      %v4405 = vsub.f32 %v4245, %v4373
      %v4406 = vsub.f32 %v4246, %v4374
      %v4407 = vsub.f32 %v4247, %v4375
      %v4408 = vsub.f32 %v4248, %v4376
      %v4409 = vsub.f32 %v4249, %v4377
      %v4410 = vsub.f32 %v4250, %v4378
      %v4411 = vsub.f32 %v4251, %v4379
      %v4412 = vsub.f32 %v4252, %v4380
      %v4413 = vsub.f32 %v4253, %v4381
      %v4414 = vsub.f32 %v4254, %v4382
      %v4415 = vsub.f32 %v4255, %v4383
      %v4416 = vsub.f32 %v4256, %v4384
      %v4417 = vsub.f32 %v4257, %v4385
      %v4418 = vsub.f32 %v4258, %v4386
      %v4419 = vsub.f32 %v4259, %v4387
      %v4420 = vsub.f32 %v4260, %v4388
      %v4421 = vsub.f32 %v4261, %v4389
      %v4422 = vsub.f32 %v4262, %v4390
      %v4423 = vsub.f32 %v4263, %v4391
      %v4424 = vsub.f32 %v4264, %v4392
      %v4425 = vsub.f32 %v4265, %v4393
      %v4426 = vsub.f32 %v4266, %v4394
      %v4427 = vmul.f32 %v4395, %v4395
      %v4428 = vmul.f32 %v4396, %v4396
      %v4429 = vmul.f32 %v4397, %v4397
      %v4430 = vmul.f32 %v4398, %v4398
      %v4431 = vmul.f32 %v4399, %v4399
      %v4432 = vmul.f32 %v4400, %v4400
      %v4433 = vmul.f32 %v4401, %v4401
      %v4434 = vmul.f32 %v4402, %v4402
      %v4435 = vmul.f32 %v4403, %v4403
      %v4436 = vmul.f32 %v4404, %v4404
      %v4437 = vmul.f32 %v4405, %v4405
      %v4438 = vmul.f32 %v4406, %v4406
      %v4439 = vmul.f32 %v4407, %v4407
      %v4440 = vmul.f32 %v4408, %v4408
      %v4441 = vmul.f32 %v4409, %v4409
      %v4442 = vmul.f32 %v4410, %v4410
      %v4443 = vmul.f32 %v4411, %v4411
      %v4444 = vmul.f32 %v4412, %v4412
      %v4445 = vmul.f32 %v4413, %v4413
      %v4446 = vmul.f32 %v4414, %v4414
      %v4447 = vmul.f32 %v4415, %v4415
      %v4448 = vmul.f32 %v4416, %v4416
      %v4449 = vmul.f32 %v4417, %v4417
      %v4450 = vmul.f32 %v4418, %v4418
      %v4451 = vmul.f32 %v4419, %v4419
      %v4452 = vmul.f32 %v4420, %v4420
      %v4453 = vmul.f32 %v4421, %v4421
      %v4454 = vmul.f32 %v4422, %v4422
      %v4455 = vmul.f32 %v4423, %v4423
      %v4456 = vmul.f32 %v4424, %v4424
      %v4457 = vmul.f32 %v4425, %v4425
      %v4458 = vmul.f32 %v4426, %v4426
      %v4459 = vsel %vm293, %v4427, 0.0
      %4460 = vadd.xlane.f32.xlu0 %v4459
      %v4461 = vpop.xlane.xlu0 %4460
      %v4462 = vsel %vm293, %v4428, 0.0
      %4463 = vadd.xlane.f32.xlu0 %v4462
      %v4464 = vpop.xlane.xlu0 %4463
      %v4465 = vsel %vm293, %v4429, 0.0
      %4466 = vadd.xlane.f32.xlu0 %v4465
      %v4467 = vpop.xlane.xlu0 %4466
      %v4468 = vsel %vm293, %v4430, 0.0
      %4469 = vadd.xlane.f32.xlu0 %v4468
      %v4470 = vpop.xlane.xlu0 %4469
      %v4471 = vsel %vm293, %v4431, 0.0
      %4472 = vadd.xlane.f32.xlu0 %v4471
      %v4473 = vpop.xlane.xlu0 %4472
      %v4474 = vsel %vm293, %v4432, 0.0
      %4475 = vadd.xlane.f32.xlu0 %v4474
      %v4476 = vpop.xlane.xlu0 %4475
      %v4477 = vsel %vm293, %v4433, 0.0
      %4478 = vadd.xlane.f32.xlu0 %v4477
      %v4479 = vpop.xlane.xlu0 %4478
      %v4480 = vsel %vm293, %v4434, 0.0
      %4481 = vadd.xlane.f32.xlu0 %v4480
      %v4482 = vpop.xlane.xlu0 %4481
      %v4483 = vsel %vm293, %v4435, 0.0
      %4484 = vadd.xlane.f32.xlu0 %v4483
      %v4485 = vpop.xlane.xlu0 %4484
      %v4486 = vsel %vm293, %v4436, 0.0
      %4487 = vadd.xlane.f32.xlu0 %v4486
      %v4488 = vpop.xlane.xlu0 %4487
      %v4489 = vsel %vm293, %v4437, 0.0
      %4490 = vadd.xlane.f32.xlu0 %v4489
      %v4491 = vpop.xlane.xlu0 %4490
      %v4492 = vsel %vm293, %v4438, 0.0
      %4493 = vadd.xlane.f32.xlu0 %v4492
      %v4494 = vpop.xlane.xlu0 %4493
      %v4495 = vsel %vm293, %v4439, 0.0
      %4496 = vadd.xlane.f32.xlu0 %v4495
      %v4497 = vpop.xlane.xlu0 %4496
      %v4498 = vsel %vm293, %v4440, 0.0
      %4499 = vadd.xlane.f32.xlu0 %v4498
      %v4500 = vpop.xlane.xlu0 %4499
      %v4501 = vsel %vm293, %v4441, 0.0
      %4502 = vadd.xlane.f32.xlu0 %v4501
      %v4503 = vpop.xlane.xlu0 %4502
      %v4504 = vsel %vm293, %v4442, 0.0
      %4505 = vadd.xlane.f32.xlu0 %v4504
      %v4506 = vpop.xlane.xlu0 %4505
      %v4507 = vsel %vm293, %v4443, 0.0
      %4508 = vadd.xlane.f32.xlu0 %v4507
      %v4509 = vpop.xlane.xlu0 %4508
      %v4510 = vsel %vm293, %v4444, 0.0
      %4511 = vadd.xlane.f32.xlu0 %v4510
      %v4512 = vpop.xlane.xlu0 %4511
      %v4513 = vsel %vm293, %v4445, 0.0
      %4514 = vadd.xlane.f32.xlu0 %v4513
      %v4515 = vpop.xlane.xlu0 %4514
      %v4516 = vsel %vm293, %v4446, 0.0
      %4517 = vadd.xlane.f32.xlu0 %v4516
      %v4518 = vpop.xlane.xlu0 %4517
      %v4519 = vsel %vm293, %v4447, 0.0
      %4520 = vadd.xlane.f32.xlu0 %v4519
      %v4521 = vpop.xlane.xlu0 %4520
      %v4522 = vsel %vm293, %v4448, 0.0
      %4523 = vadd.xlane.f32.xlu0 %v4522
      %v4524 = vpop.xlane.xlu0 %4523
      %v4525 = vsel %vm293, %v4449, 0.0
      %4526 = vadd.xlane.f32.xlu0 %v4525
      %v4527 = vpop.xlane.xlu0 %4526
      %v4528 = vsel %vm293, %v4450, 0.0
      %4529 = vadd.xlane.f32.xlu0 %v4528
      %v4530 = vpop.xlane.xlu0 %4529
      %v4531 = vsel %vm293, %v4451, 0.0
      %4532 = vadd.xlane.f32.xlu0 %v4531
      %v4533 = vpop.xlane.xlu0 %4532
      %v4534 = vsel %vm293, %v4452, 0.0
      %4535 = vadd.xlane.f32.xlu0 %v4534
      %v4536 = vpop.xlane.xlu0 %4535
      %v4537 = vsel %vm293, %v4453, 0.0
      %4538 = vadd.xlane.f32.xlu0 %v4537
      %v4539 = vpop.xlane.xlu0 %4538
      %v4540 = vsel %vm293, %v4454, 0.0
      %4541 = vadd.xlane.f32.xlu0 %v4540
      %v4542 = vpop.xlane.xlu0 %4541
      %v4543 = vsel %vm293, %v4455, 0.0
      %4544 = vadd.xlane.f32.xlu0 %v4543
      %v4545 = vpop.xlane.xlu0 %4544
      %v4546 = vsel %vm293, %v4456, 0.0
      %4547 = vadd.xlane.f32.xlu0 %v4546
      %v4548 = vpop.xlane.xlu0 %4547
      %v4549 = vsel %vm293, %v4457, 0.0
      %4550 = vadd.xlane.f32.xlu0 %v4549
      %v4551 = vpop.xlane.xlu0 %4550
      %v4552 = vsel %vm293, %v4458, 0.0
      %4553 = vadd.xlane.f32.xlu0 %v4552
      %v4554 = vpop.xlane.xlu0 %4553
      %v4555 = vmul.f32 %v4461, %v1405
      %v4556 = vmul.f32 %v4464, %v1405
      %v4557 = vmul.f32 %v4467, %v1405
      %v4558 = vmul.f32 %v4470, %v1405
      %v4559 = vmul.f32 %v4473, %v1405
      %v4560 = vmul.f32 %v4476, %v1405
      %v4561 = vmul.f32 %v4479, %v1405
      %v4562 = vmul.f32 %v4482, %v1405
      %v4563 = vmul.f32 %v4485, %v1405
      %v4564 = vmul.f32 %v4488, %v1405
      %v4565 = vmul.f32 %v4491, %v1405
      %v4566 = vmul.f32 %v4494, %v1405
      %v4567 = vmul.f32 %v4497, %v1405
      %v4568 = vmul.f32 %v4500, %v1405
      %v4569 = vmul.f32 %v4503, %v1405
      %v4570 = vmul.f32 %v4506, %v1405
      %v4571 = vmul.f32 %v4509, %v1405
      %v4572 = vmul.f32 %v4512, %v1405
      %v4573 = vmul.f32 %v4515, %v1405
      %v4574 = vmul.f32 %v4518, %v1405
      %v4575 = vmul.f32 %v4521, %v1405
      %v4576 = vmul.f32 %v4524, %v1405
      %v4577 = vmul.f32 %v4527, %v1405
      %v4578 = vmul.f32 %v4530, %v1405
      %v4579 = vmul.f32 %v4533, %v1405
      %v4580 = vmul.f32 %v4536, %v1405
      %v4581 = vmul.f32 %v4539, %v1405
      %v4582 = vmul.f32 %v4542, %v1405
      %v4583 = vmul.f32 %v4545, %v1405
      %v4584 = vmul.f32 %v4548, %v1405
      %v4585 = vmul.f32 %v4551, %v1405
      %v4586 = vmul.f32 %v4554, %v1405
      %v4587 = vadd.f32 %v4555, 1e-05
      %v4588 = vadd.f32 %v4556, 1e-05
      %v4589 = vadd.f32 %v4557, 1e-05
      %v4590 = vadd.f32 %v4558, 1e-05
      %v4591 = vadd.f32 %v4559, 1e-05
      %v4592 = vadd.f32 %v4560, 1e-05
      %v4593 = vadd.f32 %v4561, 1e-05
      %v4594 = vadd.f32 %v4562, 1e-05
      %v4595 = vadd.f32 %v4563, 1e-05
      %v4596 = vadd.f32 %v4564, 1e-05
      %v4597 = vadd.f32 %v4565, 1e-05
      %v4598 = vadd.f32 %v4566, 1e-05
      %v4599 = vadd.f32 %v4567, 1e-05
      %v4600 = vadd.f32 %v4568, 1e-05
      %v4601 = vadd.f32 %v4569, 1e-05
      %v4602 = vadd.f32 %v4570, 1e-05
      %v4603 = vadd.f32 %v4571, 1e-05
      %v4604 = vadd.f32 %v4572, 1e-05
      %v4605 = vadd.f32 %v4573, 1e-05
      %v4606 = vadd.f32 %v4574, 1e-05
      %v4607 = vadd.f32 %v4575, 1e-05
      %v4608 = vadd.f32 %v4576, 1e-05
      %v4609 = vadd.f32 %v4577, 1e-05
      %v4610 = vadd.f32 %v4578, 1e-05
      %v4611 = vadd.f32 %v4579, 1e-05
      %v4612 = vadd.f32 %v4580, 1e-05
      %v4613 = vadd.f32 %v4581, 1e-05
      %v4614 = vadd.f32 %v4582, 1e-05
      %v4615 = vadd.f32 %v4583, 1e-05
      %v4616 = vadd.f32 %v4584, 1e-05
      %v4617 = vadd.f32 %v4585, 1e-05
      %v4618 = vadd.f32 %v4586, 1e-05
      %v4619 = vrsqrt.pop %v4587
      %v4620 = vrsqrt.pop %v4588
      %v4621 = vrsqrt.pop %v4589
      %v4622 = vrsqrt.pop %v4590
      %v4623 = vrsqrt.pop %v4591
      %v4624 = vrsqrt.pop %v4592
      %v4625 = vrsqrt.pop %v4593
      %v4626 = vrsqrt.pop %v4594
      %v4627 = vrsqrt.pop %v4595
      %v4628 = vrsqrt.pop %v4596
      %v4629 = vrsqrt.pop %v4597
      %v4630 = vrsqrt.pop %v4598
      %v4631 = vrsqrt.pop %v4599
      %v4632 = vrsqrt.pop %v4600
      %v4633 = vrsqrt.pop %v4601
      %v4634 = vrsqrt.pop %v4602
      %v4635 = vrsqrt.pop %v4603
      %v4636 = vrsqrt.pop %v4604
      %v4637 = vrsqrt.pop %v4605
      %v4638 = vrsqrt.pop %v4606
      %v4639 = vrsqrt.pop %v4607
      %v4640 = vrsqrt.pop %v4608
      %v4641 = vrsqrt.pop %v4609
      %v4642 = vrsqrt.pop %v4610
      %v4643 = vrsqrt.pop %v4611
      %v4644 = vrsqrt.pop %v4612
      %v4645 = vrsqrt.pop %v4613
      %v4646 = vrsqrt.pop %v4614
      %v4647 = vrsqrt.pop %v4615
      %v4648 = vrsqrt.pop %v4616
      %v4649 = vrsqrt.pop %v4617
      %v4650 = vrsqrt.pop %v4618
      %v4651 = vmul.f32 %v4395, %v4619
      %v4652 = vmul.f32 %v4396, %v4620
      %v4653 = vmul.f32 %v4397, %v4621
      %v4654 = vmul.f32 %v4398, %v4622
      %v4655 = vmul.f32 %v4399, %v4623
      %v4656 = vmul.f32 %v4400, %v4624
      %v4657 = vmul.f32 %v4401, %v4625
      %v4658 = vmul.f32 %v4402, %v4626
      %v4659 = vmul.f32 %v4403, %v4627
      %v4660 = vmul.f32 %v4404, %v4628
      %v4661 = vmul.f32 %v4405, %v4629
      %v4662 = vmul.f32 %v4406, %v4630
      %v4663 = vmul.f32 %v4407, %v4631
      %v4664 = vmul.f32 %v4408, %v4632
      %v4665 = vmul.f32 %v4409, %v4633
      %v4666 = vmul.f32 %v4410, %v4634
      %v4667 = vmul.f32 %v4411, %v4635
      %v4668 = vmul.f32 %v4412, %v4636
      %v4669 = vmul.f32 %v4413, %v4637
      %v4670 = vmul.f32 %v4414, %v4638
      %v4671 = vmul.f32 %v4415, %v4639
      %v4672 = vmul.f32 %v4416, %v4640
      %v4673 = vmul.f32 %v4417, %v4641
      %v4674 = vmul.f32 %v4418, %v4642
      %v4675 = vmul.f32 %v4419, %v4643
      %v4676 = vmul.f32 %v4420, %v4644
      %v4677 = vmul.f32 %v4421, %v4645
      %v4678 = vmul.f32 %v4422, %v4646
      %v4679 = vmul.f32 %v4423, %v4647
      %v4680 = vmul.f32 %v4424, %v4648
      %v4681 = vmul.f32 %v4425, %v4649
      %v4682 = vmul.f32 %v4426, %v4650
      %v4683 = vmul.f32 %v4651, %v1730
      %v4684 = vmul.f32 %v4652, %v1730
      %v4685 = vmul.f32 %v4653, %v1730
      %v4686 = vmul.f32 %v4654, %v1730
      %v4687 = vmul.f32 %v4655, %v1730
      %v4688 = vmul.f32 %v4656, %v1730
      %v4689 = vmul.f32 %v4657, %v1730
      %v4690 = vmul.f32 %v4658, %v1730
      %v4691 = vmul.f32 %v4659, %v1730
      %v4692 = vmul.f32 %v4660, %v1730
      %v4693 = vmul.f32 %v4661, %v1730
      %v4694 = vmul.f32 %v4662, %v1730
      %v4695 = vmul.f32 %v4663, %v1730
      %v4696 = vmul.f32 %v4664, %v1730
      %v4697 = vmul.f32 %v4665, %v1730
      %v4698 = vmul.f32 %v4666, %v1730
      %v4699 = vmul.f32 %v4667, %v1730
      %v4700 = vmul.f32 %v4668, %v1730
      %v4701 = vmul.f32 %v4669, %v1730
      %v4702 = vmul.f32 %v4670, %v1730
      %v4703 = vmul.f32 %v4671, %v1730
      %v4704 = vmul.f32 %v4672, %v1730
      %v4705 = vmul.f32 %v4673, %v1730
      %v4706 = vmul.f32 %v4674, %v1730
      %v4707 = vmul.f32 %v4675, %v1730
      %v4708 = vmul.f32 %v4676, %v1730
      %v4709 = vmul.f32 %v4677, %v1730
      %v4710 = vmul.f32 %v4678, %v1730
      %v4711 = vmul.f32 %v4679, %v1730
      %v4712 = vmul.f32 %v4680, %v1730
      %v4713 = vmul.f32 %v4681, %v1730
      %v4714 = vmul.f32 %v4682, %v1730
      %v4715 = vadd.f32 %v4683, %v1768
      %v4716 = vadd.f32 %v4684, %v1768
      %v4717 = vadd.f32 %v4685, %v1768
      %v4718 = vadd.f32 %v4686, %v1768
      %v4719 = vadd.f32 %v4687, %v1768
      %v4720 = vadd.f32 %v4688, %v1768
      %v4721 = vadd.f32 %v4689, %v1768
      %v4722 = vadd.f32 %v4690, %v1768
      %v4723 = vadd.f32 %v4691, %v1768
      %v4724 = vadd.f32 %v4692, %v1768
      %v4725 = vadd.f32 %v4693, %v1768
      %v4726 = vadd.f32 %v4694, %v1768
      %v4727 = vadd.f32 %v4695, %v1768
      %v4728 = vadd.f32 %v4696, %v1768
      %v4729 = vadd.f32 %v4697, %v1768
      %v4730 = vadd.f32 %v4698, %v1768
      %v4731 = vadd.f32 %v4699, %v1768
      %v4732 = vadd.f32 %v4700, %v1768
      %v4733 = vadd.f32 %v4701, %v1768
      %v4734 = vadd.f32 %v4702, %v1768
      %v4735 = vadd.f32 %v4703, %v1768
      %v4736 = vadd.f32 %v4704, %v1768
      %v4737 = vadd.f32 %v4705, %v1768
      %v4738 = vadd.f32 %v4706, %v1768
      %v4739 = vadd.f32 %v4707, %v1768
      %v4740 = vadd.f32 %v4708, %v1768
      %v4741 = vadd.f32 %v4709, %v1768
      %v4742 = vadd.f32 %v4710, %v1768
      %v4743 = vadd.f32 %v4711, %v1768
      %v4744 = vadd.f32 %v4712, %v1768
      %v4745 = vadd.f32 %v4713, %v1768
      %v4746 = vadd.f32 %v4714, %v1768
      %s4747 = scalar_lea.vmem %s258, 768
      %4748 = vst.msk [vmem:[%s4747] sm:$0xff] %vm293, %v4715
      %4749 = vst.msk [vmem:[%s4747 + $0x8] sm:$0xff] %vm293, %v4716
      %4750 = vst.msk [vmem:[%s4747 + $0x10] sm:$0xff] %vm293, %v4717
      %4751 = vst.msk [vmem:[%s4747 + $0x18] sm:$0xff] %vm293, %v4718
      %4752 = vst.msk [vmem:[%s4747 + $0x20] sm:$0xff] %vm293, %v4719
      %4753 = vst.msk [vmem:[%s4747 + $0x28] sm:$0xff] %vm293, %v4720
      %4754 = vst.msk [vmem:[%s4747 + $0x30] sm:$0xff] %vm293, %v4721
      %4755 = vst.msk [vmem:[%s4747 + $0x38] sm:$0xff] %vm293, %v4722
      %4756 = vst.msk [vmem:[%s4747 + $0x40] sm:$0xff] %vm293, %v4723
      %4757 = vst.msk [vmem:[%s4747 + $0x48] sm:$0xff] %vm293, %v4724
      %4758 = vst.msk [vmem:[%s4747 + $0x50] sm:$0xff] %vm293, %v4725
      %4759 = vst.msk [vmem:[%s4747 + $0x58] sm:$0xff] %vm293, %v4726
      %4760 = vst.msk [vmem:[%s4747 + $0x60] sm:$0xff] %vm293, %v4727
      %4761 = vst.msk [vmem:[%s4747 + $0x68] sm:$0xff] %vm293, %v4728
      %4762 = vst.msk [vmem:[%s4747 + $0x70] sm:$0xff] %vm293, %v4729
      %4763 = vst.msk [vmem:[%s4747 + $0x78] sm:$0xff] %vm293, %v4730
      %4764 = vst.msk [vmem:[%s4747 + $0x80] sm:$0xff] %vm293, %v4731
      %4765 = vst.msk [vmem:[%s4747 + $0x88] sm:$0xff] %vm293, %v4732
      %4766 = vst.msk [vmem:[%s4747 + $0x90] sm:$0xff] %vm293, %v4733
      %4767 = vst.msk [vmem:[%s4747 + $0x98] sm:$0xff] %vm293, %v4734
      %4768 = vst.msk [vmem:[%s4747 + $0xa0] sm:$0xff] %vm293, %v4735
      %4769 = vst.msk [vmem:[%s4747 + $0xa8] sm:$0xff] %vm293, %v4736
      %4770 = vst.msk [vmem:[%s4747 + $0xb0] sm:$0xff] %vm293, %v4737
      %4771 = vst.msk [vmem:[%s4747 + $0xb8] sm:$0xff] %vm293, %v4738
      %4772 = vst.msk [vmem:[%s4747 + $0xc0] sm:$0xff] %vm293, %v4739
      %4773 = vst.msk [vmem:[%s4747 + $0xc8] sm:$0xff] %vm293, %v4740
      %4774 = vst.msk [vmem:[%s4747 + $0xd0] sm:$0xff] %vm293, %v4741
      %4775 = vst.msk [vmem:[%s4747 + $0xd8] sm:$0xff] %vm293, %v4742
      %4776 = vst.msk [vmem:[%s4747 + $0xe0] sm:$0xff] %vm293, %v4743
      %4777 = vst.msk [vmem:[%s4747 + $0xe8] sm:$0xff] %vm293, %v4744
      %4778 = vst.msk [vmem:[%s4747 + $0xf0] sm:$0xff] %vm293, %v4745
      %4779 = vst.msk [vmem:[%s4747 + $0xf8] sm:$0xff] %vm293, %v4746
      %s4780 = smul.u32 4, %s17
      %p4781 = scmp.lt.s32.totalorder %s4780, 7
      %s4782 = scalar_select %p4781, %s4780, 7
      %s4783 = smul.addr %s4782, 32
      %s4784 = smul.addr %s4783, 8
      %s4785 = scalar_lea.vmem %s6, %s4784
      // Predicated region
      $region45: #{tpu_custom_call.1} parent=43 // pred_check
        %p4786 = pneg %p166
      $region46: #{tpu_custom_call.1} parent=43 // pred_check_branch
        %4788 = sbr.rel (%p4786) target = $region48
      $region47: #{tpu_custom_call.1} parent=43 // pred_region
        %s4789 = smul.u32 4, %s17
      $region48: #{tpu_custom_call.1} parent=43 // pred_fallthru
        _
    $region44: #{tpu_custom_call.1} parent=5 // pred_fallthru
      _
    %p4790 = scmp.le.s32.totalorder 2, %s12
    // Predicated region
    $region49: #{tpu_custom_call.1} parent=5 // pred_check
      %p4791 = pneg %p4790
    $region50: #{tpu_custom_call.1} parent=5 // pred_check_branch
      %4793 = sbr.rel (%p4791) target = $region52
    $region51: #{tpu_custom_call.1} parent=5 // pred_region
      %s4794 = ssub.s32 %s12, 2
      // Predicated region
      $region53: #{tpu_custom_call.1} parent=51 // pred_check
        %p4795 = pneg %p172
      $region54: #{tpu_custom_call.1} parent=51 // pred_check_branch
        %4797 = sbr.rel (%p4795) target = $region56
      $region55: #{tpu_custom_call.1} parent=51 // pred_region
        %s4798 = smul.u32 4, %s18
        %p4799 = scmp.lt.s32.totalorder %s4798, 7
        %s4800 = scalar_select %p4799, %s4798, 7
        %s4801 = smul.addr %s4800, 32
        %s4802 = smul.addr %s4801, 8
        %s4803 = scalar_lea.vmem %s6, %s4802
      $region56: #{tpu_custom_call.1} parent=51 // pred_fallthru
        _
    $region52: #{tpu_custom_call.1} parent=5 // pred_fallthru
      _
  $region6: #{tpu_custom_call.1} parent=0 // loop_footer
    %s16 = sadd.s32 1, %s12
  $region7: #{tpu_custom_call.1} parent=0 // loop_footer_branch
    %11 = sbr.rel target = $region3
  $region8: #{tpu_custom_call.1} parent=0 // loop_exit
    _

</llo_original>
